<compile_context>
chip_gen: v7x
topology: tpu7x:2x2x1
jax: 0.10.0
libtpu: 0.0.40
codegen_flags: <defaults>
</compile_context>

<pallas_src>
import numpy as np

import jax
import jax.numpy as jnp
from jax.experimental import pallas as pl
from jax.experimental.pallas import tpu as pltpu

TB = 8  # batch tile per grid step (multiple of 8); tunable for larger batches


# ------------------------------ Pallas kernel -------------------------------

def _lenet_kernel(xp_ref, w1b_ref, b1_ref, w2b_ref, b2_ref, pavg_ref,
                  f1w_ref, f1b_ref, f2w_ref, f2b_ref, f3w_ref, f3b_ref, o_ref):
    """Whole LeNet forward for one tile of TB images, resident in VMEM.

    xp_ref : [TB, 2, 18, 28]  input rows split by parity (row 2r+p -> [p, r]),
                              rows zero-padded 14 -> 18.
    w1b_ref: [5, 28, 144]     conv1 banded matrices, one per row tap ki.
                              output column = (j%2)*72 + (j//2)*6 + oc
    w2b_ref: [5, 72, 128]     conv2 banded matrices over r1's (j', ic) lanes.
                              output column = (J%2)*64 + (J//2)*16 + oc
    pavg_ref:[4*TB, 8*TB]     constant 0.25 matrix: avg-pool over conv2 rows.
    f1w_ref: [4, 64, 120]     fc1 weights, rows = (J'*16 + c) per pooled row I'.
    """
    f32 = jnp.float32
    tb = xp_ref.shape[0]

    # ---- conv1 (5x5, 1->6) fused with 2x2 max-pool + ReLU -------------------
    # acc[di][(b, i'), (j%2)*72 + (j//2)*6 + oc] = conv1 output at (2i'+di, j, oc)
    bias1 = b1_ref[...]
    acc = []
    for di in range(2):
        a = jnp.zeros((tb * 16, 144), f32) + bias1
        for ki in range(5):
            p, off = (di + ki) % 2, (di + ki) // 2
            win = xp_ref[:, p, off:off + 16, :]               # [tb, 16, 28]
            a = a + jnp.dot(win.reshape(tb * 16, 28), w1b_ref[ki],
                            preferred_element_type=f32)
        acc.append(a)
    y1 = jnp.maximum(acc[0], acc[1])                          # pool over row pair
    y1 = jnp.maximum(y1[:, :72], y1[:, 72:])                  # pool over col pair
    r1 = jnp.maximum(y1, 0.0)                                 # ReLU after the pool
    r1 = r1.reshape(tb, 16, 72)[:, :12, :]                    # keep 12 valid rows
    # r1[b, i', j'*6 + ic] = relu(maxpool2x2(conv1(x)))[b, i', j', ic]

    # ---- conv2 (5x5, 6->16) fused with 2x2 avg-pool + ReLU ------------------
    acc2 = jnp.zeros((tb * 8, 128), f32) + b2_ref[...]
    for ki in range(5):
        win = r1[:, ki:ki + 8, :]                             # [tb, 8, 72]
        acc2 = acc2 + jnp.dot(win.reshape(tb * 8, 72), w2b_ref[ki],
                              preferred_element_type=f32)
    csum = acc2[:, :64] + acc2[:, 64:]                        # sum over col pair
    r2 = jnp.dot(pavg_ref[...], csum, preferred_element_type=f32)  # 0.25*(row pair)
    r2 = jnp.maximum(r2, 0.0)                                 # ReLU after the pool
    # r2 rows come out as (I', b) blocks: rows [ii*tb:(ii+1)*tb] hold pooled row ii.

    # ---- fc1 -> ReLU -> fc2 -> ReLU -> fc3 ----------------------------------
    h = jnp.zeros((tb, 120), f32) + f1b_ref[...]
    for ii in range(4):
        h = h + jnp.dot(r2[ii * tb:(ii + 1) * tb, :], f1w_ref[ii],
                        preferred_element_type=f32)
    h = jnp.maximum(h, 0.0)
    h = jnp.maximum(jnp.dot(h, f2w_ref[...], preferred_element_type=f32)
                    + f2b_ref[...], 0.0)
    out = jnp.dot(h, f3w_ref[...], preferred_element_type=f32) + f3b_ref[...]
    o_ref[...] = out.astype(o_ref.dtype)


# ------------------------- host-side weight packing -------------------------

def pack_lenet_params(params, tb=TB):
    """One-time repack of PyTorch-layout LeNet weights for the fused kernel."""
    w1 = np.asarray(params["conv1_w"], np.float32)   # [6, 1, 5, 5]
    b1 = np.asarray(params["conv1_b"], np.float32)   # [6]
    w2 = np.asarray(params["conv2_w"], np.float32)   # [16, 6, 5, 5]
    b2 = np.asarray(params["conv2_b"], np.float32)   # [16]
    f1w = np.asarray(params["fc1_w"], np.float32)    # [120, 256]
    f1b = np.asarray(params["fc1_b"], np.float32)
    f2w = np.asarray(params["fc2_w"], np.float32)    # [84, 120]
    f2b = np.asarray(params["fc2_b"], np.float32)
    f3w = np.asarray(params["fc3_w"], np.float32)    # [nc, 84]
    f3b = np.asarray(params["fc3_b"], np.float32)
    nc = f3w.shape[0]

    # conv1 as banded matmuls over the 28-wide image row.
    # column index = (j % 2) * 72 + (j // 2) * 6 + oc   (even/odd cols separated)
    w1b = np.zeros((5, 28, 144), np.float32)
    for ki in range(5):
        for j in range(24):
            c0 = (j % 2) * 72 + (j // 2) * 6
            for kj in range(5):
                w1b[ki, j + kj, c0:c0 + 6] = w1[:, 0, ki, kj]
    b1v = np.tile(b1, 24).reshape(1, 144)

    # conv2 as banded matmuls over r1's fused (j', ic) lane axis (row = j'*6+ic).
    # column index = (J % 2) * 64 + (J // 2) * 16 + oc
    w2b = np.zeros((5, 72, 128), np.float32)
    for ki in range(5):
        for J in range(8):
            c0 = (J % 2) * 64 + (J // 2) * 16
            for kj in range(5):
                jj = J + kj
                w2b[ki, jj * 6:(jj + 1) * 6, c0:c0 + 16] = w2[:, :, ki, kj].T
    b2v = np.tile(b2, 8).reshape(1, 128)

    # Avg-pool over conv2 output rows as a constant matmul.
    # csum rows are (b, I) = b*8 + I ; pooled rows come out as (I', b) = I'*tb + b.
    pavg = np.zeros((4 * tb, 8 * tb), np.float32)
    for ip in range(4):
        for bb in range(tb):
            pavg[ip * tb + bb, bb * 8 + 2 * ip] = 0.25
            pavg[ip * tb + bb, bb * 8 + 2 * ip + 1] = 0.25

    # fc1: reorder columns once so the kernel's (I'=h, J'*16+c) layout matches
    # PyTorch's (c, h, w) flatten; split per pooled row h for the 4-way accumulate.
    f1r = f1w.reshape(120, 16, 4, 4).transpose(2, 3, 1, 0)    # [h, w, c, o]
    fc1wk = f1r.reshape(4, 64, 120)                           # row = w*16 + c

    return dict(
        w1_band=jnp.asarray(w1b), b1=jnp.asarray(b1v),
        w2_band=jnp.asarray(w2b), b2=jnp.asarray(b2v),
        pool2_avg=jnp.asarray(pavg),
        fc1_w=jnp.asarray(fc1wk), fc1_b=jnp.asarray(f1b.reshape(1, 120)),
        fc2_w=jnp.asarray(f2w.T), fc2_b=jnp.asarray(f2b.reshape(1, 84)),
        fc3_w=jnp.asarray(f3w.T), fc3_b=jnp.asarray(f3b.reshape(1, nc)),
    )


# ------------------------------ forward wrapper ------------------------------

def lenet_forward(packed, x_nchw):
    b = x_nchw.shape[0]
    nc = packed["fc3_w"].shape[1]
    x = x_nchw.reshape(b, 28, 28).astype(jnp.float32)

    bpad = -(-b // TB) * TB
    x = jnp.pad(x, ((0, bpad - b), (0, 0), (0, 0)))
    # Row-parity split so conv1 + 2x2 max-pool need no strided access in-kernel.
    xp = jnp.stack([x[:, 0::2, :], x[:, 1::2, :]], axis=1)    # [bpad, 2, 14, 28]
    xp = jnp.pad(xp, ((0, 0), (0, 0), (0, 4), (0, 0)))        # rows 14 -> 18

    def full(shape):
        return pl.BlockSpec(shape, lambda i: (0,) * len(shape))

    out = pl.pallas_call(
        _lenet_kernel,
        out_shape=jax.ShapeDtypeStruct((bpad, nc), jnp.float32),
        grid=(bpad // TB,),
        in_specs=[
            pl.BlockSpec((TB, 2, 18, 28), lambda i: (i, 0, 0, 0)),
            full((5, 28, 144)), full((1, 144)),
            full((5, 72, 128)), full((1, 128)),
            full((4 * TB, 8 * TB)),
            full((4, 64, 120)), full((1, 120)),
            full((120, 84)), full((1, 84)),
            full((84, nc)), full((1, nc)),
        ],
        out_specs=pl.BlockSpec((TB, nc), lambda i: (i, 0)),
        compiler_params=pltpu.CompilerParams(
            dimension_semantics=("parallel",),        # batch tiles across cores
            vmem_limit_bytes=32 * 1024 * 1024,
        ),
    )(xp, packed["w1_band"], packed["b1"], packed["w2_band"], packed["b2"],
      packed["pool2_avg"], packed["fc1_w"], packed["fc1_b"],
      packed["fc2_w"], packed["fc2_b"], packed["fc3_w"], packed["fc3_b"])
    return out[:b]


# ------------------------- reference + initialization ------------------------

def init_params(key, num_classes=10):
    ks = jax.random.split(key, 10)

    def u(k, shape, fan_in):
        bound = 1.0 / jnp.sqrt(jnp.float32(fan_in))
        return jax.random.uniform(k, shape, jnp.float32, -bound, bound)

    return dict(
        conv1_w=u(ks[0], (6, 1, 5, 5), 25), conv1_b=u(ks[1], (6,), 25),
        conv2_w=u(ks[2], (16, 6, 5, 5), 150), conv2_b=u(ks[3], (16,), 150),
        fc1_w=u(ks[4], (120, 256), 256), fc1_b=u(ks[5], (120,), 256),
        fc2_w=u(ks[6], (84, 120), 120), fc2_b=u(ks[7], (84,), 120),
        fc3_w=u(ks[8], (num_classes, 84), 84), fc3_b=u(ks[9], (num_classes,), 84),
    )


def _pool_2x2(y, mode):
    b, c, h, w = y.shape
    t = y.reshape(b, c, h // 2, 2, w // 2, 2)
    return t.max(axis=(3, 5)) if mode == "max" else t.mean(axis=(3, 5))


def lenet_reference(params, x):
    dn = ("NCHW", "OIHW", "NCHW")
    y = jax.lax.conv_general_dilated(x, params["conv1_w"], (1, 1), "VALID",
                                     dimension_numbers=dn)
    y = y + params["conv1_b"][None, :, None, None]
    y = jax.nn.relu(_pool_2x2(y, "max"))
    y = jax.lax.conv_general_dilated(y, params["conv2_w"], (1, 1), "VALID",
                                     dimension_numbers=dn)
    y = y + params["conv2_b"][None, :, None, None]
    y = jax.nn.relu(_pool_2x2(y, "avg"))
    y = y.reshape(x.shape[0], -1)
    y = jax.nn.relu(y @ params["fc1_w"].T + params["fc1_b"])
    y = jax.nn.relu(y @ params["fc2_w"].T + params["fc2_b"])
    return y @ params["fc3_w"].T + params["fc3_b"]


if __name__ == "__main__":
    key = jax.random.PRNGKey(0)
    pkey, xkey = jax.random.split(key)
    params = init_params(pkey, num_classes=10)
    # LeNet's fc1 (16*4*4 inputs) implies 28x28 single-channel input.
    x = jax.random.normal(xkey, (2, 1, 28, 28), jnp.float32)

    packed = pack_lenet_params(params)
    out = jax.jit(lenet_forward)(packed, x)
    out = jax.block_until_ready(out)
    assert out.shape == (2, 10) and out.dtype == jnp.float32

    ref = lenet_reference(params, x)
    assert float(jnp.max(jnp.abs(out - ref))) < 5e-2, "mismatch vs JAX reference"
    print("KERNEL_OK")
</pallas_src>

<mosaic_0001>
module attributes {stable_mosaic.version = 11 : i64} {
  func.func @_lenet_kernel(%arg0: i32, %arg1: memref<8x2x18x28xf32, #tpu.memory_space<vmem>>, %arg2: memref<5x28x144xf32, #tpu.memory_space<vmem>>, %arg3: memref<1x144xf32, #tpu.memory_space<vmem>>, %arg4: memref<5x72x128xf32, #tpu.memory_space<vmem>>, %arg5: memref<1x128xf32, #tpu.memory_space<vmem>>, %arg6: memref<32x64xf32, #tpu.memory_space<vmem>>, %arg7: memref<4x64x120xf32, #tpu.memory_space<vmem>>, %arg8: memref<1x120xf32, #tpu.memory_space<vmem>>, %arg9: memref<120x84xf32, #tpu.memory_space<vmem>>, %arg10: memref<1x84xf32, #tpu.memory_space<vmem>>, %arg11: memref<84x10xf32, #tpu.memory_space<vmem>>, %arg12: memref<1x10xf32, #tpu.memory_space<vmem>>, %arg13: memref<8x10xf32, #tpu.memory_space<vmem>>) attributes {dimension_semantics = [#tpu.dimension_semantics<parallel>], iteration_bounds = array<i64: 1>, scalar_prefetch = 0 : i64, scratch_operands = 0 : i64, tpu.core_type = #tpu.core_type<tc>, window_params = [{transform_indices = @transform_0, window_bounds = array<i64: 8, 2, 18, 28>}, {pipeline_mode = #tpu.pipeline_mode<synchronous>, transform_indices = @transform_1, window_bounds = array<i64: 5, 28, 144>}, {pipeline_mode = #tpu.pipeline_mode<synchronous>, transform_indices = @transform_2, window_bounds = array<i64: 1, 144>}, {pipeline_mode = #tpu.pipeline_mode<synchronous>, transform_indices = @transform_3, window_bounds = array<i64: 5, 72, 128>}, {pipeline_mode = #tpu.pipeline_mode<synchronous>, transform_indices = @transform_4, window_bounds = array<i64: 1, 128>}, {pipeline_mode = #tpu.pipeline_mode<synchronous>, transform_indices = @transform_5, window_bounds = array<i64: 32, 64>}, {pipeline_mode = #tpu.pipeline_mode<synchronous>, transform_indices = @transform_6, window_bounds = array<i64: 4, 64, 120>}, {pipeline_mode = #tpu.pipeline_mode<synchronous>, transform_indices = @transform_7, window_bounds = array<i64: 1, 120>}, {pipeline_mode = #tpu.pipeline_mode<synchronous>, transform_indices = @transform_8, window_bounds = array<i64: 120, 84>}, {pipeline_mode = #tpu.pipeline_mode<synchronous>, transform_indices = @transform_9, window_bounds = array<i64: 1, 84>}, {pipeline_mode = #tpu.pipeline_mode<synchronous>, transform_indices = @transform_10, window_bounds = array<i64: 84, 10>}, {pipeline_mode = #tpu.pipeline_mode<synchronous>, transform_indices = @transform_11, window_bounds = array<i64: 1, 10>}, {transform_indices = @transform_12, window_bounds = array<i64: 8, 10>}]} {
    %c0 = arith.constant 0 : index
    %c0_0 = arith.constant 0 : index
    %0 = vector.load %arg3[%c0, %c0_0] : memref<1x144xf32, #tpu.memory_space<vmem>>, vector<1x144xf32>
    %cst = arith.constant 0.000000e+00 : f32
    %1 = vector.broadcast %cst : f32 to vector<128x144xf32>
    %2 = vector.broadcast %0 : vector<1x144xf32> to vector<128x144xf32>
    %3 = arith.addf %1, %2 : vector<128x144xf32>
    %c0_1 = arith.constant 0 : index
    %c0_2 = arith.constant 0 : index
    %c0_3 = arith.constant 0 : index
    %c0_4 = arith.constant 0 : index
    %4 = vector.load %arg1[%c0_1, %c0_2, %c0_3, %c0_4] : memref<8x2x18x28xf32, #tpu.memory_space<vmem>>, vector<8x1x16x28xf32>
    %5 = vector.shape_cast %4 : vector<8x1x16x28xf32> to vector<8x16x28xf32>
    %6 = vector.shape_cast %5 : vector<8x16x28xf32> to vector<128x28xf32>
    %c0_5 = arith.constant 0 : index
    %c0_6 = arith.constant 0 : index
    %c0_7 = arith.constant 0 : index
    %7 = vector.load %arg2[%c0_5, %c0_6, %c0_7] : memref<5x28x144xf32, #tpu.memory_space<vmem>>, vector<1x28x144xf32>
    %8 = vector.shape_cast %7 : vector<1x28x144xf32> to vector<28x144xf32>
    %cst_8 = arith.constant dense<0.000000e+00> : vector<128x144xf32>
    %9 = tpu.matmul %6, %8, %cst_8 {dimension_numbers = #tpu.dot_dimension_numbers<[1], [0], [0], [1], [0, 0, 1, 1], [], []>} : vector<128x28xf32>, vector<28x144xf32>, vector<128x144xf32> -> vector<128x144xf32>
    %10 = arith.addf %3, %9 : vector<128x144xf32>
    %c0_9 = arith.constant 0 : index
    %c1 = arith.constant 1 : index
    %c0_10 = arith.constant 0 : index
    %c0_11 = arith.constant 0 : index
    %11 = vector.load %arg1[%c0_9, %c1, %c0_10, %c0_11] : memref<8x2x18x28xf32, #tpu.memory_space<vmem>>, vector<8x1x16x28xf32>
    %12 = vector.shape_cast %11 : vector<8x1x16x28xf32> to vector<8x16x28xf32>
    %13 = vector.shape_cast %12 : vector<8x16x28xf32> to vector<128x28xf32>
    %c1_12 = arith.constant 1 : index
    %c0_13 = arith.constant 0 : index
    %c0_14 = arith.constant 0 : index
    %14 = vector.load %arg2[%c1_12, %c0_13, %c0_14] : memref<5x28x144xf32, #tpu.memory_space<vmem>>, vector<1x28x144xf32>
    %15 = vector.shape_cast %14 : vector<1x28x144xf32> to vector<28x144xf32>
    %cst_15 = arith.constant dense<0.000000e+00> : vector<128x144xf32>
    %16 = tpu.matmul %13, %15, %cst_15 {dimension_numbers = #tpu.dot_dimension_numbers<[1], [0], [0], [1], [0, 0, 1, 1], [], []>} : vector<128x28xf32>, vector<28x144xf32>, vector<128x144xf32> -> vector<128x144xf32>
    %17 = arith.addf %10, %16 : vector<128x144xf32>
    %c0_16 = arith.constant 0 : index
    %c0_17 = arith.constant 0 : index
    %c1_18 = arith.constant 1 : index
    %c0_19 = arith.constant 0 : index
    %18 = vector.load %arg1[%c0_16, %c0_17, %c1_18, %c0_19] : memref<8x2x18x28xf32, #tpu.memory_space<vmem>>, vector<8x1x16x28xf32>
    %19 = vector.shape_cast %18 : vector<8x1x16x28xf32> to vector<8x16x28xf32>
    %20 = vector.shape_cast %19 : vector<8x16x28xf32> to vector<128x28xf32>
    %c2 = arith.constant 2 : index
    %c0_20 = arith.constant 0 : index
    %c0_21 = arith.constant 0 : index
    %21 = vector.load %arg2[%c2, %c0_20, %c0_21] : memref<5x28x144xf32, #tpu.memory_space<vmem>>, vector<1x28x144xf32>
    %22 = vector.shape_cast %21 : vector<1x28x144xf32> to vector<28x144xf32>
    %cst_22 = arith.constant dense<0.000000e+00> : vector<128x144xf32>
    %23 = tpu.matmul %20, %22, %cst_22 {dimension_numbers = #tpu.dot_dimension_numbers<[1], [0], [0], [1], [0, 0, 1, 1], [], []>} : vector<128x28xf32>, vector<28x144xf32>, vector<128x144xf32> -> vector<128x144xf32>
    %24 = arith.addf %17, %23 : vector<128x144xf32>
    %c0_23 = arith.constant 0 : index
    %c1_24 = arith.constant 1 : index
    %c1_25 = arith.constant 1 : index
    %c0_26 = arith.constant 0 : index
    %25 = vector.load %arg1[%c0_23, %c1_24, %c1_25, %c0_26] : memref<8x2x18x28xf32, #tpu.memory_space<vmem>>, vector<8x1x16x28xf32>
    %26 = vector.shape_cast %25 : vector<8x1x16x28xf32> to vector<8x16x28xf32>
    %27 = vector.shape_cast %26 : vector<8x16x28xf32> to vector<128x28xf32>
    %c3 = arith.constant 3 : index
    %c0_27 = arith.constant 0 : index
    %c0_28 = arith.constant 0 : index
    %28 = vector.load %arg2[%c3, %c0_27, %c0_28] : memref<5x28x144xf32, #tpu.memory_space<vmem>>, vector<1x28x144xf32>
    %29 = vector.shape_cast %28 : vector<1x28x144xf32> to vector<28x144xf32>
    %cst_29 = arith.constant dense<0.000000e+00> : vector<128x144xf32>
    %30 = tpu.matmul %27, %29, %cst_29 {dimension_numbers = #tpu.dot_dimension_numbers<[1], [0], [0], [1], [0, 0, 1, 1], [], []>} : vector<128x28xf32>, vector<28x144xf32>, vector<128x144xf32> -> vector<128x144xf32>
    %31 = arith.addf %24, %30 : vector<128x144xf32>
    %c0_30 = arith.constant 0 : index
    %c0_31 = arith.constant 0 : index
    %c2_32 = arith.constant 2 : index
    %c0_33 = arith.constant 0 : index
    %32 = vector.load %arg1[%c0_30, %c0_31, %c2_32, %c0_33] : memref<8x2x18x28xf32, #tpu.memory_space<vmem>>, vector<8x1x16x28xf32>
    %33 = vector.shape_cast %32 : vector<8x1x16x28xf32> to vector<8x16x28xf32>
    %34 = vector.shape_cast %33 : vector<8x16x28xf32> to vector<128x28xf32>
    %c4 = arith.constant 4 : index
    %c0_34 = arith.constant 0 : index
    %c0_35 = arith.constant 0 : index
    %35 = vector.load %arg2[%c4, %c0_34, %c0_35] : memref<5x28x144xf32, #tpu.memory_space<vmem>>, vector<1x28x144xf32>
    %36 = vector.shape_cast %35 : vector<1x28x144xf32> to vector<28x144xf32>
    %cst_36 = arith.constant dense<0.000000e+00> : vector<128x144xf32>
    %37 = tpu.matmul %34, %36, %cst_36 {dimension_numbers = #tpu.dot_dimension_numbers<[1], [0], [0], [1], [0, 0, 1, 1], [], []>} : vector<128x28xf32>, vector<28x144xf32>, vector<128x144xf32> -> vector<128x144xf32>
    %38 = arith.addf %31, %37 : vector<128x144xf32>
    %cst_37 = arith.constant 0.000000e+00 : f32
    %39 = vector.broadcast %cst_37 : f32 to vector<128x144xf32>
    %40 = vector.broadcast %0 : vector<1x144xf32> to vector<128x144xf32>
    %41 = arith.addf %39, %40 : vector<128x144xf32>
    %c0_38 = arith.constant 0 : index
    %c1_39 = arith.constant 1 : index
    %c0_40 = arith.constant 0 : index
    %c0_41 = arith.constant 0 : index
    %42 = vector.load %arg1[%c0_38, %c1_39, %c0_40, %c0_41] : memref<8x2x18x28xf32, #tpu.memory_space<vmem>>, vector<8x1x16x28xf32>
    %43 = vector.shape_cast %42 : vector<8x1x16x28xf32> to vector<8x16x28xf32>
    %44 = vector.shape_cast %43 : vector<8x16x28xf32> to vector<128x28xf32>
    %c0_42 = arith.constant 0 : index
    %c0_43 = arith.constant 0 : index
    %c0_44 = arith.constant 0 : index
    %45 = vector.load %arg2[%c0_42, %c0_43, %c0_44] : memref<5x28x144xf32, #tpu.memory_space<vmem>>, vector<1x28x144xf32>
    %46 = vector.shape_cast %45 : vector<1x28x144xf32> to vector<28x144xf32>
    %cst_45 = arith.constant dense<0.000000e+00> : vector<128x144xf32>
    %47 = tpu.matmul %44, %46, %cst_45 {dimension_numbers = #tpu.dot_dimension_numbers<[1], [0], [0], [1], [0, 0, 1, 1], [], []>} : vector<128x28xf32>, vector<28x144xf32>, vector<128x144xf32> -> vector<128x144xf32>
    %48 = arith.addf %41, %47 : vector<128x144xf32>
    %c0_46 = arith.constant 0 : index
    %c0_47 = arith.constant 0 : index
    %c1_48 = arith.constant 1 : index
    %c0_49 = arith.constant 0 : index
    %49 = vector.load %arg1[%c0_46, %c0_47, %c1_48, %c0_49] : memref<8x2x18x28xf32, #tpu.memory_space<vmem>>, vector<8x1x16x28xf32>
    %50 = vector.shape_cast %49 : vector<8x1x16x28xf32> to vector<8x16x28xf32>
    %51 = vector.shape_cast %50 : vector<8x16x28xf32> to vector<128x28xf32>
    %c1_50 = arith.constant 1 : index
    %c0_51 = arith.constant 0 : index
    %c0_52 = arith.constant 0 : index
    %52 = vector.load %arg2[%c1_50, %c0_51, %c0_52] : memref<5x28x144xf32, #tpu.memory_space<vmem>>, vector<1x28x144xf32>
    %53 = vector.shape_cast %52 : vector<1x28x144xf32> to vector<28x144xf32>
    %cst_53 = arith.constant dense<0.000000e+00> : vector<128x144xf32>
    %54 = tpu.matmul %51, %53, %cst_53 {dimension_numbers = #tpu.dot_dimension_numbers<[1], [0], [0], [1], [0, 0, 1, 1], [], []>} : vector<128x28xf32>, vector<28x144xf32>, vector<128x144xf32> -> vector<128x144xf32>
    %55 = arith.addf %48, %54 : vector<128x144xf32>
    %c0_54 = arith.constant 0 : index
    %c1_55 = arith.constant 1 : index
    %c1_56 = arith.constant 1 : index
    %c0_57 = arith.constant 0 : index
    %56 = vector.load %arg1[%c0_54, %c1_55, %c1_56, %c0_57] : memref<8x2x18x28xf32, #tpu.memory_space<vmem>>, vector<8x1x16x28xf32>
    %57 = vector.shape_cast %56 : vector<8x1x16x28xf32> to vector<8x16x28xf32>
    %58 = vector.shape_cast %57 : vector<8x16x28xf32> to vector<128x28xf32>
    %c2_58 = arith.constant 2 : index
    %c0_59 = arith.constant 0 : index
    %c0_60 = arith.constant 0 : index
    %59 = vector.load %arg2[%c2_58, %c0_59, %c0_60] : memref<5x28x144xf32, #tpu.memory_space<vmem>>, vector<1x28x144xf32>
    %60 = vector.shape_cast %59 : vector<1x28x144xf32> to vector<28x144xf32>
    %cst_61 = arith.constant dense<0.000000e+00> : vector<128x144xf32>
    %61 = tpu.matmul %58, %60, %cst_61 {dimension_numbers = #tpu.dot_dimension_numbers<[1], [0], [0], [1], [0, 0, 1, 1], [], []>} : vector<128x28xf32>, vector<28x144xf32>, vector<128x144xf32> -> vector<128x144xf32>
    %62 = arith.addf %55, %61 : vector<128x144xf32>
    %c0_62 = arith.constant 0 : index
    %c0_63 = arith.constant 0 : index
    %c2_64 = arith.constant 2 : index
    %c0_65 = arith.constant 0 : index
    %63 = vector.load %arg1[%c0_62, %c0_63, %c2_64, %c0_65] : memref<8x2x18x28xf32, #tpu.memory_space<vmem>>, vector<8x1x16x28xf32>
    %64 = vector.shape_cast %63 : vector<8x1x16x28xf32> to vector<8x16x28xf32>
    %65 = vector.shape_cast %64 : vector<8x16x28xf32> to vector<128x28xf32>
    %c3_66 = arith.constant 3 : index
    %c0_67 = arith.constant 0 : index
    %c0_68 = arith.constant 0 : index
    %66 = vector.load %arg2[%c3_66, %c0_67, %c0_68] : memref<5x28x144xf32, #tpu.memory_space<vmem>>, vector<1x28x144xf32>
    %67 = vector.shape_cast %66 : vector<1x28x144xf32> to vector<28x144xf32>
    %cst_69 = arith.constant dense<0.000000e+00> : vector<128x144xf32>
    %68 = tpu.matmul %65, %67, %cst_69 {dimension_numbers = #tpu.dot_dimension_numbers<[1], [0], [0], [1], [0, 0, 1, 1], [], []>} : vector<128x28xf32>, vector<28x144xf32>, vector<128x144xf32> -> vector<128x144xf32>
    %69 = arith.addf %62, %68 : vector<128x144xf32>
    %c0_70 = arith.constant 0 : index
    %c1_71 = arith.constant 1 : index
    %c2_72 = arith.constant 2 : index
    %c0_73 = arith.constant 0 : index
    %70 = vector.load %arg1[%c0_70, %c1_71, %c2_72, %c0_73] : memref<8x2x18x28xf32, #tpu.memory_space<vmem>>, vector<8x1x16x28xf32>
    %71 = vector.shape_cast %70 : vector<8x1x16x28xf32> to vector<8x16x28xf32>
    %72 = vector.shape_cast %71 : vector<8x16x28xf32> to vector<128x28xf32>
    %c4_74 = arith.constant 4 : index
    %c0_75 = arith.constant 0 : index
    %c0_76 = arith.constant 0 : index
    %73 = vector.load %arg2[%c4_74, %c0_75, %c0_76] : memref<5x28x144xf32, #tpu.memory_space<vmem>>, vector<1x28x144xf32>
    %74 = vector.shape_cast %73 : vector<1x28x144xf32> to vector<28x144xf32>
    %cst_77 = arith.constant dense<0.000000e+00> : vector<128x144xf32>
    %75 = tpu.matmul %72, %74, %cst_77 {dimension_numbers = #tpu.dot_dimension_numbers<[1], [0], [0], [1], [0, 0, 1, 1], [], []>} : vector<128x28xf32>, vector<28x144xf32>, vector<128x144xf32> -> vector<128x144xf32>
    %76 = arith.addf %69, %75 : vector<128x144xf32>
    %77 = arith.maximumf %38, %76 : vector<128x144xf32>
    %78 = vector.extract_strided_slice %77 {offsets = [0, 0], sizes = [128, 72], strides = [1, 1]} : vector<128x144xf32> to vector<128x72xf32>
    %79 = vector.extract_strided_slice %77 {offsets = [0, 72], sizes = [128, 72], strides = [1, 1]} : vector<128x144xf32> to vector<128x72xf32>
    %80 = arith.maximumf %78, %79 : vector<128x72xf32>
    %cst_78 = arith.constant 0.000000e+00 : f32
    %81 = vector.broadcast %cst_78 : f32 to vector<128x72xf32>
    %82 = arith.maximumf %80, %81 : vector<128x72xf32>
    %83 = vector.shape_cast %82 : vector<128x72xf32> to vector<8x16x72xf32>
    %84 = vector.extract_strided_slice %83 {offsets = [0, 0, 0], sizes = [8, 12, 72], strides = [1, 1, 1]} : vector<8x16x72xf32> to vector<8x12x72xf32>
    %cst_79 = arith.constant 0.000000e+00 : f32
    %85 = vector.broadcast %cst_79 : f32 to vector<64x128xf32>
    %c0_80 = arith.constant 0 : index
    %c0_81 = arith.constant 0 : index
    %86 = vector.load %arg5[%c0_80, %c0_81] : memref<1x128xf32, #tpu.memory_space<vmem>>, vector<1x128xf32>
    %87 = vector.broadcast %86 : vector<1x128xf32> to vector<64x128xf32>
    %88 = arith.addf %85, %87 : vector<64x128xf32>
    %89 = vector.extract_strided_slice %84 {offsets = [0, 0, 0], sizes = [8, 8, 72], strides = [1, 1, 1]} : vector<8x12x72xf32> to vector<8x8x72xf32>
    %90 = vector.shape_cast %89 : vector<8x8x72xf32> to vector<64x72xf32>
    %c0_82 = arith.constant 0 : index
    %c0_83 = arith.constant 0 : index
    %c0_84 = arith.constant 0 : index
    %91 = vector.load %arg4[%c0_82, %c0_83, %c0_84] : memref<5x72x128xf32, #tpu.memory_space<vmem>>, vector<1x72x128xf32>
    %92 = vector.shape_cast %91 : vector<1x72x128xf32> to vector<72x128xf32>
    %cst_85 = arith.constant dense<0.000000e+00> : vector<64x128xf32>
    %93 = tpu.matmul %90, %92, %cst_85 {dimension_numbers = #tpu.dot_dimension_numbers<[1], [0], [0], [1], [0, 0, 1, 1], [], []>} : vector<64x72xf32>, vector<72x128xf32>, vector<64x128xf32> -> vector<64x128xf32>
    %94 = arith.addf %88, %93 : vector<64x128xf32>
    %95 = vector.extract_strided_slice %84 {offsets = [0, 1, 0], sizes = [8, 8, 72], strides = [1, 1, 1]} : vector<8x12x72xf32> to vector<8x8x72xf32>
    %96 = vector.shape_cast %95 : vector<8x8x72xf32> to vector<64x72xf32>
    %c1_86 = arith.constant 1 : index
    %c0_87 = arith.constant 0 : index
    %c0_88 = arith.constant 0 : index
    %97 = vector.load %arg4[%c1_86, %c0_87, %c0_88] : memref<5x72x128xf32, #tpu.memory_space<vmem>>, vector<1x72x128xf32>
    %98 = vector.shape_cast %97 : vector<1x72x128xf32> to vector<72x128xf32>
    %cst_89 = arith.constant dense<0.000000e+00> : vector<64x128xf32>
    %99 = tpu.matmul %96, %98, %cst_89 {dimension_numbers = #tpu.dot_dimension_numbers<[1], [0], [0], [1], [0, 0, 1, 1], [], []>} : vector<64x72xf32>, vector<72x128xf32>, vector<64x128xf32> -> vector<64x128xf32>
    %100 = arith.addf %94, %99 : vector<64x128xf32>
    %101 = vector.extract_strided_slice %84 {offsets = [0, 2, 0], sizes = [8, 8, 72], strides = [1, 1, 1]} : vector<8x12x72xf32> to vector<8x8x72xf32>
    %102 = vector.shape_cast %101 : vector<8x8x72xf32> to vector<64x72xf32>
    %c2_90 = arith.constant 2 : index
    %c0_91 = arith.constant 0 : index
    %c0_92 = arith.constant 0 : index
    %103 = vector.load %arg4[%c2_90, %c0_91, %c0_92] : memref<5x72x128xf32, #tpu.memory_space<vmem>>, vector<1x72x128xf32>
    %104 = vector.shape_cast %103 : vector<1x72x128xf32> to vector<72x128xf32>
    %cst_93 = arith.constant dense<0.000000e+00> : vector<64x128xf32>
    %105 = tpu.matmul %102, %104, %cst_93 {dimension_numbers = #tpu.dot_dimension_numbers<[1], [0], [0], [1], [0, 0, 1, 1], [], []>} : vector<64x72xf32>, vector<72x128xf32>, vector<64x128xf32> -> vector<64x128xf32>
    %106 = arith.addf %100, %105 : vector<64x128xf32>
    %107 = vector.extract_strided_slice %84 {offsets = [0, 3, 0], sizes = [8, 8, 72], strides = [1, 1, 1]} : vector<8x12x72xf32> to vector<8x8x72xf32>
    %108 = vector.shape_cast %107 : vector<8x8x72xf32> to vector<64x72xf32>
    %c3_94 = arith.constant 3 : index
    %c0_95 = arith.constant 0 : index
    %c0_96 = arith.constant 0 : index
    %109 = vector.load %arg4[%c3_94, %c0_95, %c0_96] : memref<5x72x128xf32, #tpu.memory_space<vmem>>, vector<1x72x128xf32>
    %110 = vector.shape_cast %109 : vector<1x72x128xf32> to vector<72x128xf32>
    %cst_97 = arith.constant dense<0.000000e+00> : vector<64x128xf32>
    %111 = tpu.matmul %108, %110, %cst_97 {dimension_numbers = #tpu.dot_dimension_numbers<[1], [0], [0], [1], [0, 0, 1, 1], [], []>} : vector<64x72xf32>, vector<72x128xf32>, vector<64x128xf32> -> vector<64x128xf32>
    %112 = arith.addf %106, %111 : vector<64x128xf32>
    %113 = vector.extract_strided_slice %84 {offsets = [0, 4, 0], sizes = [8, 8, 72], strides = [1, 1, 1]} : vector<8x12x72xf32> to vector<8x8x72xf32>
    %114 = vector.shape_cast %113 : vector<8x8x72xf32> to vector<64x72xf32>
    %c4_98 = arith.constant 4 : index
    %c0_99 = arith.constant 0 : index
    %c0_100 = arith.constant 0 : index
    %115 = vector.load %arg4[%c4_98, %c0_99, %c0_100] : memref<5x72x128xf32, #tpu.memory_space<vmem>>, vector<1x72x128xf32>
    %116 = vector.shape_cast %115 : vector<1x72x128xf32> to vector<72x128xf32>
    %cst_101 = arith.constant dense<0.000000e+00> : vector<64x128xf32>
    %117 = tpu.matmul %114, %116, %cst_101 {dimension_numbers = #tpu.dot_dimension_numbers<[1], [0], [0], [1], [0, 0, 1, 1], [], []>} : vector<64x72xf32>, vector<72x128xf32>, vector<64x128xf32> -> vector<64x128xf32>
    %118 = arith.addf %112, %117 : vector<64x128xf32>
    %119 = vector.extract_strided_slice %118 {offsets = [0, 0], sizes = [64, 64], strides = [1, 1]} : vector<64x128xf32> to vector<64x64xf32>
    %120 = vector.extract_strided_slice %118 {offsets = [0, 64], sizes = [64, 64], strides = [1, 1]} : vector<64x128xf32> to vector<64x64xf32>
    %121 = arith.addf %119, %120 : vector<64x64xf32>
    %c0_102 = arith.constant 0 : index
    %c0_103 = arith.constant 0 : index
    %122 = vector.load %arg6[%c0_102, %c0_103] : memref<32x64xf32, #tpu.memory_space<vmem>>, vector<32x64xf32>
    %cst_104 = arith.constant dense<0.000000e+00> : vector<32x64xf32>
    %123 = tpu.matmul %122, %121, %cst_104 {dimension_numbers = #tpu.dot_dimension_numbers<[1], [0], [0], [1], [0, 0, 1, 1], [], []>} : vector<32x64xf32>, vector<64x64xf32>, vector<32x64xf32> -> vector<32x64xf32>
    %cst_105 = arith.constant 0.000000e+00 : f32
    %124 = vector.broadcast %cst_105 : f32 to vector<32x64xf32>
    %125 = arith.maximumf %123, %124 : vector<32x64xf32>
    %cst_106 = arith.constant 0.000000e+00 : f32
    %126 = vector.broadcast %cst_106 : f32 to vector<8x120xf32>
    %c0_107 = arith.constant 0 : index
    %c0_108 = arith.constant 0 : index
    %127 = vector.load %arg8[%c0_107, %c0_108] : memref<1x120xf32, #tpu.memory_space<vmem>>, vector<1x120xf32>
    %128 = vector.broadcast %127 : vector<1x120xf32> to vector<8x120xf32>
    %129 = arith.addf %126, %128 : vector<8x120xf32>
    %130 = vector.extract_strided_slice %125 {offsets = [0, 0], sizes = [8, 64], strides = [1, 1]} : vector<32x64xf32> to vector<8x64xf32>
    %c0_109 = arith.constant 0 : index
    %c0_110 = arith.constant 0 : index
    %c0_111 = arith.constant 0 : index
    %131 = vector.load %arg7[%c0_109, %c0_110, %c0_111] : memref<4x64x120xf32, #tpu.memory_space<vmem>>, vector<1x64x120xf32>
    %132 = vector.shape_cast %131 : vector<1x64x120xf32> to vector<64x120xf32>
    %cst_112 = arith.constant dense<0.000000e+00> : vector<8x120xf32>
    %133 = tpu.matmul %130, %132, %cst_112 {dimension_numbers = #tpu.dot_dimension_numbers<[1], [0], [0], [1], [0, 0, 1, 1], [], []>} : vector<8x64xf32>, vector<64x120xf32>, vector<8x120xf32> -> vector<8x120xf32>
    %134 = arith.addf %129, %133 : vector<8x120xf32>
    %135 = vector.extract_strided_slice %125 {offsets = [8, 0], sizes = [8, 64], strides = [1, 1]} : vector<32x64xf32> to vector<8x64xf32>
    %c1_113 = arith.constant 1 : index
    %c0_114 = arith.constant 0 : index
    %c0_115 = arith.constant 0 : index
    %136 = vector.load %arg7[%c1_113, %c0_114, %c0_115] : memref<4x64x120xf32, #tpu.memory_space<vmem>>, vector<1x64x120xf32>
    %137 = vector.shape_cast %136 : vector<1x64x120xf32> to vector<64x120xf32>
    %cst_116 = arith.constant dense<0.000000e+00> : vector<8x120xf32>
    %138 = tpu.matmul %135, %137, %cst_116 {dimension_numbers = #tpu.dot_dimension_numbers<[1], [0], [0], [1], [0, 0, 1, 1], [], []>} : vector<8x64xf32>, vector<64x120xf32>, vector<8x120xf32> -> vector<8x120xf32>
    %139 = arith.addf %134, %138 : vector<8x120xf32>
    %140 = vector.extract_strided_slice %125 {offsets = [16, 0], sizes = [8, 64], strides = [1, 1]} : vector<32x64xf32> to vector<8x64xf32>
    %c2_117 = arith.constant 2 : index
    %c0_118 = arith.constant 0 : index
    %c0_119 = arith.constant 0 : index
    %141 = vector.load %arg7[%c2_117, %c0_118, %c0_119] : memref<4x64x120xf32, #tpu.memory_space<vmem>>, vector<1x64x120xf32>
    %142 = vector.shape_cast %141 : vector<1x64x120xf32> to vector<64x120xf32>
    %cst_120 = arith.constant dense<0.000000e+00> : vector<8x120xf32>
    %143 = tpu.matmul %140, %142, %cst_120 {dimension_numbers = #tpu.dot_dimension_numbers<[1], [0], [0], [1], [0, 0, 1, 1], [], []>} : vector<8x64xf32>, vector<64x120xf32>, vector<8x120xf32> -> vector<8x120xf32>
    %144 = arith.addf %139, %143 : vector<8x120xf32>
    %145 = vector.extract_strided_slice %125 {offsets = [24, 0], sizes = [8, 64], strides = [1, 1]} : vector<32x64xf32> to vector<8x64xf32>
    %c3_121 = arith.constant 3 : index
    %c0_122 = arith.constant 0 : index
    %c0_123 = arith.constant 0 : index
    %146 = vector.load %arg7[%c3_121, %c0_122, %c0_123] : memref<4x64x120xf32, #tpu.memory_space<vmem>>, vector<1x64x120xf32>
    %147 = vector.shape_cast %146 : vector<1x64x120xf32> to vector<64x120xf32>
    %cst_124 = arith.constant dense<0.000000e+00> : vector<8x120xf32>
    %148 = tpu.matmul %145, %147, %cst_124 {dimension_numbers = #tpu.dot_dimension_numbers<[1], [0], [0], [1], [0, 0, 1, 1], [], []>} : vector<8x64xf32>, vector<64x120xf32>, vector<8x120xf32> -> vector<8x120xf32>
    %149 = arith.addf %144, %148 : vector<8x120xf32>
    %cst_125 = arith.constant 0.000000e+00 : f32
    %150 = vector.broadcast %cst_125 : f32 to vector<8x120xf32>
    %151 = arith.maximumf %149, %150 : vector<8x120xf32>
    %c0_126 = arith.constant 0 : index
    %c0_127 = arith.constant 0 : index
    %152 = vector.load %arg9[%c0_126, %c0_127] : memref<120x84xf32, #tpu.memory_space<vmem>>, vector<120x84xf32>
    %cst_128 = arith.constant dense<0.000000e+00> : vector<8x84xf32>
    %153 = tpu.matmul %151, %152, %cst_128 {dimension_numbers = #tpu.dot_dimension_numbers<[1], [0], [0], [1], [0, 0, 1, 1], [], []>} : vector<8x120xf32>, vector<120x84xf32>, vector<8x84xf32> -> vector<8x84xf32>
    %c0_129 = arith.constant 0 : index
    %c0_130 = arith.constant 0 : index
    %154 = vector.load %arg10[%c0_129, %c0_130] : memref<1x84xf32, #tpu.memory_space<vmem>>, vector<1x84xf32>
    %155 = vector.broadcast %154 : vector<1x84xf32> to vector<8x84xf32>
    %156 = arith.addf %153, %155 : vector<8x84xf32>
    %cst_131 = arith.constant 0.000000e+00 : f32
    %157 = vector.broadcast %cst_131 : f32 to vector<8x84xf32>
    %158 = arith.maximumf %156, %157 : vector<8x84xf32>
    %c0_132 = arith.constant 0 : index
    %c0_133 = arith.constant 0 : index
    %159 = vector.load %arg11[%c0_132, %c0_133] : memref<84x10xf32, #tpu.memory_space<vmem>>, vector<84x10xf32>
    %cst_134 = arith.constant dense<0.000000e+00> : vector<8x10xf32>
    %160 = tpu.matmul %158, %159, %cst_134 {dimension_numbers = #tpu.dot_dimension_numbers<[1], [0], [0], [1], [0, 0, 1, 1], [], []>} : vector<8x84xf32>, vector<84x10xf32>, vector<8x10xf32> -> vector<8x10xf32>
    %c0_135 = arith.constant 0 : index
    %c0_136 = arith.constant 0 : index
    %161 = vector.load %arg12[%c0_135, %c0_136] : memref<1x10xf32, #tpu.memory_space<vmem>>, vector<1x10xf32>
    %162 = vector.broadcast %161 : vector<1x10xf32> to vector<8x10xf32>
    %163 = arith.addf %160, %162 : vector<8x10xf32>
    %c0_137 = arith.constant 0 : index
    %c0_138 = arith.constant 0 : index
    %164 = vector.load %arg13[%c0_137, %c0_138] : memref<8x10xf32, #tpu.memory_space<vmem>>, vector<8x10xf32>
    tpu.vector_store %arg13[%c0_137, %c0_138], %163 {strides = array<i32>} : memref<8x10xf32, #tpu.memory_space<vmem>>, vector<8x10xf32>,
    return
  }
  func.func @transform_0(%arg0: i32) -> (i32, i32, i32, i32) {
    %c0_i32 = arith.constant 0 : i32
    %c0_i32_0 = arith.constant 0 : i32
    %c0_i32_1 = arith.constant 0 : i32
    %c0_i32_2 = arith.constant 0 : i32
    return %arg0, %c0_i32, %c0_i32_0, %c0_i32_1 : i32, i32, i32, i32
  }
  func.func @transform_1(%arg0: i32) -> (i32, i32, i32) {
    %c0_i32 = arith.constant 0 : i32
    %c0_i32_0 = arith.constant 0 : i32
    %c0_i32_1 = arith.constant 0 : i32
    %c0_i32_2 = arith.constant 0 : i32
    return %c0_i32, %c0_i32_0, %c0_i32_1 : i32, i32, i32
  }
  func.func @transform_2(%arg0: i32) -> (i32, i32) {
    %c0_i32 = arith.constant 0 : i32
    %c0_i32_0 = arith.constant 0 : i32
    %c0_i32_1 = arith.constant 0 : i32
    return %c0_i32, %c0_i32_0 : i32, i32
  }
  func.func @transform_3(%arg0: i32) -> (i32, i32, i32) {
    %c0_i32 = arith.constant 0 : i32
    %c0_i32_0 = arith.constant 0 : i32
    %c0_i32_1 = arith.constant 0 : i32
    %c0_i32_2 = arith.constant 0 : i32
    return %c0_i32, %c0_i32_0, %c0_i32_1 : i32, i32, i32
  }
  func.func @transform_4(%arg0: i32) -> (i32, i32) {
    %c0_i32 = arith.constant 0 : i32
    %c0_i32_0 = arith.constant 0 : i32
    %c0_i32_1 = arith.constant 0 : i32
    return %c0_i32, %c0_i32_0 : i32, i32
  }
  func.func @transform_5(%arg0: i32) -> (i32, i32) {
    %c0_i32 = arith.constant 0 : i32
    %c0_i32_0 = arith.constant 0 : i32
    %c0_i32_1 = arith.constant 0 : i32
    return %c0_i32, %c0_i32_0 : i32, i32
  }
  func.func @transform_6(%arg0: i32) -> (i32, i32, i32) {
    %c0_i32 = arith.constant 0 : i32
    %c0_i32_0 = arith.constant 0 : i32
    %c0_i32_1 = arith.constant 0 : i32
    %c0_i32_2 = arith.constant 0 : i32
    return %c0_i32, %c0_i32_0, %c0_i32_1 : i32, i32, i32
  }
  func.func @transform_7(%arg0: i32) -> (i32, i32) {
    %c0_i32 = arith.constant 0 : i32
    %c0_i32_0 = arith.constant 0 : i32
    %c0_i32_1 = arith.constant 0 : i32
    return %c0_i32, %c0_i32_0 : i32, i32
  }
  func.func @transform_8(%arg0: i32) -> (i32, i32) {
    %c0_i32 = arith.constant 0 : i32
    %c0_i32_0 = arith.constant 0 : i32
    %c0_i32_1 = arith.constant 0 : i32
    return %c0_i32, %c0_i32_0 : i32, i32
  }
  func.func @transform_9(%arg0: i32) -> (i32, i32) {
    %c0_i32 = arith.constant 0 : i32
    %c0_i32_0 = arith.constant 0 : i32
    %c0_i32_1 = arith.constant 0 : i32
    return %c0_i32, %c0_i32_0 : i32, i32
  }
  func.func @transform_10(%arg0: i32) -> (i32, i32) {
    %c0_i32 = arith.constant 0 : i32
    %c0_i32_0 = arith.constant 0 : i32
    %c0_i32_1 = arith.constant 0 : i32
    return %c0_i32, %c0_i32_0 : i32, i32
  }
  func.func @transform_11(%arg0: i32) -> (i32, i32) {
    %c0_i32 = arith.constant 0 : i32
    %c0_i32_0 = arith.constant 0 : i32
    %c0_i32_1 = arith.constant 0 : i32
    return %c0_i32, %c0_i32_0 : i32, i32
  }
  func.func @transform_12(%arg0: i32) -> (i32, i32) {
    %c0_i32 = arith.constant 0 : i32
    %c0_i32_0 = arith.constant 0 : i32
    return %arg0, %c0_i32 : i32, i32
  }
}

</mosaic_0001>

<llo_original>
// kernel: lenet_forward.1
$region0: #{lenet_forward.1}
  #allocation0 [shape = 'u32[]', space=smem, size = 0x4, offset = 0x4, fixed_abs, tag = 'smem constant byte address 0x4 - core index']
  #allocation1 [shape = 'u32[144,128]{1,0:T(1,128)}', space=vmem, size = 0x12000, scoped, tag = 'internal scratch']
  %s0 = inlined_call_operand.vmem [shape: f32[8,2,18,28], index: 0, kind: input, shape index: {}]
  %s1 = inlined_call_operand.vmem [shape: f32[5,28,144], index: 1, kind: input, shape index: {}]
  %s2 = inlined_call_operand.vmem [shape: f32[1,144], index: 2, kind: input, shape index: {}]
  %s3 = inlined_call_operand.vmem [shape: f32[5,72,128], index: 3, kind: input, shape index: {}]
  %s4 = inlined_call_operand.vmem [shape: f32[1,128], index: 4, kind: input, shape index: {}]
  %s5 = inlined_call_operand.vmem [shape: f32[32,64], index: 5, kind: input, shape index: {}]
  %s6 = inlined_call_operand.vmem [shape: f32[4,64,120], index: 6, kind: input, shape index: {}]
  %s7 = inlined_call_operand.vmem [shape: f32[1,120], index: 7, kind: input, shape index: {}]
  %s8 = inlined_call_operand.vmem [shape: f32[120,84], index: 8, kind: input, shape index: {}]
  %s9 = inlined_call_operand.vmem [shape: f32[1,84], index: 9, kind: input, shape index: {}]
  %s10 = inlined_call_operand.vmem [shape: f32[84,10], index: 10, kind: input, shape index: {}]
  %s11 = inlined_call_operand.vmem [shape: f32[1,10], index: 11, kind: input, shape index: {}]
  %s12 = inlined_call_operand.vmem [shape: f32[8,10], index: 12, kind: output, shape index: {}]
  %s13 = sld [smem:[#allocation0]]
  $region58: #{lenet_forward.1} parent=0
    _
  %s15 = ssub.s32 1, %s13
  %s16 = scalar_select 0, %s15, %s13
  // Predicated region
  $region2: #{lenet_forward.1} parent=0 // pred_check
    _
  $region3: #{lenet_forward.1} parent=0 // pred_check_branch
    %18 = sbr.rel (0) target = $region5
  $region4: #{lenet_forward.1} parent=0 // pred_region
    _
  $region5: #{lenet_forward.1} parent=0 // pred_fallthru
    _
  // Predicated region
  $region6: #{lenet_forward.1} parent=0 // pred_check
    _
  $region7: #{lenet_forward.1} parent=0 // pred_check_branch
    %20 = sbr.rel (0) target = $region9
  $region8: #{lenet_forward.1} parent=0 // pred_region
    _
  $region9: #{lenet_forward.1} parent=0 // pred_fallthru
    _
  // Predicated region
  $region10: #{lenet_forward.1} parent=0 // pred_check
    _
  $region11: #{lenet_forward.1} parent=0 // pred_check_branch
    %22 = sbr.rel (0) target = $region13
  $region12: #{lenet_forward.1} parent=0 // pred_region
    _
  $region13: #{lenet_forward.1} parent=0 // pred_fallthru
    _
  // Predicated region
  $region14: #{lenet_forward.1} parent=0 // pred_check
    _
  $region15: #{lenet_forward.1} parent=0 // pred_check_branch
    %24 = sbr.rel (0) target = $region17
  $region16: #{lenet_forward.1} parent=0 // pred_region
    _
  $region17: #{lenet_forward.1} parent=0 // pred_fallthru
    _
  // Predicated region
  $region18: #{lenet_forward.1} parent=0 // pred_check
    _
  $region19: #{lenet_forward.1} parent=0 // pred_check_branch
    %26 = sbr.rel (0) target = $region21
  $region20: #{lenet_forward.1} parent=0 // pred_region
    _
  $region21: #{lenet_forward.1} parent=0 // pred_fallthru
    _
  // Predicated region
  $region22: #{lenet_forward.1} parent=0 // pred_check
    _
  $region23: #{lenet_forward.1} parent=0 // pred_check_branch
    %28 = sbr.rel (0) target = $region25
  $region24: #{lenet_forward.1} parent=0 // pred_region
    _
  $region25: #{lenet_forward.1} parent=0 // pred_fallthru
    _
  // Predicated region
  $region26: #{lenet_forward.1} parent=0 // pred_check
    _
  $region27: #{lenet_forward.1} parent=0 // pred_check_branch
    %30 = sbr.rel (0) target = $region29
  $region28: #{lenet_forward.1} parent=0 // pred_region
    _
  $region29: #{lenet_forward.1} parent=0 // pred_fallthru
    _
  // Predicated region
  $region30: #{lenet_forward.1} parent=0 // pred_check
    _
  $region31: #{lenet_forward.1} parent=0 // pred_check_branch
    %32 = sbr.rel (0) target = $region33
  $region32: #{lenet_forward.1} parent=0 // pred_region
    _
  $region33: #{lenet_forward.1} parent=0 // pred_fallthru
    _
  // Predicated region
  $region34: #{lenet_forward.1} parent=0 // pred_check
    _
  $region35: #{lenet_forward.1} parent=0 // pred_check_branch
    %34 = sbr.rel (0) target = $region37
  $region36: #{lenet_forward.1} parent=0 // pred_region
    _
  $region37: #{lenet_forward.1} parent=0 // pred_fallthru
    _
  // Predicated region
  $region38: #{lenet_forward.1} parent=0 // pred_check
    _
  $region39: #{lenet_forward.1} parent=0 // pred_check_branch
    %36 = sbr.rel (0) target = $region41
  $region40: #{lenet_forward.1} parent=0 // pred_region
    _
  $region41: #{lenet_forward.1} parent=0 // pred_fallthru
    _
  // Predicated region
  $region42: #{lenet_forward.1} parent=0 // pred_check
    _
  $region43: #{lenet_forward.1} parent=0 // pred_check_branch
    %38 = sbr.rel (0) target = $region45
  $region44: #{lenet_forward.1} parent=0 // pred_region
    _
  $region45: #{lenet_forward.1} parent=0 // pred_fallthru
    _
  // Predicated region
  $region46: #{lenet_forward.1} parent=0 // pred_check
    _
  $region47: #{lenet_forward.1} parent=0 // pred_check_branch
    %40 = sbr.rel (0) target = $region49
  $region48: #{lenet_forward.1} parent=0 // pred_region
    _
  $region49: #{lenet_forward.1} parent=0 // pred_fallthru
    _
  %v41 = vld [vmem:[%s2] sm:$0x3]
  %v43 = vlaneseq
  %v44 = vshrl.u32 %v43, 7
  %v45 = vsub.s32 0, %v44
  %v46 = vrot.slane %v41, %v45
  %v47 = vlaneseq
  %v48 = vshrl.u32 %v47, 7
  %v49 = vsub.s32 1, %v48
  %v50 = vrot.slane %v41, %v49
  %v53 = vadd.f32 %v46, 0.0
  %v54 = vadd.f32 %v50, 0.0
  %v55 = vld [vmem:[%s0] sm:$0xff]
  %v56 = vld [vmem:[%s0 + $0x8] sm:$0xff]
  %v57 = vld [vmem:[%s0 + $0x30] sm:$0xff]
  %v58 = vld [vmem:[%s0 + $0x38] sm:$0xff]
  %v59 = vld [vmem:[%s0 + $0x60] sm:$0xff]
  %v60 = vld [vmem:[%s0 + $0x68] sm:$0xff]
  %v61 = vld [vmem:[%s0 + $0x90] sm:$0xff]
  %v62 = vld [vmem:[%s0 + $0x98] sm:$0xff]
  %v63 = vld [vmem:[%s0 + $0xc0] sm:$0xff]
  %v64 = vld [vmem:[%s0 + $0xc8] sm:$0xff]
  %v65 = vld [vmem:[%s0 + $0xf0] sm:$0xff]
  %v66 = vld [vmem:[%s0 + $0xf8] sm:$0xff]
  %v67 = vld [vmem:[%s0 + $0x120] sm:$0xff]
  %v68 = vld [vmem:[%s0 + $0x128] sm:$0xff]
  %v69 = vld [vmem:[%s0 + $0x150] sm:$0xff]
  %v70 = vld [vmem:[%s0 + $0x158] sm:$0xff]
  %v71 = vld [vmem:[%s1] sm:$0xff]
  %v72 = vld [vmem:[%s1 + $0x8] sm:$0xff]
  %v73 = vld [vmem:[%s1 + $0x10] sm:$0xff]
  %v74 = vld [vmem:[%s1 + $0x18] sm:$0xff]
  %v75 = vld [vmem:[%s1 + $0x20] sm:$0xff]
  %v76 = vld [vmem:[%s1 + $0x28] sm:$0xff]
  %v77 = vld [vmem:[%s1 + $0x30] sm:$0xf]
  %v78 = vld [vmem:[%s1 + $0x38] sm:$0xf]
  %vm79 = vcmask 228352
  %v81 = vsel %vm79, %v55, 0
  %v84 = vsel %vm79, %v56, 0
  %v87 = vsel %vm79, %v57, 0
  %v90 = vsel %vm79, %v58, 0
  %v93 = vsel %vm79, %v59, 0
  %v96 = vsel %vm79, %v60, 0
  %v99 = vsel %vm79, %v61, 0
  %v102 = vsel %vm79, %v62, 0
  %v105 = vsel %vm79, %v63, 0
  %v108 = vsel %vm79, %v64, 0
  %v111 = vsel %vm79, %v65, 0
  %v114 = vsel %vm79, %v66, 0
  %v117 = vsel %vm79, %v67, 0
  %v120 = vsel %vm79, %v68, 0
  %v123 = vsel %vm79, %v69, 0
  %v126 = vsel %vm79, %v70, 0
  %vm128 = vcmask 1043456
  %v130 = vsel %vm128, %v77, 0
  %v133 = vsel %vm128, %v78, 0
  %135 = vmatprep.subr.mxu0 %v72
  %136 = vmatpush1.msra.mxu0 %v71
  %137 = vmatprep.subr.mxu0 %v74
  %138 = vmatpush1.msra.mxu0 %v73
  %139 = vmatprep.subr.mxu0 %v76
  %140 = vmatpush1.msra.mxu0 %v75
  %141 = vmatprep.subr.mxu0 %v133
  %142 = vmatpush1.msra.mxu0 %v130
  %143 = vmatprep.subr.mxu0 0.0
  %144 = vmatpush1.msra.mxu0 0.0
  %145 = vmatprep.subr.mxu0 0.0
  %146 = vmatpush1.msra.mxu0 0.0
  %147 = vmatprep.subr.mxu0 0.0
  %148 = vmatpush1.msra.mxu0 0.0
  %149 = vmatprep.subr.mxu0 0.0
  %150 = vmatpush1.msra.mxu0 0.0
  %151 = vmatprep.subr.mxu0 0.0
  %152 = vmatpush1.msra.mxu0 0.0
  %153 = vmatprep.subr.mxu0 0.0
  %154 = vmatpush1.msra.mxu0 0.0
  %155 = vmatprep.subr.mxu0 0.0
  %156 = vmatpush1.msra.mxu0 0.0
  %157 = vmatprep.subr.mxu0 0.0
  %158 = vmatpush1.msra.mxu0 0.0
  %159 = vmatprep.subr.mxu0 0.0
  %160 = vmatpush1.msra.mxu0 0.0
  %161 = vmatprep.subr.mxu0 0.0
  %162 = vmatpush1.msra.mxu0 0.0
  %163 = vmatprep.subr.mxu0 0.0
  %164 = vmatpush1.msra.mxu0 0.0
  %165 = vmatprep.subr.mxu0 0.0
  %166 = vmatpush1.msra.mxu0 0.0
  %167 = vmatprep.subr.mxu0 0.0
  %168 = vmatpush1.msra.mxu0 0.0
  %169 = vmatprep.subr.mxu0 0.0
  %170 = vmatpush1.msra.mxu0 0.0
  %171 = vmatprep.subr.mxu0 0.0
  %172 = vmatpush1.msra.mxu0 0.0
  %173 = vmatprep.subr.mxu0 0.0
  %174 = vmatpush1.msra.mxu0 0.0
  %175 = vmatprep.subr.mxu0 0.0
  %176 = vmatpush1.msra.mxu0 0.0
  %177 = vmatprep.subr.mxu0 0.0
  %178 = vmatpush1.msra.mxu0 0.0
  %179 = vmatprep.subr.mxu0 0.0
  %180 = vmatpush1.msra.mxu0 0.0
  %181 = vmatprep.subr.mxu0 0.0
  %182 = vmatpush1.msra.mxu0 0.0
  %183 = vmatprep.subr.mxu0 0.0
  %184 = vmatpush1.msra.mxu0 0.0
  %185 = vmatprep.subr.mxu0 0.0
  %186 = vmatpush1.msra.mxu0 0.0
  %187 = vmatprep.subr.mxu0 0.0
  %188 = vmatpush1.msra.mxu0 0.0
  %189 = vmatprep.subr.mxu0 0.0
  %190 = vmatpush1.msra.mxu0 0.0
  %191 = vmatprep.subr.mxu0 0.0
  %192 = vmatpush1.msra.mxu0 0.0
  %193 = vmatprep.subr.mxu0 0.0
  %194 = vmatpush1.msra.mxu0 0.0
  %195 = vmatprep.subr.mxu0 0.0
  %196 = vmatpush1.msra.mxu0 0.0
  %197 = vmatprep.subr.mxu0 0.0
  %198 = vmatpush1.msra.mxu0 0.0
  %199 = vmatprep.mubr.f32.mxu0 0.0
  %200 = vmatmul.mubr.f32.gmra.mrb[0].mxu0 %v81
  %v201 = vpop.f32.mrb[0].mxu0
  %v202 = vadd.f32 0.0, %v201
  %v203 = vpop.f32.mrb[0].mxu0
  %v204 = vadd.f32 0.0, %v203
  %205 = vmatprep.mubr.f32.mxu0 0.0
  %206 = vmatmul.mubr.f32.gmra.mrb[0].mxu0 %v84
  %v207 = vpop.f32.mrb[0].mxu0
  %v208 = vadd.f32 0.0, %v207
  %v209 = vpop.f32.mrb[0].mxu0
  %v210 = vadd.f32 0.0, %v209
  %211 = vmatprep.mubr.f32.mxu0 0.0
  %212 = vmatmul.mubr.f32.gmra.mrb[0].mxu0 %v87
  %v213 = vpop.f32.mrb[0].mxu0
  %v214 = vadd.f32 0.0, %v213
  %v215 = vpop.f32.mrb[0].mxu0
  %v216 = vadd.f32 0.0, %v215
  %217 = vmatprep.mubr.f32.mxu0 0.0
  %218 = vmatmul.mubr.f32.gmra.mrb[0].mxu0 %v90
  %v219 = vpop.f32.mrb[0].mxu0
  %v220 = vadd.f32 0.0, %v219
  %v221 = vpop.f32.mrb[0].mxu0
  %v222 = vadd.f32 0.0, %v221
  %223 = vmatprep.mubr.f32.mxu0 0.0
  %224 = vmatmul.mubr.f32.gmra.mrb[0].mxu0 %v93
  %v225 = vpop.f32.mrb[0].mxu0
  %v226 = vadd.f32 0.0, %v225
  %v227 = vpop.f32.mrb[0].mxu0
  %v228 = vadd.f32 0.0, %v227
  %229 = vmatprep.mubr.f32.mxu0 0.0
  %230 = vmatmul.mubr.f32.gmra.mrb[0].mxu0 %v96
  %v231 = vpop.f32.mrb[0].mxu0
  %v232 = vadd.f32 0.0, %v231
  %v233 = vpop.f32.mrb[0].mxu0
  %v234 = vadd.f32 0.0, %v233
  %235 = vmatprep.mubr.f32.mxu0 0.0
  %236 = vmatmul.mubr.f32.gmra.mrb[0].mxu0 %v99
  %v237 = vpop.f32.mrb[0].mxu0
  %v238 = vadd.f32 0.0, %v237
  %v239 = vpop.f32.mrb[0].mxu0
  %v240 = vadd.f32 0.0, %v239
  %241 = vmatprep.mubr.f32.mxu0 0.0
  %242 = vmatmul.mubr.f32.gmra.mrb[0].mxu0 %v102
  %v243 = vpop.f32.mrb[0].mxu0
  %v244 = vadd.f32 0.0, %v243
  %v245 = vpop.f32.mrb[0].mxu0
  %v246 = vadd.f32 0.0, %v245
  %247 = vmatprep.mubr.f32.mxu0 0.0
  %248 = vmatmul.mubr.f32.gmra.mrb[0].mxu0 %v105
  %v249 = vpop.f32.mrb[0].mxu0
  %v250 = vadd.f32 0.0, %v249
  %v251 = vpop.f32.mrb[0].mxu0
  %v252 = vadd.f32 0.0, %v251
  %253 = vmatprep.mubr.f32.mxu0 0.0
  %254 = vmatmul.mubr.f32.gmra.mrb[0].mxu0 %v108
  %v255 = vpop.f32.mrb[0].mxu0
  %v256 = vadd.f32 0.0, %v255
  %v257 = vpop.f32.mrb[0].mxu0
  %v258 = vadd.f32 0.0, %v257
  %259 = vmatprep.mubr.f32.mxu0 0.0
  %260 = vmatmul.mubr.f32.gmra.mrb[0].mxu0 %v111
  %v261 = vpop.f32.mrb[0].mxu0
  %v262 = vadd.f32 0.0, %v261
  %v263 = vpop.f32.mrb[0].mxu0
  %v264 = vadd.f32 0.0, %v263
  %265 = vmatprep.mubr.f32.mxu0 0.0
  %266 = vmatmul.mubr.f32.gmra.mrb[0].mxu0 %v114
  %v267 = vpop.f32.mrb[0].mxu0
  %v268 = vadd.f32 0.0, %v267
  %v269 = vpop.f32.mrb[0].mxu0
  %v270 = vadd.f32 0.0, %v269
  %271 = vmatprep.mubr.f32.mxu0 0.0
  %272 = vmatmul.mubr.f32.gmra.mrb[0].mxu0 %v117
  %v273 = vpop.f32.mrb[0].mxu0
  %v274 = vadd.f32 0.0, %v273
  %v275 = vpop.f32.mrb[0].mxu0
  %v276 = vadd.f32 0.0, %v275
  %277 = vmatprep.mubr.f32.mxu0 0.0
  %278 = vmatmul.mubr.f32.gmra.mrb[0].mxu0 %v120
  %v279 = vpop.f32.mrb[0].mxu0
  %v280 = vadd.f32 0.0, %v279
  %v281 = vpop.f32.mrb[0].mxu0
  %v282 = vadd.f32 0.0, %v281
  %283 = vmatprep.mubr.f32.mxu0 0.0
  %284 = vmatmul.mubr.f32.gmra.mrb[0].mxu0 %v123
  %v285 = vpop.f32.mrb[0].mxu0
  %v286 = vadd.f32 0.0, %v285
  %v287 = vpop.f32.mrb[0].mxu0
  %v288 = vadd.f32 0.0, %v287
  %289 = vmatprep.mubr.f32.mxu0 0.0
  %290 = vmatmul.mubr.f32.gmra.mrb[0].mxu0 %v126
  %v291 = vpop.f32.mrb[0].mxu0
  %v292 = vadd.f32 0.0, %v291
  %v293 = vpop.f32.mrb[0].mxu0
  %v294 = vadd.f32 0.0, %v293
  %295 = vdwg.mxu0
  %v296 = vadd.f32 %v53, %v202
  %v297 = vadd.f32 %v54, %v204
  %v298 = vadd.f32 %v53, %v208
  %v299 = vadd.f32 %v54, %v210
  %v300 = vadd.f32 %v53, %v214
  %v301 = vadd.f32 %v54, %v216
  %v302 = vadd.f32 %v53, %v220
  %v303 = vadd.f32 %v54, %v222
  %v304 = vadd.f32 %v53, %v226
  %v305 = vadd.f32 %v54, %v228
  %v306 = vadd.f32 %v53, %v232
  %v307 = vadd.f32 %v54, %v234
  %v308 = vadd.f32 %v53, %v238
  %v309 = vadd.f32 %v54, %v240
  %v310 = vadd.f32 %v53, %v244
  %v311 = vadd.f32 %v54, %v246
  %v312 = vadd.f32 %v53, %v250
  %v313 = vadd.f32 %v54, %v252
  %v314 = vadd.f32 %v53, %v256
  %v315 = vadd.f32 %v54, %v258
  %v316 = vadd.f32 %v53, %v262
  %v317 = vadd.f32 %v54, %v264
  %v318 = vadd.f32 %v53, %v268
  %v319 = vadd.f32 %v54, %v270
  %v320 = vadd.f32 %v53, %v274
  %v321 = vadd.f32 %v54, %v276
  %v322 = vadd.f32 %v53, %v280
  %v323 = vadd.f32 %v54, %v282
  %v324 = vadd.f32 %v53, %v286
  %v325 = vadd.f32 %v54, %v288
  %v326 = vadd.f32 %v53, %v292
  %v327 = vadd.f32 %v54, %v294
  %s328 = scalar_lea.vmem %s0, 24
  %v329 = vld [vmem:[%s328] sm:$0xff]
  %v330 = vld [vmem:[%s328 + $0x8] sm:$0xff]
  %v331 = vld [vmem:[%s328 + $0x30] sm:$0xff]
  %v332 = vld [vmem:[%s328 + $0x38] sm:$0xff]
  %v333 = vld [vmem:[%s328 + $0x60] sm:$0xff]
  %v334 = vld [vmem:[%s328 + $0x68] sm:$0xff]
  %v335 = vld [vmem:[%s328 + $0x90] sm:$0xff]
  %v336 = vld [vmem:[%s328 + $0x98] sm:$0xff]
  %v337 = vld [vmem:[%s328 + $0xc0] sm:$0xff]
  %v338 = vld [vmem:[%s328 + $0xc8] sm:$0xff]
  %v339 = vld [vmem:[%s328 + $0xf0] sm:$0xff]
  %v340 = vld [vmem:[%s328 + $0xf8] sm:$0xff]
  %v341 = vld [vmem:[%s328 + $0x120] sm:$0xff]
  %v342 = vld [vmem:[%s328 + $0x128] sm:$0xff]
  %v343 = vld [vmem:[%s328 + $0x150] sm:$0xff]
  %v344 = vld [vmem:[%s328 + $0x158] sm:$0xff]
  %s345 = scalar_lea.vmem %s1, 64
  %v346 = vld [vmem:[%s345] sm:$0xff]
  %v347 = vld [vmem:[%s345 + $0x8] sm:$0xff]
  %v348 = vld [vmem:[%s345 + $0x10] sm:$0xff]
  %v349 = vld [vmem:[%s345 + $0x18] sm:$0xff]
  %v350 = vld [vmem:[%s345 + $0x20] sm:$0xff]
  %v351 = vld [vmem:[%s345 + $0x28] sm:$0xff]
  %v352 = vld [vmem:[%s345 + $0x30] sm:$0xf]
  %v353 = vld [vmem:[%s345 + $0x38] sm:$0xf]
  %v355 = vsel %vm79, %v329, 0
  %v358 = vsel %vm79, %v330, 0
  %v361 = vsel %vm79, %v331, 0
  %v364 = vsel %vm79, %v332, 0
  %v367 = vsel %vm79, %v333, 0
  %v370 = vsel %vm79, %v334, 0
  %v373 = vsel %vm79, %v335, 0
  %v376 = vsel %vm79, %v336, 0
  %v379 = vsel %vm79, %v337, 0
  %v382 = vsel %vm79, %v338, 0
  %v385 = vsel %vm79, %v339, 0
  %v388 = vsel %vm79, %v340, 0
  %v391 = vsel %vm79, %v341, 0
  %v394 = vsel %vm79, %v342, 0
  %v397 = vsel %vm79, %v343, 0
  %v400 = vsel %vm79, %v344, 0
  %v403 = vsel %vm128, %v352, 0
  %v406 = vsel %vm128, %v353, 0
  %408 = vmatprep.subr.mxu0 %v347
  %409 = vmatpush1.msra.mxu0 %v346
  %410 = vmatprep.subr.mxu0 %v349
  %411 = vmatpush1.msra.mxu0 %v348
  %412 = vmatprep.subr.mxu0 %v351
  %413 = vmatpush1.msra.mxu0 %v350
  %414 = vmatprep.subr.mxu0 %v406
  %415 = vmatpush1.msra.mxu0 %v403
  %416 = vmatprep.subr.mxu0 0.0
  %417 = vmatpush1.msra.mxu0 0.0
  %418 = vmatprep.subr.mxu0 0.0
  %419 = vmatpush1.msra.mxu0 0.0
  %420 = vmatprep.subr.mxu0 0.0
  %421 = vmatpush1.msra.mxu0 0.0
  %422 = vmatprep.subr.mxu0 0.0
  %423 = vmatpush1.msra.mxu0 0.0
  %424 = vmatprep.subr.mxu0 0.0
  %425 = vmatpush1.msra.mxu0 0.0
  %426 = vmatprep.subr.mxu0 0.0
  %427 = vmatpush1.msra.mxu0 0.0
  %428 = vmatprep.subr.mxu0 0.0
  %429 = vmatpush1.msra.mxu0 0.0
  %430 = vmatprep.subr.mxu0 0.0
  %431 = vmatpush1.msra.mxu0 0.0
  %432 = vmatprep.subr.mxu0 0.0
  %433 = vmatpush1.msra.mxu0 0.0
  %434 = vmatprep.subr.mxu0 0.0
  %435 = vmatpush1.msra.mxu0 0.0
  %436 = vmatprep.subr.mxu0 0.0
  %437 = vmatpush1.msra.mxu0 0.0
  %438 = vmatprep.subr.mxu0 0.0
  %439 = vmatpush1.msra.mxu0 0.0
  %440 = vmatprep.subr.mxu0 0.0
  %441 = vmatpush1.msra.mxu0 0.0
  %442 = vmatprep.subr.mxu0 0.0
  %443 = vmatpush1.msra.mxu0 0.0
  %444 = vmatprep.subr.mxu0 0.0
  %445 = vmatpush1.msra.mxu0 0.0
  %446 = vmatprep.subr.mxu0 0.0
  %447 = vmatpush1.msra.mxu0 0.0
  %448 = vmatprep.subr.mxu0 0.0
  %449 = vmatpush1.msra.mxu0 0.0
  %450 = vmatprep.subr.mxu0 0.0
  %451 = vmatpush1.msra.mxu0 0.0
  %452 = vmatprep.subr.mxu0 0.0
  %453 = vmatpush1.msra.mxu0 0.0
  %454 = vmatprep.subr.mxu0 0.0
  %455 = vmatpush1.msra.mxu0 0.0
  %456 = vmatprep.subr.mxu0 0.0
  %457 = vmatpush1.msra.mxu0 0.0
  %458 = vmatprep.subr.mxu0 0.0
  %459 = vmatpush1.msra.mxu0 0.0
  %460 = vmatprep.subr.mxu0 0.0
  %461 = vmatpush1.msra.mxu0 0.0
  %462 = vmatprep.subr.mxu0 0.0
  %463 = vmatpush1.msra.mxu0 0.0
  %464 = vmatprep.subr.mxu0 0.0
  %465 = vmatpush1.msra.mxu0 0.0
  %466 = vmatprep.subr.mxu0 0.0
  %467 = vmatpush1.msra.mxu0 0.0
  %468 = vmatprep.subr.mxu0 0.0
  %469 = vmatpush1.msra.mxu0 0.0
  %470 = vmatprep.subr.mxu0 0.0
  %471 = vmatpush1.msra.mxu0 0.0
  %472 = vmatprep.mubr.f32.mxu0 0.0
  %473 = vmatmul.mubr.f32.gmra.mrb[0].mxu0 %v355
  %v474 = vpop.f32.mrb[0].mxu0
  %v475 = vadd.f32 0.0, %v474
  %v476 = vpop.f32.mrb[0].mxu0
  %v477 = vadd.f32 0.0, %v476
  %478 = vmatprep.mubr.f32.mxu0 0.0
  %479 = vmatmul.mubr.f32.gmra.mrb[0].mxu0 %v358
  %v480 = vpop.f32.mrb[0].mxu0
  %v481 = vadd.f32 0.0, %v480
  %v482 = vpop.f32.mrb[0].mxu0
  %v483 = vadd.f32 0.0, %v482
  %484 = vmatprep.mubr.f32.mxu0 0.0
  %485 = vmatmul.mubr.f32.gmra.mrb[0].mxu0 %v361
  %v486 = vpop.f32.mrb[0].mxu0
  %v487 = vadd.f32 0.0, %v486
  %v488 = vpop.f32.mrb[0].mxu0
  %v489 = vadd.f32 0.0, %v488
  %490 = vmatprep.mubr.f32.mxu0 0.0
  %491 = vmatmul.mubr.f32.gmra.mrb[0].mxu0 %v364
  %v492 = vpop.f32.mrb[0].mxu0
  %v493 = vadd.f32 0.0, %v492
  %v494 = vpop.f32.mrb[0].mxu0
  %v495 = vadd.f32 0.0, %v494
  %496 = vmatprep.mubr.f32.mxu0 0.0
  %497 = vmatmul.mubr.f32.gmra.mrb[0].mxu0 %v367
  %v498 = vpop.f32.mrb[0].mxu0
  %v499 = vadd.f32 0.0, %v498
  %v500 = vpop.f32.mrb[0].mxu0
  %v501 = vadd.f32 0.0, %v500
  %502 = vmatprep.mubr.f32.mxu0 0.0
  %503 = vmatmul.mubr.f32.gmra.mrb[0].mxu0 %v370
  %v504 = vpop.f32.mrb[0].mxu0
  %v505 = vadd.f32 0.0, %v504
  %v506 = vpop.f32.mrb[0].mxu0
  %v507 = vadd.f32 0.0, %v506
  %508 = vmatprep.mubr.f32.mxu0 0.0
  %509 = vmatmul.mubr.f32.gmra.mrb[0].mxu0 %v373
  %v510 = vpop.f32.mrb[0].mxu0
  %v511 = vadd.f32 0.0, %v510
  %v512 = vpop.f32.mrb[0].mxu0
  %v513 = vadd.f32 0.0, %v512
  %514 = vmatprep.mubr.f32.mxu0 0.0
  %515 = vmatmul.mubr.f32.gmra.mrb[0].mxu0 %v376
  %v516 = vpop.f32.mrb[0].mxu0
  %v517 = vadd.f32 0.0, %v516
  %v518 = vpop.f32.mrb[0].mxu0
  %v519 = vadd.f32 0.0, %v518
  %520 = vmatprep.mubr.f32.mxu0 0.0
  %521 = vmatmul.mubr.f32.gmra.mrb[0].mxu0 %v379
  %v522 = vpop.f32.mrb[0].mxu0
  %v523 = vadd.f32 0.0, %v522
  %v524 = vpop.f32.mrb[0].mxu0
  %v525 = vadd.f32 0.0, %v524
  %526 = vmatprep.mubr.f32.mxu0 0.0
  %527 = vmatmul.mubr.f32.gmra.mrb[0].mxu0 %v382
  %v528 = vpop.f32.mrb[0].mxu0
  %v529 = vadd.f32 0.0, %v528
  %v530 = vpop.f32.mrb[0].mxu0
  %v531 = vadd.f32 0.0, %v530
  %532 = vmatprep.mubr.f32.mxu0 0.0
  %533 = vmatmul.mubr.f32.gmra.mrb[0].mxu0 %v385
  %v534 = vpop.f32.mrb[0].mxu0
  %v535 = vadd.f32 0.0, %v534
  %v536 = vpop.f32.mrb[0].mxu0
  %v537 = vadd.f32 0.0, %v536
  %538 = vmatprep.mubr.f32.mxu0 0.0
  %539 = vmatmul.mubr.f32.gmra.mrb[0].mxu0 %v388
  %v540 = vpop.f32.mrb[0].mxu0
  %v541 = vadd.f32 0.0, %v540
  %v542 = vpop.f32.mrb[0].mxu0
  %v543 = vadd.f32 0.0, %v542
  %544 = vmatprep.mubr.f32.mxu0 0.0
  %545 = vmatmul.mubr.f32.gmra.mrb[0].mxu0 %v391
  %v546 = vpop.f32.mrb[0].mxu0
  %v547 = vadd.f32 0.0, %v546
  %v548 = vpop.f32.mrb[0].mxu0
  %v549 = vadd.f32 0.0, %v548
  %550 = vmatprep.mubr.f32.mxu0 0.0
  %551 = vmatmul.mubr.f32.gmra.mrb[0].mxu0 %v394
  %v552 = vpop.f32.mrb[0].mxu0
  %v553 = vadd.f32 0.0, %v552
  %v554 = vpop.f32.mrb[0].mxu0
  %v555 = vadd.f32 0.0, %v554
  %556 = vmatprep.mubr.f32.mxu0 0.0
  %557 = vmatmul.mubr.f32.gmra.mrb[0].mxu0 %v397
  %v558 = vpop.f32.mrb[0].mxu0
  %v559 = vadd.f32 0.0, %v558
  %v560 = vpop.f32.mrb[0].mxu0
  %v561 = vadd.f32 0.0, %v560
  %562 = vmatprep.mubr.f32.mxu0 0.0
  %563 = vmatmul.mubr.f32.gmra.mrb[0].mxu0 %v400
  %v564 = vpop.f32.mrb[0].mxu0
  %v565 = vadd.f32 0.0, %v564
  %v566 = vpop.f32.mrb[0].mxu0
  %v567 = vadd.f32 0.0, %v566
  %568 = vdwg.mxu0
  %v569 = vadd.f32 %v296, %v475
  %v570 = vadd.f32 %v297, %v477
  %v571 = vadd.f32 %v298, %v481
  %v572 = vadd.f32 %v299, %v483
  %v573 = vadd.f32 %v300, %v487
  %v574 = vadd.f32 %v301, %v489
  %v575 = vadd.f32 %v302, %v493
  %v576 = vadd.f32 %v303, %v495
  %v577 = vadd.f32 %v304, %v499
  %v578 = vadd.f32 %v305, %v501
  %v579 = vadd.f32 %v306, %v505
  %v580 = vadd.f32 %v307, %v507
  %v581 = vadd.f32 %v308, %v511
  %v582 = vadd.f32 %v309, %v513
  %v583 = vadd.f32 %v310, %v517
  %v584 = vadd.f32 %v311, %v519
  %v585 = vadd.f32 %v312, %v523
  %v586 = vadd.f32 %v313, %v525
  %v587 = vadd.f32 %v314, %v529
  %v588 = vadd.f32 %v315, %v531
  %v589 = vadd.f32 %v316, %v535
  %v590 = vadd.f32 %v317, %v537
  %v591 = vadd.f32 %v318, %v541
  %v592 = vadd.f32 %v319, %v543
  %v593 = vadd.f32 %v320, %v547
  %v594 = vadd.f32 %v321, %v549
  %v595 = vadd.f32 %v322, %v553
  %v596 = vadd.f32 %v323, %v555
  %v597 = vadd.f32 %v324, %v559
  %v598 = vadd.f32 %v325, %v561
  %v599 = vadd.f32 %v326, %v565
  %v600 = vadd.f32 %v327, %v567
  %v601 = vld [vmem:[%s0 + $0x1] sm:$0xff]
  %v602 = vld [vmem:[%s0 + $0x9] sm:$0xff]
  %v603 = vld [vmem:[%s0 + $0x31] sm:$0xff]
  %v604 = vld [vmem:[%s0 + $0x39] sm:$0xff]
  %v605 = vld [vmem:[%s0 + $0x61] sm:$0xff]
  %v606 = vld [vmem:[%s0 + $0x69] sm:$0xff]
  %v607 = vld [vmem:[%s0 + $0x91] sm:$0xff]
  %v608 = vld [vmem:[%s0 + $0x99] sm:$0xff]
  %v609 = vld [vmem:[%s0 + $0xc1] sm:$0xff]
  %v610 = vld [vmem:[%s0 + $0xc9] sm:$0xff]
  %v611 = vld [vmem:[%s0 + $0xf1] sm:$0xff]
  %v612 = vld [vmem:[%s0 + $0xf9] sm:$0xff]
  %v613 = vld [vmem:[%s0 + $0x121] sm:$0xff]
  %v614 = vld [vmem:[%s0 + $0x129] sm:$0xff]
  %v615 = vld [vmem:[%s0 + $0x151] sm:$0xff]
  %v616 = vld [vmem:[%s0 + $0x159] sm:$0xff]
  %s617 = scalar_lea.vmem %s1, 128
  %v618 = vld [vmem:[%s617] sm:$0xff]
  %v619 = vld [vmem:[%s617 + $0x8] sm:$0xff]
  %v620 = vld [vmem:[%s617 + $0x10] sm:$0xff]
  %v621 = vld [vmem:[%s617 + $0x18] sm:$0xff]
  %v622 = vld [vmem:[%s617 + $0x20] sm:$0xff]
  %v623 = vld [vmem:[%s617 + $0x28] sm:$0xff]
  %v624 = vld [vmem:[%s617 + $0x30] sm:$0xf]
  %v625 = vld [vmem:[%s617 + $0x38] sm:$0xf]
  %v627 = vsel %vm79, %v601, 0
  %v630 = vsel %vm79, %v602, 0
  %v633 = vsel %vm79, %v603, 0
  %v636 = vsel %vm79, %v604, 0
  %v639 = vsel %vm79, %v605, 0
  %v642 = vsel %vm79, %v606, 0
  %v645 = vsel %vm79, %v607, 0
  %v648 = vsel %vm79, %v608, 0
  %v651 = vsel %vm79, %v609, 0
  %v654 = vsel %vm79, %v610, 0
  %v657 = vsel %vm79, %v611, 0
  %v660 = vsel %vm79, %v612, 0
  %v663 = vsel %vm79, %v613, 0
  %v666 = vsel %vm79, %v614, 0
  %v669 = vsel %vm79, %v615, 0
  %v672 = vsel %vm79, %v616, 0
  %v675 = vsel %vm128, %v624, 0
  %v678 = vsel %vm128, %v625, 0
  %680 = vmatprep.subr.mxu0 %v619
  %681 = vmatpush1.msra.mxu0 %v618
  %682 = vmatprep.subr.mxu0 %v621
  %683 = vmatpush1.msra.mxu0 %v620
  %684 = vmatprep.subr.mxu0 %v623
  %685 = vmatpush1.msra.mxu0 %v622
  %686 = vmatprep.subr.mxu0 %v678
  %687 = vmatpush1.msra.mxu0 %v675
  %688 = vmatprep.subr.mxu0 0.0
  %689 = vmatpush1.msra.mxu0 0.0
  %690 = vmatprep.subr.mxu0 0.0
  %691 = vmatpush1.msra.mxu0 0.0
  %692 = vmatprep.subr.mxu0 0.0
  %693 = vmatpush1.msra.mxu0 0.0
  %694 = vmatprep.subr.mxu0 0.0
  %695 = vmatpush1.msra.mxu0 0.0
  %696 = vmatprep.subr.mxu0 0.0
  %697 = vmatpush1.msra.mxu0 0.0
  %698 = vmatprep.subr.mxu0 0.0
  %699 = vmatpush1.msra.mxu0 0.0
  %700 = vmatprep.subr.mxu0 0.0
  %701 = vmatpush1.msra.mxu0 0.0
  %702 = vmatprep.subr.mxu0 0.0
  %703 = vmatpush1.msra.mxu0 0.0
  %704 = vmatprep.subr.mxu0 0.0
  %705 = vmatpush1.msra.mxu0 0.0
  %706 = vmatprep.subr.mxu0 0.0
  %707 = vmatpush1.msra.mxu0 0.0
  %708 = vmatprep.subr.mxu0 0.0
  %709 = vmatpush1.msra.mxu0 0.0
  %710 = vmatprep.subr.mxu0 0.0
  %711 = vmatpush1.msra.mxu0 0.0
  %712 = vmatprep.subr.mxu0 0.0
  %713 = vmatpush1.msra.mxu0 0.0
  %714 = vmatprep.subr.mxu0 0.0
  %715 = vmatpush1.msra.mxu0 0.0
  %716 = vmatprep.subr.mxu0 0.0
  %717 = vmatpush1.msra.mxu0 0.0
  %718 = vmatprep.subr.mxu0 0.0
  %719 = vmatpush1.msra.mxu0 0.0
  %720 = vmatprep.subr.mxu0 0.0
  %721 = vmatpush1.msra.mxu0 0.0
  %722 = vmatprep.subr.mxu0 0.0
  %723 = vmatpush1.msra.mxu0 0.0
  %724 = vmatprep.subr.mxu0 0.0
  %725 = vmatpush1.msra.mxu0 0.0
  %726 = vmatprep.subr.mxu0 0.0
  %727 = vmatpush1.msra.mxu0 0.0
  %728 = vmatprep.subr.mxu0 0.0
  %729 = vmatpush1.msra.mxu0 0.0
  %730 = vmatprep.subr.mxu0 0.0
  %731 = vmatpush1.msra.mxu0 0.0
  %732 = vmatprep.subr.mxu0 0.0
  %733 = vmatpush1.msra.mxu0 0.0
  %734 = vmatprep.subr.mxu0 0.0
  %735 = vmatpush1.msra.mxu0 0.0
  %736 = vmatprep.subr.mxu0 0.0
  %737 = vmatpush1.msra.mxu0 0.0
  %738 = vmatprep.subr.mxu0 0.0
  %739 = vmatpush1.msra.mxu0 0.0
  %740 = vmatprep.subr.mxu0 0.0
  %741 = vmatpush1.msra.mxu0 0.0
  %742 = vmatprep.subr.mxu0 0.0
  %743 = vmatpush1.msra.mxu0 0.0
  %744 = vmatprep.mubr.f32.mxu0 0.0
  %745 = vmatmul.mubr.f32.gmra.mrb[0].mxu0 %v627
  %v746 = vpop.f32.mrb[0].mxu0
  %v747 = vadd.f32 0.0, %v746
  %v748 = vpop.f32.mrb[0].mxu0
  %v749 = vadd.f32 0.0, %v748
  %750 = vmatprep.mubr.f32.mxu0 0.0
  %751 = vmatmul.mubr.f32.gmra.mrb[0].mxu0 %v630
  %v752 = vpop.f32.mrb[0].mxu0
  %v753 = vadd.f32 0.0, %v752
  %v754 = vpop.f32.mrb[0].mxu0
  %v755 = vadd.f32 0.0, %v754
  %756 = vmatprep.mubr.f32.mxu0 0.0
  %757 = vmatmul.mubr.f32.gmra.mrb[0].mxu0 %v633
  %v758 = vpop.f32.mrb[0].mxu0
  %v759 = vadd.f32 0.0, %v758
  %v760 = vpop.f32.mrb[0].mxu0
  %v761 = vadd.f32 0.0, %v760
  %762 = vmatprep.mubr.f32.mxu0 0.0
  %763 = vmatmul.mubr.f32.gmra.mrb[0].mxu0 %v636
  %v764 = vpop.f32.mrb[0].mxu0
  %v765 = vadd.f32 0.0, %v764
  %v766 = vpop.f32.mrb[0].mxu0
  %v767 = vadd.f32 0.0, %v766
  %768 = vmatprep.mubr.f32.mxu0 0.0
  %769 = vmatmul.mubr.f32.gmra.mrb[0].mxu0 %v639
  %v770 = vpop.f32.mrb[0].mxu0
  %v771 = vadd.f32 0.0, %v770
  %v772 = vpop.f32.mrb[0].mxu0
  %v773 = vadd.f32 0.0, %v772
  %774 = vmatprep.mubr.f32.mxu0 0.0
  %775 = vmatmul.mubr.f32.gmra.mrb[0].mxu0 %v642
  %v776 = vpop.f32.mrb[0].mxu0
  %v777 = vadd.f32 0.0, %v776
  %v778 = vpop.f32.mrb[0].mxu0
  %v779 = vadd.f32 0.0, %v778
  %780 = vmatprep.mubr.f32.mxu0 0.0
  %781 = vmatmul.mubr.f32.gmra.mrb[0].mxu0 %v645
  %v782 = vpop.f32.mrb[0].mxu0
  %v783 = vadd.f32 0.0, %v782
  %v784 = vpop.f32.mrb[0].mxu0
  %v785 = vadd.f32 0.0, %v784
  %786 = vmatprep.mubr.f32.mxu0 0.0
  %787 = vmatmul.mubr.f32.gmra.mrb[0].mxu0 %v648
  %v788 = vpop.f32.mrb[0].mxu0
  %v789 = vadd.f32 0.0, %v788
  %v790 = vpop.f32.mrb[0].mxu0
  %v791 = vadd.f32 0.0, %v790
  %792 = vmatprep.mubr.f32.mxu0 0.0
  %793 = vmatmul.mubr.f32.gmra.mrb[0].mxu0 %v651
  %v794 = vpop.f32.mrb[0].mxu0
  %v795 = vadd.f32 0.0, %v794
  %v796 = vpop.f32.mrb[0].mxu0
  %v797 = vadd.f32 0.0, %v796
  %798 = vmatprep.mubr.f32.mxu0 0.0
  %799 = vmatmul.mubr.f32.gmra.mrb[0].mxu0 %v654
  %v800 = vpop.f32.mrb[0].mxu0
  %v801 = vadd.f32 0.0, %v800
  %v802 = vpop.f32.mrb[0].mxu0
  %v803 = vadd.f32 0.0, %v802
  %804 = vmatprep.mubr.f32.mxu0 0.0
  %805 = vmatmul.mubr.f32.gmra.mrb[0].mxu0 %v657
  %v806 = vpop.f32.mrb[0].mxu0
  %v807 = vadd.f32 0.0, %v806
  %v808 = vpop.f32.mrb[0].mxu0
  %v809 = vadd.f32 0.0, %v808
  %810 = vmatprep.mubr.f32.mxu0 0.0
  %811 = vmatmul.mubr.f32.gmra.mrb[0].mxu0 %v660
  %v812 = vpop.f32.mrb[0].mxu0
  %v813 = vadd.f32 0.0, %v812
  %v814 = vpop.f32.mrb[0].mxu0
  %v815 = vadd.f32 0.0, %v814
  %816 = vmatprep.mubr.f32.mxu0 0.0
  %817 = vmatmul.mubr.f32.gmra.mrb[0].mxu0 %v663
  %v818 = vpop.f32.mrb[0].mxu0
  %v819 = vadd.f32 0.0, %v818
  %v820 = vpop.f32.mrb[0].mxu0
  %v821 = vadd.f32 0.0, %v820
  %822 = vmatprep.mubr.f32.mxu0 0.0
  %823 = vmatmul.mubr.f32.gmra.mrb[0].mxu0 %v666
  %v824 = vpop.f32.mrb[0].mxu0
  %v825 = vadd.f32 0.0, %v824
  %v826 = vpop.f32.mrb[0].mxu0
  %v827 = vadd.f32 0.0, %v826
  %828 = vmatprep.mubr.f32.mxu0 0.0
  %829 = vmatmul.mubr.f32.gmra.mrb[0].mxu0 %v669
  %v830 = vpop.f32.mrb[0].mxu0
  %v831 = vadd.f32 0.0, %v830
  %v832 = vpop.f32.mrb[0].mxu0
  %v833 = vadd.f32 0.0, %v832
  %834 = vmatprep.mubr.f32.mxu0 0.0
  %835 = vmatmul.mubr.f32.gmra.mrb[0].mxu0 %v672
  %v836 = vpop.f32.mrb[0].mxu0
  %v837 = vadd.f32 0.0, %v836
  %v838 = vpop.f32.mrb[0].mxu0
  %v839 = vadd.f32 0.0, %v838
  %840 = vdwg.mxu0
  %v841 = vadd.f32 %v569, %v747
  %v842 = vadd.f32 %v570, %v749
  %v843 = vadd.f32 %v571, %v753
  %v844 = vadd.f32 %v572, %v755
  %v845 = vadd.f32 %v573, %v759
  %v846 = vadd.f32 %v574, %v761
  %v847 = vadd.f32 %v575, %v765
  %v848 = vadd.f32 %v576, %v767
  %v849 = vadd.f32 %v577, %v771
  %v850 = vadd.f32 %v578, %v773
  %v851 = vadd.f32 %v579, %v777
  %v852 = vadd.f32 %v580, %v779
  %v853 = vadd.f32 %v581, %v783
  %v854 = vadd.f32 %v582, %v785
  %v855 = vadd.f32 %v583, %v789
  %v856 = vadd.f32 %v584, %v791
  %v857 = vadd.f32 %v585, %v795
  %v858 = vadd.f32 %v586, %v797
  %v859 = vadd.f32 %v587, %v801
  %v860 = vadd.f32 %v588, %v803
  %v861 = vadd.f32 %v589, %v807
  %v862 = vadd.f32 %v590, %v809
  %v863 = vadd.f32 %v591, %v813
  %v864 = vadd.f32 %v592, %v815
  %v865 = vadd.f32 %v593, %v819
  %v866 = vadd.f32 %v594, %v821
  %v867 = vadd.f32 %v595, %v825
  %v868 = vadd.f32 %v596, %v827
  %v869 = vadd.f32 %v597, %v831
  %v870 = vadd.f32 %v598, %v833
  %v871 = vadd.f32 %v599, %v837
  %v872 = vadd.f32 %v600, %v839
  %v873 = vld [vmem:[%s328 + $0x1] sm:$0xff]
  %v874 = vld [vmem:[%s328 + $0x9] sm:$0xff]
  %v875 = vld [vmem:[%s328 + $0x31] sm:$0xff]
  %v876 = vld [vmem:[%s328 + $0x39] sm:$0xff]
  %v877 = vld [vmem:[%s328 + $0x61] sm:$0xff]
  %v878 = vld [vmem:[%s328 + $0x69] sm:$0xff]
  %v879 = vld [vmem:[%s328 + $0x91] sm:$0xff]
  %v880 = vld [vmem:[%s328 + $0x99] sm:$0xff]
  %v881 = vld [vmem:[%s328 + $0xc1] sm:$0xff]
  %v882 = vld [vmem:[%s328 + $0xc9] sm:$0xff]
  %v883 = vld [vmem:[%s328 + $0xf1] sm:$0xff]
  %v884 = vld [vmem:[%s328 + $0xf9] sm:$0xff]
  %v885 = vld [vmem:[%s328 + $0x121] sm:$0xff]
  %v886 = vld [vmem:[%s328 + $0x129] sm:$0xff]
  %v887 = vld [vmem:[%s328 + $0x151] sm:$0xff]
  %v888 = vld [vmem:[%s328 + $0x159] sm:$0xff]
  %s889 = scalar_lea.vmem %s1, 192
  %v890 = vld [vmem:[%s889] sm:$0xff]
  %v891 = vld [vmem:[%s889 + $0x8] sm:$0xff]
  %v892 = vld [vmem:[%s889 + $0x10] sm:$0xff]
  %v893 = vld [vmem:[%s889 + $0x18] sm:$0xff]
  %v894 = vld [vmem:[%s889 + $0x20] sm:$0xff]
  %v895 = vld [vmem:[%s889 + $0x28] sm:$0xff]
  %v896 = vld [vmem:[%s889 + $0x30] sm:$0xf]
  %v897 = vld [vmem:[%s889 + $0x38] sm:$0xf]
  %v899 = vsel %vm79, %v873, 0
  %v902 = vsel %vm79, %v874, 0
  %v905 = vsel %vm79, %v875, 0
  %v908 = vsel %vm79, %v876, 0
  %v911 = vsel %vm79, %v877, 0
  %v914 = vsel %vm79, %v878, 0
  %v917 = vsel %vm79, %v879, 0
  %v920 = vsel %vm79, %v880, 0
  %v923 = vsel %vm79, %v881, 0
  %v926 = vsel %vm79, %v882, 0
  %v929 = vsel %vm79, %v883, 0
  %v932 = vsel %vm79, %v884, 0
  %v935 = vsel %vm79, %v885, 0
  %v938 = vsel %vm79, %v886, 0
  %v941 = vsel %vm79, %v887, 0
  %v944 = vsel %vm79, %v888, 0
  %v947 = vsel %vm128, %v896, 0
  %v950 = vsel %vm128, %v897, 0
  %952 = vmatprep.subr.mxu0 %v891
  %953 = vmatpush1.msra.mxu0 %v890
  %954 = vmatprep.subr.mxu0 %v893
  %955 = vmatpush1.msra.mxu0 %v892
  %956 = vmatprep.subr.mxu0 %v895
  %957 = vmatpush1.msra.mxu0 %v894
  %958 = vmatprep.subr.mxu0 %v950
  %959 = vmatpush1.msra.mxu0 %v947
  %960 = vmatprep.subr.mxu0 0.0
  %961 = vmatpush1.msra.mxu0 0.0
  %962 = vmatprep.subr.mxu0 0.0
  %963 = vmatpush1.msra.mxu0 0.0
  %964 = vmatprep.subr.mxu0 0.0
  %965 = vmatpush1.msra.mxu0 0.0
  %966 = vmatprep.subr.mxu0 0.0
  %967 = vmatpush1.msra.mxu0 0.0
  %968 = vmatprep.subr.mxu0 0.0
  %969 = vmatpush1.msra.mxu0 0.0
  %970 = vmatprep.subr.mxu0 0.0
  %971 = vmatpush1.msra.mxu0 0.0
  %972 = vmatprep.subr.mxu0 0.0
  %973 = vmatpush1.msra.mxu0 0.0
  %974 = vmatprep.subr.mxu0 0.0
  %975 = vmatpush1.msra.mxu0 0.0
  %976 = vmatprep.subr.mxu0 0.0
  %977 = vmatpush1.msra.mxu0 0.0
  %978 = vmatprep.subr.mxu0 0.0
  %979 = vmatpush1.msra.mxu0 0.0
  %980 = vmatprep.subr.mxu0 0.0
  %981 = vmatpush1.msra.mxu0 0.0
  %982 = vmatprep.subr.mxu0 0.0
  %983 = vmatpush1.msra.mxu0 0.0
  %984 = vmatprep.subr.mxu0 0.0
  %985 = vmatpush1.msra.mxu0 0.0
  %986 = vmatprep.subr.mxu0 0.0
  %987 = vmatpush1.msra.mxu0 0.0
  %988 = vmatprep.subr.mxu0 0.0
  %989 = vmatpush1.msra.mxu0 0.0
  %990 = vmatprep.subr.mxu0 0.0
  %991 = vmatpush1.msra.mxu0 0.0
  %992 = vmatprep.subr.mxu0 0.0
  %993 = vmatpush1.msra.mxu0 0.0
  %994 = vmatprep.subr.mxu0 0.0
  %995 = vmatpush1.msra.mxu0 0.0
  %996 = vmatprep.subr.mxu0 0.0
  %997 = vmatpush1.msra.mxu0 0.0
  %998 = vmatprep.subr.mxu0 0.0
  %999 = vmatpush1.msra.mxu0 0.0
  %1000 = vmatprep.subr.mxu0 0.0
  %1001 = vmatpush1.msra.mxu0 0.0
  %1002 = vmatprep.subr.mxu0 0.0
  %1003 = vmatpush1.msra.mxu0 0.0
  %1004 = vmatprep.subr.mxu0 0.0
  %1005 = vmatpush1.msra.mxu0 0.0
  %1006 = vmatprep.subr.mxu0 0.0
  %1007 = vmatpush1.msra.mxu0 0.0
  %1008 = vmatprep.subr.mxu0 0.0
  %1009 = vmatpush1.msra.mxu0 0.0
  %1010 = vmatprep.subr.mxu0 0.0
  %1011 = vmatpush1.msra.mxu0 0.0
  %1012 = vmatprep.subr.mxu0 0.0
  %1013 = vmatpush1.msra.mxu0 0.0
  %1014 = vmatprep.subr.mxu0 0.0
  %1015 = vmatpush1.msra.mxu0 0.0
  %1016 = vmatprep.mubr.f32.mxu0 0.0
  %1017 = vmatmul.mubr.f32.gmra.mrb[0].mxu0 %v899
  %v1018 = vpop.f32.mrb[0].mxu0
  %v1019 = vadd.f32 0.0, %v1018
  %v1020 = vpop.f32.mrb[0].mxu0
  %v1021 = vadd.f32 0.0, %v1020
  %1022 = vmatprep.mubr.f32.mxu0 0.0
  %1023 = vmatmul.mubr.f32.gmra.mrb[0].mxu0 %v902
  %v1024 = vpop.f32.mrb[0].mxu0
  %v1025 = vadd.f32 0.0, %v1024
  %v1026 = vpop.f32.mrb[0].mxu0
  %v1027 = vadd.f32 0.0, %v1026
  %1028 = vmatprep.mubr.f32.mxu0 0.0
  %1029 = vmatmul.mubr.f32.gmra.mrb[0].mxu0 %v905
  %v1030 = vpop.f32.mrb[0].mxu0
  %v1031 = vadd.f32 0.0, %v1030
  %v1032 = vpop.f32.mrb[0].mxu0
  %v1033 = vadd.f32 0.0, %v1032
  %1034 = vmatprep.mubr.f32.mxu0 0.0
  %1035 = vmatmul.mubr.f32.gmra.mrb[0].mxu0 %v908
  %v1036 = vpop.f32.mrb[0].mxu0
  %v1037 = vadd.f32 0.0, %v1036
  %v1038 = vpop.f32.mrb[0].mxu0
  %v1039 = vadd.f32 0.0, %v1038
  %1040 = vmatprep.mubr.f32.mxu0 0.0
  %1041 = vmatmul.mubr.f32.gmra.mrb[0].mxu0 %v911
  %v1042 = vpop.f32.mrb[0].mxu0
  %v1043 = vadd.f32 0.0, %v1042
  %v1044 = vpop.f32.mrb[0].mxu0
  %v1045 = vadd.f32 0.0, %v1044
  %1046 = vmatprep.mubr.f32.mxu0 0.0
  %1047 = vmatmul.mubr.f32.gmra.mrb[0].mxu0 %v914
  %v1048 = vpop.f32.mrb[0].mxu0
  %v1049 = vadd.f32 0.0, %v1048
  %v1050 = vpop.f32.mrb[0].mxu0
  %v1051 = vadd.f32 0.0, %v1050
  %1052 = vmatprep.mubr.f32.mxu0 0.0
  %1053 = vmatmul.mubr.f32.gmra.mrb[0].mxu0 %v917
  %v1054 = vpop.f32.mrb[0].mxu0
  %v1055 = vadd.f32 0.0, %v1054
  %v1056 = vpop.f32.mrb[0].mxu0
  %v1057 = vadd.f32 0.0, %v1056
  %1058 = vmatprep.mubr.f32.mxu0 0.0
  %1059 = vmatmul.mubr.f32.gmra.mrb[0].mxu0 %v920
  %v1060 = vpop.f32.mrb[0].mxu0
  %v1061 = vadd.f32 0.0, %v1060
  %v1062 = vpop.f32.mrb[0].mxu0
  %v1063 = vadd.f32 0.0, %v1062
  %1064 = vmatprep.mubr.f32.mxu0 0.0
  %1065 = vmatmul.mubr.f32.gmra.mrb[0].mxu0 %v923
  %v1066 = vpop.f32.mrb[0].mxu0
  %v1067 = vadd.f32 0.0, %v1066
  %v1068 = vpop.f32.mrb[0].mxu0
  %v1069 = vadd.f32 0.0, %v1068
  %1070 = vmatprep.mubr.f32.mxu0 0.0
  %1071 = vmatmul.mubr.f32.gmra.mrb[0].mxu0 %v926
  %v1072 = vpop.f32.mrb[0].mxu0
  %v1073 = vadd.f32 0.0, %v1072
  %v1074 = vpop.f32.mrb[0].mxu0
  %v1075 = vadd.f32 0.0, %v1074
  %1076 = vmatprep.mubr.f32.mxu0 0.0
  %1077 = vmatmul.mubr.f32.gmra.mrb[0].mxu0 %v929
  %v1078 = vpop.f32.mrb[0].mxu0
  %v1079 = vadd.f32 0.0, %v1078
  %v1080 = vpop.f32.mrb[0].mxu0
  %v1081 = vadd.f32 0.0, %v1080
  %1082 = vmatprep.mubr.f32.mxu0 0.0
  %1083 = vmatmul.mubr.f32.gmra.mrb[0].mxu0 %v932
  %v1084 = vpop.f32.mrb[0].mxu0
  %v1085 = vadd.f32 0.0, %v1084
  %v1086 = vpop.f32.mrb[0].mxu0
  %v1087 = vadd.f32 0.0, %v1086
  %1088 = vmatprep.mubr.f32.mxu0 0.0
  %1089 = vmatmul.mubr.f32.gmra.mrb[0].mxu0 %v935
  %v1090 = vpop.f32.mrb[0].mxu0
  %v1091 = vadd.f32 0.0, %v1090
  %v1092 = vpop.f32.mrb[0].mxu0
  %v1093 = vadd.f32 0.0, %v1092
  %1094 = vmatprep.mubr.f32.mxu0 0.0
  %1095 = vmatmul.mubr.f32.gmra.mrb[0].mxu0 %v938
  %v1096 = vpop.f32.mrb[0].mxu0
  %v1097 = vadd.f32 0.0, %v1096
  %v1098 = vpop.f32.mrb[0].mxu0
  %v1099 = vadd.f32 0.0, %v1098
  %1100 = vmatprep.mubr.f32.mxu0 0.0
  %1101 = vmatmul.mubr.f32.gmra.mrb[0].mxu0 %v941
  %v1102 = vpop.f32.mrb[0].mxu0
  %v1103 = vadd.f32 0.0, %v1102
  %v1104 = vpop.f32.mrb[0].mxu0
  %v1105 = vadd.f32 0.0, %v1104
  %1106 = vmatprep.mubr.f32.mxu0 0.0
  %1107 = vmatmul.mubr.f32.gmra.mrb[0].mxu0 %v944
  %v1108 = vpop.f32.mrb[0].mxu0
  %v1109 = vadd.f32 0.0, %v1108
  %v1110 = vpop.f32.mrb[0].mxu0
  %v1111 = vadd.f32 0.0, %v1110
  %1112 = vdwg.mxu0
  %v1113 = vadd.f32 %v841, %v1019
  %v1114 = vadd.f32 %v842, %v1021
  %v1115 = vadd.f32 %v843, %v1025
  %v1116 = vadd.f32 %v844, %v1027
  %v1117 = vadd.f32 %v845, %v1031
  %v1118 = vadd.f32 %v846, %v1033
  %v1119 = vadd.f32 %v847, %v1037
  %v1120 = vadd.f32 %v848, %v1039
  %v1121 = vadd.f32 %v849, %v1043
  %v1122 = vadd.f32 %v850, %v1045
  %v1123 = vadd.f32 %v851, %v1049
  %v1124 = vadd.f32 %v852, %v1051
  %v1125 = vadd.f32 %v853, %v1055
  %v1126 = vadd.f32 %v854, %v1057
  %v1127 = vadd.f32 %v855, %v1061
  %v1128 = vadd.f32 %v856, %v1063
  %v1129 = vadd.f32 %v857, %v1067
  %v1130 = vadd.f32 %v858, %v1069
  %v1131 = vadd.f32 %v859, %v1073
  %v1132 = vadd.f32 %v860, %v1075
  %v1133 = vadd.f32 %v861, %v1079
  %v1134 = vadd.f32 %v862, %v1081
  %v1135 = vadd.f32 %v863, %v1085
  %v1136 = vadd.f32 %v864, %v1087
  %v1137 = vadd.f32 %v865, %v1091
  %v1138 = vadd.f32 %v866, %v1093
  %v1139 = vadd.f32 %v867, %v1097
  %v1140 = vadd.f32 %v868, %v1099
  %v1141 = vadd.f32 %v869, %v1103
  %v1142 = vadd.f32 %v870, %v1105
  %v1143 = vadd.f32 %v871, %v1109
  %v1144 = vadd.f32 %v872, %v1111
  %v1145 = vld [vmem:[%s0 + $0x2] sm:$0xff]
  %v1146 = vld [vmem:[%s0 + $0xa] sm:$0xff]
  %v1147 = vld [vmem:[%s0 + $0x32] sm:$0xff]
  %v1148 = vld [vmem:[%s0 + $0x3a] sm:$0xff]
  %v1149 = vld [vmem:[%s0 + $0x62] sm:$0xff]
  %v1150 = vld [vmem:[%s0 + $0x6a] sm:$0xff]
  %v1151 = vld [vmem:[%s0 + $0x92] sm:$0xff]
  %v1152 = vld [vmem:[%s0 + $0x9a] sm:$0xff]
  %v1153 = vld [vmem:[%s0 + $0xc2] sm:$0xff]
  %v1154 = vld [vmem:[%s0 + $0xca] sm:$0xff]
  %v1155 = vld [vmem:[%s0 + $0xf2] sm:$0xff]
  %v1156 = vld [vmem:[%s0 + $0xfa] sm:$0xff]
  %v1157 = vld [vmem:[%s0 + $0x122] sm:$0xff]
  %v1158 = vld [vmem:[%s0 + $0x12a] sm:$0xff]
  %v1159 = vld [vmem:[%s0 + $0x152] sm:$0xff]
  %v1160 = vld [vmem:[%s0 + $0x15a] sm:$0xff]
  %s1161 = scalar_lea.vmem %s1, 256
  %v1162 = vld [vmem:[%s1161] sm:$0xff]
  %v1163 = vld [vmem:[%s1161 + $0x8] sm:$0xff]
  %v1164 = vld [vmem:[%s1161 + $0x10] sm:$0xff]
  %v1165 = vld [vmem:[%s1161 + $0x18] sm:$0xff]
  %v1166 = vld [vmem:[%s1161 + $0x20] sm:$0xff]
  %v1167 = vld [vmem:[%s1161 + $0x28] sm:$0xff]
  %v1168 = vld [vmem:[%s1161 + $0x30] sm:$0xf]
  %v1169 = vld [vmem:[%s1161 + $0x38] sm:$0xf]
  %v1171 = vsel %vm79, %v1145, 0
  %v1174 = vsel %vm79, %v1146, 0
  %v1177 = vsel %vm79, %v1147, 0
  %v1180 = vsel %vm79, %v1148, 0
  %v1183 = vsel %vm79, %v1149, 0
  %v1186 = vsel %vm79, %v1150, 0
  %v1189 = vsel %vm79, %v1151, 0
  %v1192 = vsel %vm79, %v1152, 0
  %v1195 = vsel %vm79, %v1153, 0
  %v1198 = vsel %vm79, %v1154, 0
  %v1201 = vsel %vm79, %v1155, 0
  %v1204 = vsel %vm79, %v1156, 0
  %v1207 = vsel %vm79, %v1157, 0
  %v1210 = vsel %vm79, %v1158, 0
  %v1213 = vsel %vm79, %v1159, 0
  %v1216 = vsel %vm79, %v1160, 0
  %v1219 = vsel %vm128, %v1168, 0
  %v1222 = vsel %vm128, %v1169, 0
  %1224 = vmatprep.subr.mxu0 %v1163
  %1225 = vmatpush1.msra.mxu0 %v1162
  %1226 = vmatprep.subr.mxu0 %v1165
  %1227 = vmatpush1.msra.mxu0 %v1164
  %1228 = vmatprep.subr.mxu0 %v1167
  %1229 = vmatpush1.msra.mxu0 %v1166
  %1230 = vmatprep.subr.mxu0 %v1222
  %1231 = vmatpush1.msra.mxu0 %v1219
  %1232 = vmatprep.subr.mxu0 0.0
  %1233 = vmatpush1.msra.mxu0 0.0
  %1234 = vmatprep.subr.mxu0 0.0
  %1235 = vmatpush1.msra.mxu0 0.0
  %1236 = vmatprep.subr.mxu0 0.0
  %1237 = vmatpush1.msra.mxu0 0.0
  %1238 = vmatprep.subr.mxu0 0.0
  %1239 = vmatpush1.msra.mxu0 0.0
  %1240 = vmatprep.subr.mxu0 0.0
  %1241 = vmatpush1.msra.mxu0 0.0
  %1242 = vmatprep.subr.mxu0 0.0
  %1243 = vmatpush1.msra.mxu0 0.0
  %1244 = vmatprep.subr.mxu0 0.0
  %1245 = vmatpush1.msra.mxu0 0.0
  %1246 = vmatprep.subr.mxu0 0.0
  %1247 = vmatpush1.msra.mxu0 0.0
  %1248 = vmatprep.subr.mxu0 0.0
  %1249 = vmatpush1.msra.mxu0 0.0
  %1250 = vmatprep.subr.mxu0 0.0
  %1251 = vmatpush1.msra.mxu0 0.0
  %1252 = vmatprep.subr.mxu0 0.0
  %1253 = vmatpush1.msra.mxu0 0.0
  %1254 = vmatprep.subr.mxu0 0.0
  %1255 = vmatpush1.msra.mxu0 0.0
  %1256 = vmatprep.subr.mxu0 0.0
  %1257 = vmatpush1.msra.mxu0 0.0
  %1258 = vmatprep.subr.mxu0 0.0
  %1259 = vmatpush1.msra.mxu0 0.0
  %1260 = vmatprep.subr.mxu0 0.0
  %1261 = vmatpush1.msra.mxu0 0.0
  %1262 = vmatprep.subr.mxu0 0.0
  %1263 = vmatpush1.msra.mxu0 0.0
  %1264 = vmatprep.subr.mxu0 0.0
  %1265 = vmatpush1.msra.mxu0 0.0
  %1266 = vmatprep.subr.mxu0 0.0
  %1267 = vmatpush1.msra.mxu0 0.0
  %1268 = vmatprep.subr.mxu0 0.0
  %1269 = vmatpush1.msra.mxu0 0.0
  %1270 = vmatprep.subr.mxu0 0.0
  %1271 = vmatpush1.msra.mxu0 0.0
  %1272 = vmatprep.subr.mxu0 0.0
  %1273 = vmatpush1.msra.mxu0 0.0
  %1274 = vmatprep.subr.mxu0 0.0
  %1275 = vmatpush1.msra.mxu0 0.0
  %1276 = vmatprep.subr.mxu0 0.0
  %1277 = vmatpush1.msra.mxu0 0.0
  %1278 = vmatprep.subr.mxu0 0.0
  %1279 = vmatpush1.msra.mxu0 0.0
  %1280 = vmatprep.subr.mxu0 0.0
  %1281 = vmatpush1.msra.mxu0 0.0
  %1282 = vmatprep.subr.mxu0 0.0
  %1283 = vmatpush1.msra.mxu0 0.0
  %1284 = vmatprep.subr.mxu0 0.0
  %1285 = vmatpush1.msra.mxu0 0.0
  %1286 = vmatprep.subr.mxu0 0.0
  %1287 = vmatpush1.msra.mxu0 0.0
  %1288 = vmatprep.mubr.f32.mxu0 0.0
  %1289 = vmatmul.mubr.f32.gmra.mrb[0].mxu0 %v1171
  %v1290 = vpop.f32.mrb[0].mxu0
  %v1291 = vadd.f32 0.0, %v1290
  %v1292 = vpop.f32.mrb[0].mxu0
  %v1293 = vadd.f32 0.0, %v1292
  %1294 = vmatprep.mubr.f32.mxu0 0.0
  %1295 = vmatmul.mubr.f32.gmra.mrb[0].mxu0 %v1174
  %v1296 = vpop.f32.mrb[0].mxu0
  %v1297 = vadd.f32 0.0, %v1296
  %v1298 = vpop.f32.mrb[0].mxu0
  %v1299 = vadd.f32 0.0, %v1298
  %1300 = vmatprep.mubr.f32.mxu0 0.0
  %1301 = vmatmul.mubr.f32.gmra.mrb[0].mxu0 %v1177
  %v1302 = vpop.f32.mrb[0].mxu0
  %v1303 = vadd.f32 0.0, %v1302
  %v1304 = vpop.f32.mrb[0].mxu0
  %v1305 = vadd.f32 0.0, %v1304
  %1306 = vmatprep.mubr.f32.mxu0 0.0
  %1307 = vmatmul.mubr.f32.gmra.mrb[0].mxu0 %v1180
  %v1308 = vpop.f32.mrb[0].mxu0
  %v1309 = vadd.f32 0.0, %v1308
  %v1310 = vpop.f32.mrb[0].mxu0
  %v1311 = vadd.f32 0.0, %v1310
  %1312 = vmatprep.mubr.f32.mxu0 0.0
  %1313 = vmatmul.mubr.f32.gmra.mrb[0].mxu0 %v1183
  %v1314 = vpop.f32.mrb[0].mxu0
  %v1315 = vadd.f32 0.0, %v1314
  %v1316 = vpop.f32.mrb[0].mxu0
  %v1317 = vadd.f32 0.0, %v1316
  %1318 = vmatprep.mubr.f32.mxu0 0.0
  %1319 = vmatmul.mubr.f32.gmra.mrb[0].mxu0 %v1186
  %v1320 = vpop.f32.mrb[0].mxu0
  %v1321 = vadd.f32 0.0, %v1320
  %v1322 = vpop.f32.mrb[0].mxu0
  %v1323 = vadd.f32 0.0, %v1322
  %1324 = vmatprep.mubr.f32.mxu0 0.0
  %1325 = vmatmul.mubr.f32.gmra.mrb[0].mxu0 %v1189
  %v1326 = vpop.f32.mrb[0].mxu0
  %v1327 = vadd.f32 0.0, %v1326
  %v1328 = vpop.f32.mrb[0].mxu0
  %v1329 = vadd.f32 0.0, %v1328
  %1330 = vmatprep.mubr.f32.mxu0 0.0
  %1331 = vmatmul.mubr.f32.gmra.mrb[0].mxu0 %v1192
  %v1332 = vpop.f32.mrb[0].mxu0
  %v1333 = vadd.f32 0.0, %v1332
  %v1334 = vpop.f32.mrb[0].mxu0
  %v1335 = vadd.f32 0.0, %v1334
  %1336 = vmatprep.mubr.f32.mxu0 0.0
  %1337 = vmatmul.mubr.f32.gmra.mrb[0].mxu0 %v1195
  %v1338 = vpop.f32.mrb[0].mxu0
  %v1339 = vadd.f32 0.0, %v1338
  %v1340 = vpop.f32.mrb[0].mxu0
  %v1341 = vadd.f32 0.0, %v1340
  %1342 = vmatprep.mubr.f32.mxu0 0.0
  %1343 = vmatmul.mubr.f32.gmra.mrb[0].mxu0 %v1198
  %v1344 = vpop.f32.mrb[0].mxu0
  %v1345 = vadd.f32 0.0, %v1344
  %v1346 = vpop.f32.mrb[0].mxu0
  %v1347 = vadd.f32 0.0, %v1346
  %1348 = vmatprep.mubr.f32.mxu0 0.0
  %1349 = vmatmul.mubr.f32.gmra.mrb[0].mxu0 %v1201
  %v1350 = vpop.f32.mrb[0].mxu0
  %v1351 = vadd.f32 0.0, %v1350
  %v1352 = vpop.f32.mrb[0].mxu0
  %v1353 = vadd.f32 0.0, %v1352
  %1354 = vmatprep.mubr.f32.mxu0 0.0
  %1355 = vmatmul.mubr.f32.gmra.mrb[0].mxu0 %v1204
  %v1356 = vpop.f32.mrb[0].mxu0
  %v1357 = vadd.f32 0.0, %v1356
  %v1358 = vpop.f32.mrb[0].mxu0
  %v1359 = vadd.f32 0.0, %v1358
  %1360 = vmatprep.mubr.f32.mxu0 0.0
  %1361 = vmatmul.mubr.f32.gmra.mrb[0].mxu0 %v1207
  %v1362 = vpop.f32.mrb[0].mxu0
  %v1363 = vadd.f32 0.0, %v1362
  %v1364 = vpop.f32.mrb[0].mxu0
  %v1365 = vadd.f32 0.0, %v1364
  %1366 = vmatprep.mubr.f32.mxu0 0.0
  %1367 = vmatmul.mubr.f32.gmra.mrb[0].mxu0 %v1210
  %v1368 = vpop.f32.mrb[0].mxu0
  %v1369 = vadd.f32 0.0, %v1368
  %v1370 = vpop.f32.mrb[0].mxu0
  %v1371 = vadd.f32 0.0, %v1370
  %1372 = vmatprep.mubr.f32.mxu0 0.0
  %1373 = vmatmul.mubr.f32.gmra.mrb[0].mxu0 %v1213
  %v1374 = vpop.f32.mrb[0].mxu0
  %v1375 = vadd.f32 0.0, %v1374
  %v1376 = vpop.f32.mrb[0].mxu0
  %v1377 = vadd.f32 0.0, %v1376
  %1378 = vmatprep.mubr.f32.mxu0 0.0
  %1379 = vmatmul.mubr.f32.gmra.mrb[0].mxu0 %v1216
  %v1380 = vpop.f32.mrb[0].mxu0
  %v1381 = vadd.f32 0.0, %v1380
  %v1382 = vpop.f32.mrb[0].mxu0
  %v1383 = vadd.f32 0.0, %v1382
  %1384 = vdwg.mxu0
  %v1385 = vadd.f32 %v1113, %v1291
  %v1386 = vadd.f32 %v1114, %v1293
  %v1387 = vadd.f32 %v1115, %v1297
  %v1388 = vadd.f32 %v1116, %v1299
  %v1389 = vadd.f32 %v1117, %v1303
  %v1390 = vadd.f32 %v1118, %v1305
  %v1391 = vadd.f32 %v1119, %v1309
  %v1392 = vadd.f32 %v1120, %v1311
  %v1393 = vadd.f32 %v1121, %v1315
  %v1394 = vadd.f32 %v1122, %v1317
  %v1395 = vadd.f32 %v1123, %v1321
  %v1396 = vadd.f32 %v1124, %v1323
  %v1397 = vadd.f32 %v1125, %v1327
  %v1398 = vadd.f32 %v1126, %v1329
  %v1399 = vadd.f32 %v1127, %v1333
  %v1400 = vadd.f32 %v1128, %v1335
  %v1401 = vadd.f32 %v1129, %v1339
  %v1402 = vadd.f32 %v1130, %v1341
  %v1403 = vadd.f32 %v1131, %v1345
  %v1404 = vadd.f32 %v1132, %v1347
  %v1405 = vadd.f32 %v1133, %v1351
  %v1406 = vadd.f32 %v1134, %v1353
  %v1407 = vadd.f32 %v1135, %v1357
  %v1408 = vadd.f32 %v1136, %v1359
  %v1409 = vadd.f32 %v1137, %v1363
  %v1410 = vadd.f32 %v1138, %v1365
  %v1411 = vadd.f32 %v1139, %v1369
  %v1412 = vadd.f32 %v1140, %v1371
  %v1413 = vadd.f32 %v1141, %v1375
  %v1414 = vadd.f32 %v1142, %v1377
  %v1415 = vadd.f32 %v1143, %v1381
  %v1416 = vadd.f32 %v1144, %v1383
  %1417 = vmatprep.subr.mxu0 %v72
  %1418 = vmatpush1.msra.mxu0 %v71
  %1419 = vmatprep.subr.mxu0 %v74
  %1420 = vmatpush1.msra.mxu0 %v73
  %1421 = vmatprep.subr.mxu0 %v76
  %1422 = vmatpush1.msra.mxu0 %v75
  %1423 = vmatprep.subr.mxu0 %v133
  %1424 = vmatpush1.msra.mxu0 %v130
  %1425 = vmatprep.subr.mxu0 0.0
  %1426 = vmatpush1.msra.mxu0 0.0
  %1427 = vmatprep.subr.mxu0 0.0
  %1428 = vmatpush1.msra.mxu0 0.0
  %1429 = vmatprep.subr.mxu0 0.0
  %1430 = vmatpush1.msra.mxu0 0.0
  %1431 = vmatprep.subr.mxu0 0.0
  %1432 = vmatpush1.msra.mxu0 0.0
  %1433 = vmatprep.subr.mxu0 0.0
  %1434 = vmatpush1.msra.mxu0 0.0
  %1435 = vmatprep.subr.mxu0 0.0
  %1436 = vmatpush1.msra.mxu0 0.0
  %1437 = vmatprep.subr.mxu0 0.0
  %1438 = vmatpush1.msra.mxu0 0.0
  %1439 = vmatprep.subr.mxu0 0.0
  %1440 = vmatpush1.msra.mxu0 0.0
  %1441 = vmatprep.subr.mxu0 0.0
  %1442 = vmatpush1.msra.mxu0 0.0
  %1443 = vmatprep.subr.mxu0 0.0
  %1444 = vmatpush1.msra.mxu0 0.0
  %1445 = vmatprep.subr.mxu0 0.0
  %1446 = vmatpush1.msra.mxu0 0.0
  %1447 = vmatprep.subr.mxu0 0.0
  %1448 = vmatpush1.msra.mxu0 0.0
  %1449 = vmatprep.subr.mxu0 0.0
  %1450 = vmatpush1.msra.mxu0 0.0
  %1451 = vmatprep.subr.mxu0 0.0
  %1452 = vmatpush1.msra.mxu0 0.0
  %1453 = vmatprep.subr.mxu0 0.0
  %1454 = vmatpush1.msra.mxu0 0.0
  %1455 = vmatprep.subr.mxu0 0.0
  %1456 = vmatpush1.msra.mxu0 0.0
  %1457 = vmatprep.subr.mxu0 0.0
  %1458 = vmatpush1.msra.mxu0 0.0
  %1459 = vmatprep.subr.mxu0 0.0
  %1460 = vmatpush1.msra.mxu0 0.0
  %1461 = vmatprep.subr.mxu0 0.0
  %1462 = vmatpush1.msra.mxu0 0.0
  %1463 = vmatprep.subr.mxu0 0.0
  %1464 = vmatpush1.msra.mxu0 0.0
  %1465 = vmatprep.subr.mxu0 0.0
  %1466 = vmatpush1.msra.mxu0 0.0
  %1467 = vmatprep.subr.mxu0 0.0
  %1468 = vmatpush1.msra.mxu0 0.0
  %1469 = vmatprep.subr.mxu0 0.0
  %1470 = vmatpush1.msra.mxu0 0.0
  %1471 = vmatprep.subr.mxu0 0.0
  %1472 = vmatpush1.msra.mxu0 0.0
  %1473 = vmatprep.subr.mxu0 0.0
  %1474 = vmatpush1.msra.mxu0 0.0
  %1475 = vmatprep.subr.mxu0 0.0
  %1476 = vmatpush1.msra.mxu0 0.0
  %1477 = vmatprep.subr.mxu0 0.0
  %1478 = vmatpush1.msra.mxu0 0.0
  %1479 = vmatprep.subr.mxu0 0.0
  %1480 = vmatpush1.msra.mxu0 0.0
  %1481 = vmatprep.mubr.f32.mxu0 0.0
  %1482 = vmatmul.mubr.f32.gmra.mrb[0].mxu0 %v355
  %v1483 = vpop.f32.mrb[0].mxu0
  %v1484 = vadd.f32 0.0, %v1483
  %v1485 = vpop.f32.mrb[0].mxu0
  %v1486 = vadd.f32 0.0, %v1485
  %1487 = vmatprep.mubr.f32.mxu0 0.0
  %1488 = vmatmul.mubr.f32.gmra.mrb[0].mxu0 %v358
  %v1489 = vpop.f32.mrb[0].mxu0
  %v1490 = vadd.f32 0.0, %v1489
  %v1491 = vpop.f32.mrb[0].mxu0
  %v1492 = vadd.f32 0.0, %v1491
  %1493 = vmatprep.mubr.f32.mxu0 0.0
  %1494 = vmatmul.mubr.f32.gmra.mrb[0].mxu0 %v361
  %v1495 = vpop.f32.mrb[0].mxu0
  %v1496 = vadd.f32 0.0, %v1495
  %v1497 = vpop.f32.mrb[0].mxu0
  %v1498 = vadd.f32 0.0, %v1497
  %1499 = vmatprep.mubr.f32.mxu0 0.0
  %1500 = vmatmul.mubr.f32.gmra.mrb[0].mxu0 %v364
  %v1501 = vpop.f32.mrb[0].mxu0
  %v1502 = vadd.f32 0.0, %v1501
  %v1503 = vpop.f32.mrb[0].mxu0
  %v1504 = vadd.f32 0.0, %v1503
  %1505 = vmatprep.mubr.f32.mxu0 0.0
  %1506 = vmatmul.mubr.f32.gmra.mrb[0].mxu0 %v367
  %v1507 = vpop.f32.mrb[0].mxu0
  %v1508 = vadd.f32 0.0, %v1507
  %v1509 = vpop.f32.mrb[0].mxu0
  %v1510 = vadd.f32 0.0, %v1509
  %1511 = vmatprep.mubr.f32.mxu0 0.0
  %1512 = vmatmul.mubr.f32.gmra.mrb[0].mxu0 %v370
  %v1513 = vpop.f32.mrb[0].mxu0
  %v1514 = vadd.f32 0.0, %v1513
  %v1515 = vpop.f32.mrb[0].mxu0
  %v1516 = vadd.f32 0.0, %v1515
  %1517 = vmatprep.mubr.f32.mxu0 0.0
  %1518 = vmatmul.mubr.f32.gmra.mrb[0].mxu0 %v373
  %v1519 = vpop.f32.mrb[0].mxu0
  %v1520 = vadd.f32 0.0, %v1519
  %v1521 = vpop.f32.mrb[0].mxu0
  %v1522 = vadd.f32 0.0, %v1521
  %1523 = vmatprep.mubr.f32.mxu0 0.0
  %1524 = vmatmul.mubr.f32.gmra.mrb[0].mxu0 %v376
  %v1525 = vpop.f32.mrb[0].mxu0
  %v1526 = vadd.f32 0.0, %v1525
  %v1527 = vpop.f32.mrb[0].mxu0
  %v1528 = vadd.f32 0.0, %v1527
  %1529 = vmatprep.mubr.f32.mxu0 0.0
  %1530 = vmatmul.mubr.f32.gmra.mrb[0].mxu0 %v379
  %v1531 = vpop.f32.mrb[0].mxu0
  %v1532 = vadd.f32 0.0, %v1531
  %v1533 = vpop.f32.mrb[0].mxu0
  %v1534 = vadd.f32 0.0, %v1533
  %1535 = vmatprep.mubr.f32.mxu0 0.0
  %1536 = vmatmul.mubr.f32.gmra.mrb[0].mxu0 %v382
  %v1537 = vpop.f32.mrb[0].mxu0
  %v1538 = vadd.f32 0.0, %v1537
  %v1539 = vpop.f32.mrb[0].mxu0
  %v1540 = vadd.f32 0.0, %v1539
  %1541 = vmatprep.mubr.f32.mxu0 0.0
  %1542 = vmatmul.mubr.f32.gmra.mrb[0].mxu0 %v385
  %v1543 = vpop.f32.mrb[0].mxu0
  %v1544 = vadd.f32 0.0, %v1543
  %v1545 = vpop.f32.mrb[0].mxu0
  %v1546 = vadd.f32 0.0, %v1545
  %1547 = vmatprep.mubr.f32.mxu0 0.0
  %1548 = vmatmul.mubr.f32.gmra.mrb[0].mxu0 %v388
  %v1549 = vpop.f32.mrb[0].mxu0
  %v1550 = vadd.f32 0.0, %v1549
  %v1551 = vpop.f32.mrb[0].mxu0
  %v1552 = vadd.f32 0.0, %v1551
  %1553 = vmatprep.mubr.f32.mxu0 0.0
  %1554 = vmatmul.mubr.f32.gmra.mrb[0].mxu0 %v391
  %v1555 = vpop.f32.mrb[0].mxu0
  %v1556 = vadd.f32 0.0, %v1555
  %v1557 = vpop.f32.mrb[0].mxu0
  %v1558 = vadd.f32 0.0, %v1557
  %1559 = vmatprep.mubr.f32.mxu0 0.0
  %1560 = vmatmul.mubr.f32.gmra.mrb[0].mxu0 %v394
  %v1561 = vpop.f32.mrb[0].mxu0
  %v1562 = vadd.f32 0.0, %v1561
  %v1563 = vpop.f32.mrb[0].mxu0
  %v1564 = vadd.f32 0.0, %v1563
  %1565 = vmatprep.mubr.f32.mxu0 0.0
  %1566 = vmatmul.mubr.f32.gmra.mrb[0].mxu0 %v397
  %v1567 = vpop.f32.mrb[0].mxu0
  %v1568 = vadd.f32 0.0, %v1567
  %v1569 = vpop.f32.mrb[0].mxu0
  %v1570 = vadd.f32 0.0, %v1569
  %1571 = vmatprep.mubr.f32.mxu0 0.0
  %1572 = vmatmul.mubr.f32.gmra.mrb[0].mxu0 %v400
  %v1573 = vpop.f32.mrb[0].mxu0
  %v1574 = vadd.f32 0.0, %v1573
  %v1575 = vpop.f32.mrb[0].mxu0
  %v1576 = vadd.f32 0.0, %v1575
  %1577 = vdwg.mxu0
  %v1578 = vadd.f32 %v53, %v1484
  %v1579 = vadd.f32 %v54, %v1486
  %v1580 = vadd.f32 %v53, %v1490
  %v1581 = vadd.f32 %v54, %v1492
  %v1582 = vadd.f32 %v53, %v1496
  %v1583 = vadd.f32 %v54, %v1498
  %v1584 = vadd.f32 %v53, %v1502
  %v1585 = vadd.f32 %v54, %v1504
  %v1586 = vadd.f32 %v53, %v1508
  %v1587 = vadd.f32 %v54, %v1510
  %v1588 = vadd.f32 %v53, %v1514
  %v1589 = vadd.f32 %v54, %v1516
  %v1590 = vadd.f32 %v53, %v1520
  %v1591 = vadd.f32 %v54, %v1522
  %v1592 = vadd.f32 %v53, %v1526
  %v1593 = vadd.f32 %v54, %v1528
  %v1594 = vadd.f32 %v53, %v1532
  %v1595 = vadd.f32 %v54, %v1534
  %v1596 = vadd.f32 %v53, %v1538
  %v1597 = vadd.f32 %v54, %v1540
  %v1598 = vadd.f32 %v53, %v1544
  %v1599 = vadd.f32 %v54, %v1546
  %v1600 = vadd.f32 %v53, %v1550
  %v1601 = vadd.f32 %v54, %v1552
  %v1602 = vadd.f32 %v53, %v1556
  %v1603 = vadd.f32 %v54, %v1558
  %v1604 = vadd.f32 %v53, %v1562
  %v1605 = vadd.f32 %v54, %v1564
  %v1606 = vadd.f32 %v53, %v1568
  %v1607 = vadd.f32 %v54, %v1570
  %v1608 = vadd.f32 %v53, %v1574
  %v1609 = vadd.f32 %v54, %v1576
  %1610 = vmatprep.subr.mxu0 %v347
  %1611 = vmatpush1.msra.mxu0 %v346
  %1612 = vmatprep.subr.mxu0 %v349
  %1613 = vmatpush1.msra.mxu0 %v348
  %1614 = vmatprep.subr.mxu0 %v351
  %1615 = vmatpush1.msra.mxu0 %v350
  %1616 = vmatprep.subr.mxu0 %v406
  %1617 = vmatpush1.msra.mxu0 %v403
  %1618 = vmatprep.subr.mxu0 0.0
  %1619 = vmatpush1.msra.mxu0 0.0
  %1620 = vmatprep.subr.mxu0 0.0
  %1621 = vmatpush1.msra.mxu0 0.0
  %1622 = vmatprep.subr.mxu0 0.0
  %1623 = vmatpush1.msra.mxu0 0.0
  %1624 = vmatprep.subr.mxu0 0.0
  %1625 = vmatpush1.msra.mxu0 0.0
  %1626 = vmatprep.subr.mxu0 0.0
  %1627 = vmatpush1.msra.mxu0 0.0
  %1628 = vmatprep.subr.mxu0 0.0
  %1629 = vmatpush1.msra.mxu0 0.0
  %1630 = vmatprep.subr.mxu0 0.0
  %1631 = vmatpush1.msra.mxu0 0.0
  %1632 = vmatprep.subr.mxu0 0.0
  %1633 = vmatpush1.msra.mxu0 0.0
  %1634 = vmatprep.subr.mxu0 0.0
  %1635 = vmatpush1.msra.mxu0 0.0
  %1636 = vmatprep.subr.mxu0 0.0
  %1637 = vmatpush1.msra.mxu0 0.0
  %1638 = vmatprep.subr.mxu0 0.0
  %1639 = vmatpush1.msra.mxu0 0.0
  %1640 = vmatprep.subr.mxu0 0.0
  %1641 = vmatpush1.msra.mxu0 0.0
  %1642 = vmatprep.subr.mxu0 0.0
  %1643 = vmatpush1.msra.mxu0 0.0
  %1644 = vmatprep.subr.mxu0 0.0
  %1645 = vmatpush1.msra.mxu0 0.0
  %1646 = vmatprep.subr.mxu0 0.0
  %1647 = vmatpush1.msra.mxu0 0.0
  %1648 = vmatprep.subr.mxu0 0.0
  %1649 = vmatpush1.msra.mxu0 0.0
  %1650 = vmatprep.subr.mxu0 0.0
  %1651 = vmatpush1.msra.mxu0 0.0
  %1652 = vmatprep.subr.mxu0 0.0
  %1653 = vmatpush1.msra.mxu0 0.0
  %1654 = vmatprep.subr.mxu0 0.0
  %1655 = vmatpush1.msra.mxu0 0.0
  %1656 = vmatprep.subr.mxu0 0.0
  %1657 = vmatpush1.msra.mxu0 0.0
  %1658 = vmatprep.subr.mxu0 0.0
  %1659 = vmatpush1.msra.mxu0 0.0
  %1660 = vmatprep.subr.mxu0 0.0
  %1661 = vmatpush1.msra.mxu0 0.0
  %1662 = vmatprep.subr.mxu0 0.0
  %1663 = vmatpush1.msra.mxu0 0.0
  %1664 = vmatprep.subr.mxu0 0.0
  %1665 = vmatpush1.msra.mxu0 0.0
  %1666 = vmatprep.subr.mxu0 0.0
  %1667 = vmatpush1.msra.mxu0 0.0
  %1668 = vmatprep.subr.mxu0 0.0
  %1669 = vmatpush1.msra.mxu0 0.0
  %1670 = vmatprep.subr.mxu0 0.0
  %1671 = vmatpush1.msra.mxu0 0.0
  %1672 = vmatprep.subr.mxu0 0.0
  %1673 = vmatpush1.msra.mxu0 0.0
  %1674 = vmatprep.mubr.f32.mxu0 0.0
  %1675 = vmatmul.mubr.f32.gmra.mrb[0].mxu0 %v627
  %v1676 = vpop.f32.mrb[0].mxu0
  %v1677 = vadd.f32 0.0, %v1676
  %v1678 = vpop.f32.mrb[0].mxu0
  %v1679 = vadd.f32 0.0, %v1678
  %1680 = vmatprep.mubr.f32.mxu0 0.0
  %1681 = vmatmul.mubr.f32.gmra.mrb[0].mxu0 %v630
  %v1682 = vpop.f32.mrb[0].mxu0
  %v1683 = vadd.f32 0.0, %v1682
  %v1684 = vpop.f32.mrb[0].mxu0
  %v1685 = vadd.f32 0.0, %v1684
  %1686 = vmatprep.mubr.f32.mxu0 0.0
  %1687 = vmatmul.mubr.f32.gmra.mrb[0].mxu0 %v633
  %v1688 = vpop.f32.mrb[0].mxu0
  %v1689 = vadd.f32 0.0, %v1688
  %v1690 = vpop.f32.mrb[0].mxu0
  %v1691 = vadd.f32 0.0, %v1690
  %1692 = vmatprep.mubr.f32.mxu0 0.0
  %1693 = vmatmul.mubr.f32.gmra.mrb[0].mxu0 %v636
  %v1694 = vpop.f32.mrb[0].mxu0
  %v1695 = vadd.f32 0.0, %v1694
  %v1696 = vpop.f32.mrb[0].mxu0
  %v1697 = vadd.f32 0.0, %v1696
  %1698 = vmatprep.mubr.f32.mxu0 0.0
  %1699 = vmatmul.mubr.f32.gmra.mrb[0].mxu0 %v639
  %v1700 = vpop.f32.mrb[0].mxu0
  %v1701 = vadd.f32 0.0, %v1700
  %v1702 = vpop.f32.mrb[0].mxu0
  %v1703 = vadd.f32 0.0, %v1702
  %1704 = vmatprep.mubr.f32.mxu0 0.0
  %1705 = vmatmul.mubr.f32.gmra.mrb[0].mxu0 %v642
  %v1706 = vpop.f32.mrb[0].mxu0
  %v1707 = vadd.f32 0.0, %v1706
  %v1708 = vpop.f32.mrb[0].mxu0
  %v1709 = vadd.f32 0.0, %v1708
  %1710 = vmatprep.mubr.f32.mxu0 0.0
  %1711 = vmatmul.mubr.f32.gmra.mrb[0].mxu0 %v645
  %v1712 = vpop.f32.mrb[0].mxu0
  %v1713 = vadd.f32 0.0, %v1712
  %v1714 = vpop.f32.mrb[0].mxu0
  %v1715 = vadd.f32 0.0, %v1714
  %1716 = vmatprep.mubr.f32.mxu0 0.0
  %1717 = vmatmul.mubr.f32.gmra.mrb[0].mxu0 %v648
  %v1718 = vpop.f32.mrb[0].mxu0
  %v1719 = vadd.f32 0.0, %v1718
  %v1720 = vpop.f32.mrb[0].mxu0
  %v1721 = vadd.f32 0.0, %v1720
  %1722 = vmatprep.mubr.f32.mxu0 0.0
  %1723 = vmatmul.mubr.f32.gmra.mrb[0].mxu0 %v651
  %v1724 = vpop.f32.mrb[0].mxu0
  %v1725 = vadd.f32 0.0, %v1724
  %v1726 = vpop.f32.mrb[0].mxu0
  %v1727 = vadd.f32 0.0, %v1726
  %1728 = vmatprep.mubr.f32.mxu0 0.0
  %1729 = vmatmul.mubr.f32.gmra.mrb[0].mxu0 %v654
  %v1730 = vpop.f32.mrb[0].mxu0
  %v1731 = vadd.f32 0.0, %v1730
  %v1732 = vpop.f32.mrb[0].mxu0
  %v1733 = vadd.f32 0.0, %v1732
  %1734 = vmatprep.mubr.f32.mxu0 0.0
  %1735 = vmatmul.mubr.f32.gmra.mrb[0].mxu0 %v657
  %v1736 = vpop.f32.mrb[0].mxu0
  %v1737 = vadd.f32 0.0, %v1736
  %v1738 = vpop.f32.mrb[0].mxu0
  %v1739 = vadd.f32 0.0, %v1738
  %1740 = vmatprep.mubr.f32.mxu0 0.0
  %1741 = vmatmul.mubr.f32.gmra.mrb[0].mxu0 %v660
  %v1742 = vpop.f32.mrb[0].mxu0
  %v1743 = vadd.f32 0.0, %v1742
  %v1744 = vpop.f32.mrb[0].mxu0
  %v1745 = vadd.f32 0.0, %v1744
  %1746 = vmatprep.mubr.f32.mxu0 0.0
  %1747 = vmatmul.mubr.f32.gmra.mrb[0].mxu0 %v663
  %v1748 = vpop.f32.mrb[0].mxu0
  %v1749 = vadd.f32 0.0, %v1748
  %v1750 = vpop.f32.mrb[0].mxu0
  %v1751 = vadd.f32 0.0, %v1750
  %1752 = vmatprep.mubr.f32.mxu0 0.0
  %1753 = vmatmul.mubr.f32.gmra.mrb[0].mxu0 %v666
  %v1754 = vpop.f32.mrb[0].mxu0
  %v1755 = vadd.f32 0.0, %v1754
  %v1756 = vpop.f32.mrb[0].mxu0
  %v1757 = vadd.f32 0.0, %v1756
  %1758 = vmatprep.mubr.f32.mxu0 0.0
  %1759 = vmatmul.mubr.f32.gmra.mrb[0].mxu0 %v669
  %v1760 = vpop.f32.mrb[0].mxu0
  %v1761 = vadd.f32 0.0, %v1760
  %v1762 = vpop.f32.mrb[0].mxu0
  %v1763 = vadd.f32 0.0, %v1762
  %1764 = vmatprep.mubr.f32.mxu0 0.0
  %1765 = vmatmul.mubr.f32.gmra.mrb[0].mxu0 %v672
  %v1766 = vpop.f32.mrb[0].mxu0
  %v1767 = vadd.f32 0.0, %v1766
  %v1768 = vpop.f32.mrb[0].mxu0
  %v1769 = vadd.f32 0.0, %v1768
  %1770 = vdwg.mxu0
  %v1771 = vadd.f32 %v1578, %v1677
  %v1772 = vadd.f32 %v1579, %v1679
  %v1773 = vadd.f32 %v1580, %v1683
  %v1774 = vadd.f32 %v1581, %v1685
  %v1775 = vadd.f32 %v1582, %v1689
  %v1776 = vadd.f32 %v1583, %v1691
  %v1777 = vadd.f32 %v1584, %v1695
  %v1778 = vadd.f32 %v1585, %v1697
  %v1779 = vadd.f32 %v1586, %v1701
  %v1780 = vadd.f32 %v1587, %v1703
  %v1781 = vadd.f32 %v1588, %v1707
  %v1782 = vadd.f32 %v1589, %v1709
  %v1783 = vadd.f32 %v1590, %v1713
  %v1784 = vadd.f32 %v1591, %v1715
  %v1785 = vadd.f32 %v1592, %v1719
  %v1786 = vadd.f32 %v1593, %v1721
  %v1787 = vadd.f32 %v1594, %v1725
  %v1788 = vadd.f32 %v1595, %v1727
  %v1789 = vadd.f32 %v1596, %v1731
  %v1790 = vadd.f32 %v1597, %v1733
  %v1791 = vadd.f32 %v1598, %v1737
  %v1792 = vadd.f32 %v1599, %v1739
  %v1793 = vadd.f32 %v1600, %v1743
  %v1794 = vadd.f32 %v1601, %v1745
  %v1795 = vadd.f32 %v1602, %v1749
  %v1796 = vadd.f32 %v1603, %v1751
  %v1797 = vadd.f32 %v1604, %v1755
  %v1798 = vadd.f32 %v1605, %v1757
  %v1799 = vadd.f32 %v1606, %v1761
  %v1800 = vadd.f32 %v1607, %v1763
  %v1801 = vadd.f32 %v1608, %v1767
  %v1802 = vadd.f32 %v1609, %v1769
  %1803 = vmatprep.subr.mxu0 %v619
  %1804 = vmatpush1.msra.mxu0 %v618
  %1805 = vmatprep.subr.mxu0 %v621
  %1806 = vmatpush1.msra.mxu0 %v620
  %1807 = vmatprep.subr.mxu0 %v623
  %1808 = vmatpush1.msra.mxu0 %v622
  %1809 = vmatprep.subr.mxu0 %v678
  %1810 = vmatpush1.msra.mxu0 %v675
  %1811 = vmatprep.subr.mxu0 0.0
  %1812 = vmatpush1.msra.mxu0 0.0
  %1813 = vmatprep.subr.mxu0 0.0
  %1814 = vmatpush1.msra.mxu0 0.0
  %1815 = vmatprep.subr.mxu0 0.0
  %1816 = vmatpush1.msra.mxu0 0.0
  %1817 = vmatprep.subr.mxu0 0.0
  %1818 = vmatpush1.msra.mxu0 0.0
  %1819 = vmatprep.subr.mxu0 0.0
  %1820 = vmatpush1.msra.mxu0 0.0
  %1821 = vmatprep.subr.mxu0 0.0
  %1822 = vmatpush1.msra.mxu0 0.0
  %1823 = vmatprep.subr.mxu0 0.0
  %1824 = vmatpush1.msra.mxu0 0.0
  %1825 = vmatprep.subr.mxu0 0.0
  %1826 = vmatpush1.msra.mxu0 0.0
  %1827 = vmatprep.subr.mxu0 0.0
  %1828 = vmatpush1.msra.mxu0 0.0
  %1829 = vmatprep.subr.mxu0 0.0
  %1830 = vmatpush1.msra.mxu0 0.0
  %1831 = vmatprep.subr.mxu0 0.0
  %1832 = vmatpush1.msra.mxu0 0.0
  %1833 = vmatprep.subr.mxu0 0.0
  %1834 = vmatpush1.msra.mxu0 0.0
  %1835 = vmatprep.subr.mxu0 0.0
  %1836 = vmatpush1.msra.mxu0 0.0
  %1837 = vmatprep.subr.mxu0 0.0
  %1838 = vmatpush1.msra.mxu0 0.0
  %1839 = vmatprep.subr.mxu0 0.0
  %1840 = vmatpush1.msra.mxu0 0.0
  %1841 = vmatprep.subr.mxu0 0.0
  %1842 = vmatpush1.msra.mxu0 0.0
  %1843 = vmatprep.subr.mxu0 0.0
  %1844 = vmatpush1.msra.mxu0 0.0
  %1845 = vmatprep.subr.mxu0 0.0
  %1846 = vmatpush1.msra.mxu0 0.0
  %1847 = vmatprep.subr.mxu0 0.0
  %1848 = vmatpush1.msra.mxu0 0.0
  %1849 = vmatprep.subr.mxu0 0.0
  %1850 = vmatpush1.msra.mxu0 0.0
  %1851 = vmatprep.subr.mxu0 0.0
  %1852 = vmatpush1.msra.mxu0 0.0
  %1853 = vmatprep.subr.mxu0 0.0
  %1854 = vmatpush1.msra.mxu0 0.0
  %1855 = vmatprep.subr.mxu0 0.0
  %1856 = vmatpush1.msra.mxu0 0.0
  %1857 = vmatprep.subr.mxu0 0.0
  %1858 = vmatpush1.msra.mxu0 0.0
  %1859 = vmatprep.subr.mxu0 0.0
  %1860 = vmatpush1.msra.mxu0 0.0
  %1861 = vmatprep.subr.mxu0 0.0
  %1862 = vmatpush1.msra.mxu0 0.0
  %1863 = vmatprep.subr.mxu0 0.0
  %1864 = vmatpush1.msra.mxu0 0.0
  %1865 = vmatprep.subr.mxu0 0.0
  %1866 = vmatpush1.msra.mxu0 0.0
  %1867 = vmatprep.mubr.f32.mxu0 0.0
  %1868 = vmatmul.mubr.f32.gmra.mrb[0].mxu0 %v899
  %v1869 = vpop.f32.mrb[0].mxu0
  %v1870 = vadd.f32 0.0, %v1869
  %v1871 = vpop.f32.mrb[0].mxu0
  %v1872 = vadd.f32 0.0, %v1871
  %1873 = vmatprep.mubr.f32.mxu0 0.0
  %1874 = vmatmul.mubr.f32.gmra.mrb[0].mxu0 %v902
  %v1875 = vpop.f32.mrb[0].mxu0
  %v1876 = vadd.f32 0.0, %v1875
  %v1877 = vpop.f32.mrb[0].mxu0
  %v1878 = vadd.f32 0.0, %v1877
  %1879 = vmatprep.mubr.f32.mxu0 0.0
  %1880 = vmatmul.mubr.f32.gmra.mrb[0].mxu0 %v905
  %v1881 = vpop.f32.mrb[0].mxu0
  %v1882 = vadd.f32 0.0, %v1881
  %v1883 = vpop.f32.mrb[0].mxu0
  %v1884 = vadd.f32 0.0, %v1883
  %1885 = vmatprep.mubr.f32.mxu0 0.0
  %1886 = vmatmul.mubr.f32.gmra.mrb[0].mxu0 %v908
  %v1887 = vpop.f32.mrb[0].mxu0
  %v1888 = vadd.f32 0.0, %v1887
  %v1889 = vpop.f32.mrb[0].mxu0
  %v1890 = vadd.f32 0.0, %v1889
  %1891 = vmatprep.mubr.f32.mxu0 0.0
  %1892 = vmatmul.mubr.f32.gmra.mrb[0].mxu0 %v911
  %v1893 = vpop.f32.mrb[0].mxu0
  %v1894 = vadd.f32 0.0, %v1893
  %v1895 = vpop.f32.mrb[0].mxu0
  %v1896 = vadd.f32 0.0, %v1895
  %1897 = vmatprep.mubr.f32.mxu0 0.0
  %1898 = vmatmul.mubr.f32.gmra.mrb[0].mxu0 %v914
  %v1899 = vpop.f32.mrb[0].mxu0
  %v1900 = vadd.f32 0.0, %v1899
  %v1901 = vpop.f32.mrb[0].mxu0
  %v1902 = vadd.f32 0.0, %v1901
  %1903 = vmatprep.mubr.f32.mxu0 0.0
  %1904 = vmatmul.mubr.f32.gmra.mrb[0].mxu0 %v917
  %v1905 = vpop.f32.mrb[0].mxu0
  %v1906 = vadd.f32 0.0, %v1905
  %v1907 = vpop.f32.mrb[0].mxu0
  %v1908 = vadd.f32 0.0, %v1907
  %1909 = vmatprep.mubr.f32.mxu0 0.0
  %1910 = vmatmul.mubr.f32.gmra.mrb[0].mxu0 %v920
  %v1911 = vpop.f32.mrb[0].mxu0
  %v1912 = vadd.f32 0.0, %v1911
  %v1913 = vpop.f32.mrb[0].mxu0
  %v1914 = vadd.f32 0.0, %v1913
  %1915 = vmatprep.mubr.f32.mxu0 0.0
  %1916 = vmatmul.mubr.f32.gmra.mrb[0].mxu0 %v923
  %v1917 = vpop.f32.mrb[0].mxu0
  %v1918 = vadd.f32 0.0, %v1917
  %v1919 = vpop.f32.mrb[0].mxu0
  %v1920 = vadd.f32 0.0, %v1919
  %1921 = vmatprep.mubr.f32.mxu0 0.0
  %1922 = vmatmul.mubr.f32.gmra.mrb[0].mxu0 %v926
  %v1923 = vpop.f32.mrb[0].mxu0
  %v1924 = vadd.f32 0.0, %v1923
  %v1925 = vpop.f32.mrb[0].mxu0
  %v1926 = vadd.f32 0.0, %v1925
  %1927 = vmatprep.mubr.f32.mxu0 0.0
  %1928 = vmatmul.mubr.f32.gmra.mrb[0].mxu0 %v929
  %v1929 = vpop.f32.mrb[0].mxu0
  %v1930 = vadd.f32 0.0, %v1929
  %v1931 = vpop.f32.mrb[0].mxu0
  %v1932 = vadd.f32 0.0, %v1931
  %1933 = vmatprep.mubr.f32.mxu0 0.0
  %1934 = vmatmul.mubr.f32.gmra.mrb[0].mxu0 %v932
  %v1935 = vpop.f32.mrb[0].mxu0
  %v1936 = vadd.f32 0.0, %v1935
  %v1937 = vpop.f32.mrb[0].mxu0
  %v1938 = vadd.f32 0.0, %v1937
  %1939 = vmatprep.mubr.f32.mxu0 0.0
  %1940 = vmatmul.mubr.f32.gmra.mrb[0].mxu0 %v935
  %v1941 = vpop.f32.mrb[0].mxu0
  %v1942 = vadd.f32 0.0, %v1941
  %v1943 = vpop.f32.mrb[0].mxu0
  %v1944 = vadd.f32 0.0, %v1943
  %1945 = vmatprep.mubr.f32.mxu0 0.0
  %1946 = vmatmul.mubr.f32.gmra.mrb[0].mxu0 %v938
  %v1947 = vpop.f32.mrb[0].mxu0
  %v1948 = vadd.f32 0.0, %v1947
  %v1949 = vpop.f32.mrb[0].mxu0
  %v1950 = vadd.f32 0.0, %v1949
  %1951 = vmatprep.mubr.f32.mxu0 0.0
  %1952 = vmatmul.mubr.f32.gmra.mrb[0].mxu0 %v941
  %v1953 = vpop.f32.mrb[0].mxu0
  %v1954 = vadd.f32 0.0, %v1953
  %v1955 = vpop.f32.mrb[0].mxu0
  %v1956 = vadd.f32 0.0, %v1955
  %1957 = vmatprep.mubr.f32.mxu0 0.0
  %1958 = vmatmul.mubr.f32.gmra.mrb[0].mxu0 %v944
  %v1959 = vpop.f32.mrb[0].mxu0
  %v1960 = vadd.f32 0.0, %v1959
  %v1961 = vpop.f32.mrb[0].mxu0
  %v1962 = vadd.f32 0.0, %v1961
  %1963 = vdwg.mxu0
  %v1964 = vadd.f32 %v1771, %v1870
  %v1965 = vadd.f32 %v1772, %v1872
  %v1966 = vadd.f32 %v1773, %v1876
  %v1967 = vadd.f32 %v1774, %v1878
  %v1968 = vadd.f32 %v1775, %v1882
  %v1969 = vadd.f32 %v1776, %v1884
  %v1970 = vadd.f32 %v1777, %v1888
  %v1971 = vadd.f32 %v1778, %v1890
  %v1972 = vadd.f32 %v1779, %v1894
  %v1973 = vadd.f32 %v1780, %v1896
  %v1974 = vadd.f32 %v1781, %v1900
  %v1975 = vadd.f32 %v1782, %v1902
  %v1976 = vadd.f32 %v1783, %v1906
  %v1977 = vadd.f32 %v1784, %v1908
  %v1978 = vadd.f32 %v1785, %v1912
  %v1979 = vadd.f32 %v1786, %v1914
  %v1980 = vadd.f32 %v1787, %v1918
  %v1981 = vadd.f32 %v1788, %v1920
  %v1982 = vadd.f32 %v1789, %v1924
  %v1983 = vadd.f32 %v1790, %v1926
  %v1984 = vadd.f32 %v1791, %v1930
  %v1985 = vadd.f32 %v1792, %v1932
  %v1986 = vadd.f32 %v1793, %v1936
  %v1987 = vadd.f32 %v1794, %v1938
  %v1988 = vadd.f32 %v1795, %v1942
  %v1989 = vadd.f32 %v1796, %v1944
  %v1990 = vadd.f32 %v1797, %v1948
  %v1991 = vadd.f32 %v1798, %v1950
  %v1992 = vadd.f32 %v1799, %v1954
  %v1993 = vadd.f32 %v1800, %v1956
  %v1994 = vadd.f32 %v1801, %v1960
  %v1995 = vadd.f32 %v1802, %v1962
  %1996 = vmatprep.subr.mxu0 %v891
  %1997 = vmatpush1.msra.mxu0 %v890
  %1998 = vmatprep.subr.mxu0 %v893
  %1999 = vmatpush1.msra.mxu0 %v892
  %2000 = vmatprep.subr.mxu0 %v895
  %2001 = vmatpush1.msra.mxu0 %v894
  %2002 = vmatprep.subr.mxu0 %v950
  %2003 = vmatpush1.msra.mxu0 %v947
  %2004 = vmatprep.subr.mxu0 0.0
  %2005 = vmatpush1.msra.mxu0 0.0
  %2006 = vmatprep.subr.mxu0 0.0
  %2007 = vmatpush1.msra.mxu0 0.0
  %2008 = vmatprep.subr.mxu0 0.0
  %2009 = vmatpush1.msra.mxu0 0.0
  %2010 = vmatprep.subr.mxu0 0.0
  %2011 = vmatpush1.msra.mxu0 0.0
  %2012 = vmatprep.subr.mxu0 0.0
  %2013 = vmatpush1.msra.mxu0 0.0
  %2014 = vmatprep.subr.mxu0 0.0
  %2015 = vmatpush1.msra.mxu0 0.0
  %2016 = vmatprep.subr.mxu0 0.0
  %2017 = vmatpush1.msra.mxu0 0.0
  %2018 = vmatprep.subr.mxu0 0.0
  %2019 = vmatpush1.msra.mxu0 0.0
  %2020 = vmatprep.subr.mxu0 0.0
  %2021 = vmatpush1.msra.mxu0 0.0
  %2022 = vmatprep.subr.mxu0 0.0
  %2023 = vmatpush1.msra.mxu0 0.0
  %2024 = vmatprep.subr.mxu0 0.0
  %2025 = vmatpush1.msra.mxu0 0.0
  %2026 = vmatprep.subr.mxu0 0.0
  %2027 = vmatpush1.msra.mxu0 0.0
  %2028 = vmatprep.subr.mxu0 0.0
  %2029 = vmatpush1.msra.mxu0 0.0
  %2030 = vmatprep.subr.mxu0 0.0
  %2031 = vmatpush1.msra.mxu0 0.0
  %2032 = vmatprep.subr.mxu0 0.0
  %2033 = vmatpush1.msra.mxu0 0.0
  %2034 = vmatprep.subr.mxu0 0.0
  %2035 = vmatpush1.msra.mxu0 0.0
  %2036 = vmatprep.subr.mxu0 0.0
  %2037 = vmatpush1.msra.mxu0 0.0
  %2038 = vmatprep.subr.mxu0 0.0
  %2039 = vmatpush1.msra.mxu0 0.0
  %2040 = vmatprep.subr.mxu0 0.0
  %2041 = vmatpush1.msra.mxu0 0.0
  %2042 = vmatprep.subr.mxu0 0.0
  %2043 = vmatpush1.msra.mxu0 0.0
  %2044 = vmatprep.subr.mxu0 0.0
  %2045 = vmatpush1.msra.mxu0 0.0
  %2046 = vmatprep.subr.mxu0 0.0
  %2047 = vmatpush1.msra.mxu0 0.0
  %2048 = vmatprep.subr.mxu0 0.0
  %2049 = vmatpush1.msra.mxu0 0.0
  %2050 = vmatprep.subr.mxu0 0.0
  %2051 = vmatpush1.msra.mxu0 0.0
  %2052 = vmatprep.subr.mxu0 0.0
  %2053 = vmatpush1.msra.mxu0 0.0
  %2054 = vmatprep.subr.mxu0 0.0
  %2055 = vmatpush1.msra.mxu0 0.0
  %2056 = vmatprep.subr.mxu0 0.0
  %2057 = vmatpush1.msra.mxu0 0.0
  %2058 = vmatprep.subr.mxu0 0.0
  %2059 = vmatpush1.msra.mxu0 0.0
  %2060 = vmatprep.mubr.f32.mxu0 0.0
  %2061 = vmatmul.mubr.f32.gmra.mrb[0].mxu0 %v1171
  %v2062 = vpop.f32.mrb[0].mxu0
  %v2063 = vadd.f32 0.0, %v2062
  %v2064 = vpop.f32.mrb[0].mxu0
  %v2065 = vadd.f32 0.0, %v2064
  %2066 = vmatprep.mubr.f32.mxu0 0.0
  %2067 = vmatmul.mubr.f32.gmra.mrb[0].mxu0 %v1174
  %v2068 = vpop.f32.mrb[0].mxu0
  %v2069 = vadd.f32 0.0, %v2068
  %v2070 = vpop.f32.mrb[0].mxu0
  %v2071 = vadd.f32 0.0, %v2070
  %2072 = vmatprep.mubr.f32.mxu0 0.0
  %2073 = vmatmul.mubr.f32.gmra.mrb[0].mxu0 %v1177
  %v2074 = vpop.f32.mrb[0].mxu0
  %v2075 = vadd.f32 0.0, %v2074
  %v2076 = vpop.f32.mrb[0].mxu0
  %v2077 = vadd.f32 0.0, %v2076
  %2078 = vmatprep.mubr.f32.mxu0 0.0
  %2079 = vmatmul.mubr.f32.gmra.mrb[0].mxu0 %v1180
  %v2080 = vpop.f32.mrb[0].mxu0
  %v2081 = vadd.f32 0.0, %v2080
  %v2082 = vpop.f32.mrb[0].mxu0
  %v2083 = vadd.f32 0.0, %v2082
  %2084 = vmatprep.mubr.f32.mxu0 0.0
  %2085 = vmatmul.mubr.f32.gmra.mrb[0].mxu0 %v1183
  %v2086 = vpop.f32.mrb[0].mxu0
  %v2087 = vadd.f32 0.0, %v2086
  %v2088 = vpop.f32.mrb[0].mxu0
  %v2089 = vadd.f32 0.0, %v2088
  %2090 = vmatprep.mubr.f32.mxu0 0.0
  %2091 = vmatmul.mubr.f32.gmra.mrb[0].mxu0 %v1186
  %v2092 = vpop.f32.mrb[0].mxu0
  %v2093 = vadd.f32 0.0, %v2092
  %v2094 = vpop.f32.mrb[0].mxu0
  %v2095 = vadd.f32 0.0, %v2094
  %2096 = vmatprep.mubr.f32.mxu0 0.0
  %2097 = vmatmul.mubr.f32.gmra.mrb[0].mxu0 %v1189
  %v2098 = vpop.f32.mrb[0].mxu0
  %v2099 = vadd.f32 0.0, %v2098
  %v2100 = vpop.f32.mrb[0].mxu0
  %v2101 = vadd.f32 0.0, %v2100
  %2102 = vmatprep.mubr.f32.mxu0 0.0
  %2103 = vmatmul.mubr.f32.gmra.mrb[0].mxu0 %v1192
  %v2104 = vpop.f32.mrb[0].mxu0
  %v2105 = vadd.f32 0.0, %v2104
  %v2106 = vpop.f32.mrb[0].mxu0
  %v2107 = vadd.f32 0.0, %v2106
  %2108 = vmatprep.mubr.f32.mxu0 0.0
  %2109 = vmatmul.mubr.f32.gmra.mrb[0].mxu0 %v1195
  %v2110 = vpop.f32.mrb[0].mxu0
  %v2111 = vadd.f32 0.0, %v2110
  %v2112 = vpop.f32.mrb[0].mxu0
  %v2113 = vadd.f32 0.0, %v2112
  %2114 = vmatprep.mubr.f32.mxu0 0.0
  %2115 = vmatmul.mubr.f32.gmra.mrb[0].mxu0 %v1198
  %v2116 = vpop.f32.mrb[0].mxu0
  %v2117 = vadd.f32 0.0, %v2116
  %v2118 = vpop.f32.mrb[0].mxu0
  %v2119 = vadd.f32 0.0, %v2118
  %2120 = vmatprep.mubr.f32.mxu0 0.0
  %2121 = vmatmul.mubr.f32.gmra.mrb[0].mxu0 %v1201
  %v2122 = vpop.f32.mrb[0].mxu0
  %v2123 = vadd.f32 0.0, %v2122
  %v2124 = vpop.f32.mrb[0].mxu0
  %v2125 = vadd.f32 0.0, %v2124
  %2126 = vmatprep.mubr.f32.mxu0 0.0
  %2127 = vmatmul.mubr.f32.gmra.mrb[0].mxu0 %v1204
  %v2128 = vpop.f32.mrb[0].mxu0
  %v2129 = vadd.f32 0.0, %v2128
  %v2130 = vpop.f32.mrb[0].mxu0
  %v2131 = vadd.f32 0.0, %v2130
  %2132 = vmatprep.mubr.f32.mxu0 0.0
  %2133 = vmatmul.mubr.f32.gmra.mrb[0].mxu0 %v1207
  %v2134 = vpop.f32.mrb[0].mxu0
  %v2135 = vadd.f32 0.0, %v2134
  %v2136 = vpop.f32.mrb[0].mxu0
  %v2137 = vadd.f32 0.0, %v2136
  %2138 = vmatprep.mubr.f32.mxu0 0.0
  %2139 = vmatmul.mubr.f32.gmra.mrb[0].mxu0 %v1210
  %v2140 = vpop.f32.mrb[0].mxu0
  %v2141 = vadd.f32 0.0, %v2140
  %v2142 = vpop.f32.mrb[0].mxu0
  %v2143 = vadd.f32 0.0, %v2142
  %2144 = vmatprep.mubr.f32.mxu0 0.0
  %2145 = vmatmul.mubr.f32.gmra.mrb[0].mxu0 %v1213
  %v2146 = vpop.f32.mrb[0].mxu0
  %v2147 = vadd.f32 0.0, %v2146
  %v2148 = vpop.f32.mrb[0].mxu0
  %v2149 = vadd.f32 0.0, %v2148
  %2150 = vmatprep.mubr.f32.mxu0 0.0
  %2151 = vmatmul.mubr.f32.gmra.mrb[0].mxu0 %v1216
  %v2152 = vpop.f32.mrb[0].mxu0
  %v2153 = vadd.f32 0.0, %v2152
  %v2154 = vpop.f32.mrb[0].mxu0
  %v2155 = vadd.f32 0.0, %v2154
  %2156 = vdwg.mxu0
  %v2157 = vadd.f32 %v1964, %v2063
  %v2158 = vadd.f32 %v1965, %v2065
  %v2159 = vadd.f32 %v1966, %v2069
  %v2160 = vadd.f32 %v1967, %v2071
  %v2161 = vadd.f32 %v1968, %v2075
  %v2162 = vadd.f32 %v1969, %v2077
  %v2163 = vadd.f32 %v1970, %v2081
  %v2164 = vadd.f32 %v1971, %v2083
  %v2165 = vadd.f32 %v1972, %v2087
  %v2166 = vadd.f32 %v1973, %v2089
  %v2167 = vadd.f32 %v1974, %v2093
  %v2168 = vadd.f32 %v1975, %v2095
  %v2169 = vadd.f32 %v1976, %v2099
  %v2170 = vadd.f32 %v1977, %v2101
  %v2171 = vadd.f32 %v1978, %v2105
  %v2172 = vadd.f32 %v1979, %v2107
  %v2173 = vadd.f32 %v1980, %v2111
  %v2174 = vadd.f32 %v1981, %v2113
  %v2175 = vadd.f32 %v1982, %v2117
  %v2176 = vadd.f32 %v1983, %v2119
  %v2177 = vadd.f32 %v1984, %v2123
  %v2178 = vadd.f32 %v1985, %v2125
  %v2179 = vadd.f32 %v1986, %v2129
  %v2180 = vadd.f32 %v1987, %v2131
  %v2181 = vadd.f32 %v1988, %v2135
  %v2182 = vadd.f32 %v1989, %v2137
  %v2183 = vadd.f32 %v1990, %v2141
  %v2184 = vadd.f32 %v1991, %v2143
  %v2185 = vadd.f32 %v1992, %v2147
  %v2186 = vadd.f32 %v1993, %v2149
  %v2187 = vadd.f32 %v1994, %v2153
  %v2188 = vadd.f32 %v1995, %v2155
  %v2189 = vld [vmem:[%s328 + $0x2] sm:$0xff]
  %v2190 = vld [vmem:[%s328 + $0xa] sm:$0xff]
  %v2191 = vld [vmem:[%s328 + $0x32] sm:$0xff]
  %v2192 = vld [vmem:[%s328 + $0x3a] sm:$0xff]
  %v2193 = vld [vmem:[%s328 + $0x62] sm:$0xff]
  %v2194 = vld [vmem:[%s328 + $0x6a] sm:$0xff]
  %v2195 = vld [vmem:[%s328 + $0x92] sm:$0xff]
  %v2196 = vld [vmem:[%s328 + $0x9a] sm:$0xff]
  %v2197 = vld [vmem:[%s328 + $0xc2] sm:$0xff]
  %v2198 = vld [vmem:[%s328 + $0xca] sm:$0xff]
  %v2199 = vld [vmem:[%s328 + $0xf2] sm:$0xff]
  %v2200 = vld [vmem:[%s328 + $0xfa] sm:$0xff]
  %v2201 = vld [vmem:[%s328 + $0x122] sm:$0xff]
  %v2202 = vld [vmem:[%s328 + $0x12a] sm:$0xff]
  %v2203 = vld [vmem:[%s328 + $0x152] sm:$0xff]
  %v2204 = vld [vmem:[%s328 + $0x15a] sm:$0xff]
  %v2206 = vsel %vm79, %v2189, 0
  %v2209 = vsel %vm79, %v2190, 0
  %v2212 = vsel %vm79, %v2191, 0
  %v2215 = vsel %vm79, %v2192, 0
  %v2218 = vsel %vm79, %v2193, 0
  %v2221 = vsel %vm79, %v2194, 0
  %v2224 = vsel %vm79, %v2195, 0
  %v2227 = vsel %vm79, %v2196, 0
  %v2230 = vsel %vm79, %v2197, 0
  %v2233 = vsel %vm79, %v2198, 0
  %v2236 = vsel %vm79, %v2199, 0
  %v2239 = vsel %vm79, %v2200, 0
  %v2242 = vsel %vm79, %v2201, 0
  %v2245 = vsel %vm79, %v2202, 0
  %v2248 = vsel %vm79, %v2203, 0
  %v2251 = vsel %vm79, %v2204, 0
  %2253 = vmatprep.subr.mxu0 %v1163
  %2254 = vmatpush1.msra.mxu0 %v1162
  %2255 = vmatprep.subr.mxu0 %v1165
  %2256 = vmatpush1.msra.mxu0 %v1164
  %2257 = vmatprep.subr.mxu0 %v1167
  %2258 = vmatpush1.msra.mxu0 %v1166
  %2259 = vmatprep.subr.mxu0 %v1222
  %2260 = vmatpush1.msra.mxu0 %v1219
  %2261 = vmatprep.subr.mxu0 0.0
  %2262 = vmatpush1.msra.mxu0 0.0
  %2263 = vmatprep.subr.mxu0 0.0
  %2264 = vmatpush1.msra.mxu0 0.0
  %2265 = vmatprep.subr.mxu0 0.0
  %2266 = vmatpush1.msra.mxu0 0.0
  %2267 = vmatprep.subr.mxu0 0.0
  %2268 = vmatpush1.msra.mxu0 0.0
  %2269 = vmatprep.subr.mxu0 0.0
  %2270 = vmatpush1.msra.mxu0 0.0
  %2271 = vmatprep.subr.mxu0 0.0
  %2272 = vmatpush1.msra.mxu0 0.0
  %2273 = vmatprep.subr.mxu0 0.0
  %2274 = vmatpush1.msra.mxu0 0.0
  %2275 = vmatprep.subr.mxu0 0.0
  %2276 = vmatpush1.msra.mxu0 0.0
  %2277 = vmatprep.subr.mxu0 0.0
  %2278 = vmatpush1.msra.mxu0 0.0
  %2279 = vmatprep.subr.mxu0 0.0
  %2280 = vmatpush1.msra.mxu0 0.0
  %2281 = vmatprep.subr.mxu0 0.0
  %2282 = vmatpush1.msra.mxu0 0.0
  %2283 = vmatprep.subr.mxu0 0.0
  %2284 = vmatpush1.msra.mxu0 0.0
  %2285 = vmatprep.subr.mxu0 0.0
  %2286 = vmatpush1.msra.mxu0 0.0
  %2287 = vmatprep.subr.mxu0 0.0
  %2288 = vmatpush1.msra.mxu0 0.0
  %2289 = vmatprep.subr.mxu0 0.0
  %2290 = vmatpush1.msra.mxu0 0.0
  %2291 = vmatprep.subr.mxu0 0.0
  %2292 = vmatpush1.msra.mxu0 0.0
  %2293 = vmatprep.subr.mxu0 0.0
  %2294 = vmatpush1.msra.mxu0 0.0
  %2295 = vmatprep.subr.mxu0 0.0
  %2296 = vmatpush1.msra.mxu0 0.0
  %2297 = vmatprep.subr.mxu0 0.0
  %2298 = vmatpush1.msra.mxu0 0.0
  %2299 = vmatprep.subr.mxu0 0.0
  %2300 = vmatpush1.msra.mxu0 0.0
  %2301 = vmatprep.subr.mxu0 0.0
  %2302 = vmatpush1.msra.mxu0 0.0
  %2303 = vmatprep.subr.mxu0 0.0
  %2304 = vmatpush1.msra.mxu0 0.0
  %2305 = vmatprep.subr.mxu0 0.0
  %2306 = vmatpush1.msra.mxu0 0.0
  %2307 = vmatprep.subr.mxu0 0.0
  %2308 = vmatpush1.msra.mxu0 0.0
  %2309 = vmatprep.subr.mxu0 0.0
  %2310 = vmatpush1.msra.mxu0 0.0
  %2311 = vmatprep.subr.mxu0 0.0
  %2312 = vmatpush1.msra.mxu0 0.0
  %2313 = vmatprep.subr.mxu0 0.0
  %2314 = vmatpush1.msra.mxu0 0.0
  %2315 = vmatprep.subr.mxu0 0.0
  %2316 = vmatpush1.msra.mxu0 0.0
  %2317 = vmatprep.mubr.f32.mxu0 0.0
  %2318 = vmatmul.mubr.f32.gmra.mrb[0].mxu0 %v2206
  %v2319 = vpop.f32.mrb[0].mxu0
  %v2320 = vadd.f32 0.0, %v2319
  %v2321 = vpop.f32.mrb[0].mxu0
  %v2322 = vadd.f32 0.0, %v2321
  %2323 = vmatprep.mubr.f32.mxu0 0.0
  %2324 = vmatmul.mubr.f32.gmra.mrb[0].mxu0 %v2209
  %v2325 = vpop.f32.mrb[0].mxu0
  %v2326 = vadd.f32 0.0, %v2325
  %v2327 = vpop.f32.mrb[0].mxu0
  %v2328 = vadd.f32 0.0, %v2327
  %2329 = vmatprep.mubr.f32.mxu0 0.0
  %2330 = vmatmul.mubr.f32.gmra.mrb[0].mxu0 %v2212
  %v2331 = vpop.f32.mrb[0].mxu0
  %v2332 = vadd.f32 0.0, %v2331
  %v2333 = vpop.f32.mrb[0].mxu0
  %v2334 = vadd.f32 0.0, %v2333
  %2335 = vmatprep.mubr.f32.mxu0 0.0
  %2336 = vmatmul.mubr.f32.gmra.mrb[0].mxu0 %v2215
  %v2337 = vpop.f32.mrb[0].mxu0
  %v2338 = vadd.f32 0.0, %v2337
  %v2339 = vpop.f32.mrb[0].mxu0
  %v2340 = vadd.f32 0.0, %v2339
  %2341 = vmatprep.mubr.f32.mxu0 0.0
  %2342 = vmatmul.mubr.f32.gmra.mrb[0].mxu0 %v2218
  %v2343 = vpop.f32.mrb[0].mxu0
  %v2344 = vadd.f32 0.0, %v2343
  %v2345 = vpop.f32.mrb[0].mxu0
  %v2346 = vadd.f32 0.0, %v2345
  %2347 = vmatprep.mubr.f32.mxu0 0.0
  %2348 = vmatmul.mubr.f32.gmra.mrb[0].mxu0 %v2221
  %v2349 = vpop.f32.mrb[0].mxu0
  %v2350 = vadd.f32 0.0, %v2349
  %v2351 = vpop.f32.mrb[0].mxu0
  %v2352 = vadd.f32 0.0, %v2351
  %2353 = vmatprep.mubr.f32.mxu0 0.0
  %2354 = vmatmul.mubr.f32.gmra.mrb[0].mxu0 %v2224
  %v2355 = vpop.f32.mrb[0].mxu0
  %v2356 = vadd.f32 0.0, %v2355
  %v2357 = vpop.f32.mrb[0].mxu0
  %v2358 = vadd.f32 0.0, %v2357
  %2359 = vmatprep.mubr.f32.mxu0 0.0
  %2360 = vmatmul.mubr.f32.gmra.mrb[0].mxu0 %v2227
  %v2361 = vpop.f32.mrb[0].mxu0
  %v2362 = vadd.f32 0.0, %v2361
  %v2363 = vpop.f32.mrb[0].mxu0
  %v2364 = vadd.f32 0.0, %v2363
  %2365 = vmatprep.mubr.f32.mxu0 0.0
  %2366 = vmatmul.mubr.f32.gmra.mrb[0].mxu0 %v2230
  %v2367 = vpop.f32.mrb[0].mxu0
  %v2368 = vadd.f32 0.0, %v2367
  %v2369 = vpop.f32.mrb[0].mxu0
  %v2370 = vadd.f32 0.0, %v2369
  %2371 = vmatprep.mubr.f32.mxu0 0.0
  %2372 = vmatmul.mubr.f32.gmra.mrb[0].mxu0 %v2233
  %v2373 = vpop.f32.mrb[0].mxu0
  %v2374 = vadd.f32 0.0, %v2373
  %v2375 = vpop.f32.mrb[0].mxu0
  %v2376 = vadd.f32 0.0, %v2375
  %2377 = vmatprep.mubr.f32.mxu0 0.0
  %2378 = vmatmul.mubr.f32.gmra.mrb[0].mxu0 %v2236
  %v2379 = vpop.f32.mrb[0].mxu0
  %v2380 = vadd.f32 0.0, %v2379
  %v2381 = vpop.f32.mrb[0].mxu0
  %v2382 = vadd.f32 0.0, %v2381
  %2383 = vmatprep.mubr.f32.mxu0 0.0
  %2384 = vmatmul.mubr.f32.gmra.mrb[0].mxu0 %v2239
  %v2385 = vpop.f32.mrb[0].mxu0
  %v2386 = vadd.f32 0.0, %v2385
  %v2387 = vpop.f32.mrb[0].mxu0
  %v2388 = vadd.f32 0.0, %v2387
  %2389 = vmatprep.mubr.f32.mxu0 0.0
  %2390 = vmatmul.mubr.f32.gmra.mrb[0].mxu0 %v2242
  %v2391 = vpop.f32.mrb[0].mxu0
  %v2392 = vadd.f32 0.0, %v2391
  %v2393 = vpop.f32.mrb[0].mxu0
  %v2394 = vadd.f32 0.0, %v2393
  %2395 = vmatprep.mubr.f32.mxu0 0.0
  %2396 = vmatmul.mubr.f32.gmra.mrb[0].mxu0 %v2245
  %v2397 = vpop.f32.mrb[0].mxu0
  %v2398 = vadd.f32 0.0, %v2397
  %v2399 = vpop.f32.mrb[0].mxu0
  %v2400 = vadd.f32 0.0, %v2399
  %2401 = vmatprep.mubr.f32.mxu0 0.0
  %2402 = vmatmul.mubr.f32.gmra.mrb[0].mxu0 %v2248
  %v2403 = vpop.f32.mrb[0].mxu0
  %v2404 = vadd.f32 0.0, %v2403
  %v2405 = vpop.f32.mrb[0].mxu0
  %v2406 = vadd.f32 0.0, %v2405
  %2407 = vmatprep.mubr.f32.mxu0 0.0
  %2408 = vmatmul.mubr.f32.gmra.mrb[0].mxu0 %v2251
  %v2409 = vpop.f32.mrb[0].mxu0
  %v2410 = vadd.f32 0.0, %v2409
  %v2411 = vpop.f32.mrb[0].mxu0
  %v2412 = vadd.f32 0.0, %v2411
  %2413 = vdwg.mxu0
  %v2414 = vadd.f32 %v2157, %v2320
  %v2415 = vadd.f32 %v2158, %v2322
  %v2416 = vadd.f32 %v2159, %v2326
  %v2417 = vadd.f32 %v2160, %v2328
  %v2418 = vadd.f32 %v2161, %v2332
  %v2419 = vadd.f32 %v2162, %v2334
  %v2420 = vadd.f32 %v2163, %v2338
  %v2421 = vadd.f32 %v2164, %v2340
  %v2422 = vadd.f32 %v2165, %v2344
  %v2423 = vadd.f32 %v2166, %v2346
  %v2424 = vadd.f32 %v2167, %v2350
  %v2425 = vadd.f32 %v2168, %v2352
  %v2426 = vadd.f32 %v2169, %v2356
  %v2427 = vadd.f32 %v2170, %v2358
  %v2428 = vadd.f32 %v2171, %v2362
  %v2429 = vadd.f32 %v2172, %v2364
  %v2430 = vadd.f32 %v2173, %v2368
  %v2431 = vadd.f32 %v2174, %v2370
  %v2432 = vadd.f32 %v2175, %v2374
  %v2433 = vadd.f32 %v2176, %v2376
  %v2434 = vadd.f32 %v2177, %v2380
  %v2435 = vadd.f32 %v2178, %v2382
  %v2436 = vadd.f32 %v2179, %v2386
  %v2437 = vadd.f32 %v2180, %v2388
  %v2438 = vadd.f32 %v2181, %v2392
  %v2439 = vadd.f32 %v2182, %v2394
  %v2440 = vadd.f32 %v2183, %v2398
  %v2441 = vadd.f32 %v2184, %v2400
  %v2442 = vadd.f32 %v2185, %v2404
  %v2443 = vadd.f32 %v2186, %v2406
  %v2444 = vadd.f32 %v2187, %v2410
  %v2445 = vadd.f32 %v2188, %v2412
  %v2446 = vmax.f32 %v1385, %v2414
  %v2447 = vmax.f32 %v1386, %v2415
  %v2448 = vmax.f32 %v1387, %v2416
  %v2449 = vmax.f32 %v1388, %v2417
  %v2450 = vmax.f32 %v1389, %v2418
  %v2451 = vmax.f32 %v1390, %v2419
  %v2452 = vmax.f32 %v1391, %v2420
  %v2453 = vmax.f32 %v1392, %v2421
  %v2454 = vmax.f32 %v1393, %v2422
  %v2455 = vmax.f32 %v1394, %v2423
  %v2456 = vmax.f32 %v1395, %v2424
  %v2457 = vmax.f32 %v1396, %v2425
  %v2458 = vmax.f32 %v1397, %v2426
  %v2459 = vmax.f32 %v1398, %v2427
  %v2460 = vmax.f32 %v1399, %v2428
  %v2461 = vmax.f32 %v1400, %v2429
  %v2462 = vmax.f32 %v1401, %v2430
  %v2463 = vmax.f32 %v1402, %v2431
  %v2464 = vmax.f32 %v1403, %v2432
  %v2465 = vmax.f32 %v1404, %v2433
  %v2466 = vmax.f32 %v1405, %v2434
  %v2467 = vmax.f32 %v1406, %v2435
  %v2468 = vmax.f32 %v1407, %v2436
  %v2469 = vmax.f32 %v1408, %v2437
  %v2470 = vmax.f32 %v1409, %v2438
  %v2471 = vmax.f32 %v1410, %v2439
  %v2472 = vmax.f32 %v1411, %v2440
  %v2473 = vmax.f32 %v1412, %v2441
  %v2474 = vmax.f32 %v1413, %v2442
  %v2475 = vmax.f32 %v1414, %v2443
  %v2476 = vmax.f32 %v1415, %v2444
  %v2477 = vmax.f32 %v1416, %v2445
  %2510 = vrot.lane.b32.xlu0 %v2446, 56
  %v2511 = vpop.permute.xlu0 %2510
  %2512 = vrot.lane.b32.xlu0 %v2447, 56
  %v2513 = vpop.permute.xlu0 %2512
  %2514 = vrot.lane.b32.xlu0 %v2448, 56
  %v2515 = vpop.permute.xlu0 %2514
  %2516 = vrot.lane.b32.xlu0 %v2449, 56
  %v2517 = vpop.permute.xlu0 %2516
  %2518 = vrot.lane.b32.xlu0 %v2450, 56
  %v2519 = vpop.permute.xlu0 %2518
  %2520 = vrot.lane.b32.xlu0 %v2451, 56
  %v2521 = vpop.permute.xlu0 %2520
  %2522 = vrot.lane.b32.xlu0 %v2452, 56
  %v2523 = vpop.permute.xlu0 %2522
  %2524 = vrot.lane.b32.xlu0 %v2453, 56
  %v2525 = vpop.permute.xlu0 %2524
  %2526 = vrot.lane.b32.xlu0 %v2454, 56
  %v2527 = vpop.permute.xlu0 %2526
  %2528 = vrot.lane.b32.xlu0 %v2455, 56
  %v2529 = vpop.permute.xlu0 %2528
  %2530 = vrot.lane.b32.xlu0 %v2456, 56
  %v2531 = vpop.permute.xlu0 %2530
  %2532 = vrot.lane.b32.xlu0 %v2457, 56
  %v2533 = vpop.permute.xlu0 %2532
  %2534 = vrot.lane.b32.xlu0 %v2458, 56
  %v2535 = vpop.permute.xlu0 %2534
  %2536 = vrot.lane.b32.xlu0 %v2459, 56
  %v2537 = vpop.permute.xlu0 %2536
  %2538 = vrot.lane.b32.xlu0 %v2460, 56
  %v2539 = vpop.permute.xlu0 %2538
  %2540 = vrot.lane.b32.xlu0 %v2461, 56
  %v2541 = vpop.permute.xlu0 %2540
  %2542 = vrot.lane.b32.xlu0 %v2462, 56
  %v2543 = vpop.permute.xlu0 %2542
  %2544 = vrot.lane.b32.xlu0 %v2463, 56
  %v2545 = vpop.permute.xlu0 %2544
  %2546 = vrot.lane.b32.xlu0 %v2464, 56
  %v2547 = vpop.permute.xlu0 %2546
  %2548 = vrot.lane.b32.xlu0 %v2465, 56
  %v2549 = vpop.permute.xlu0 %2548
  %2550 = vrot.lane.b32.xlu0 %v2466, 56
  %v2551 = vpop.permute.xlu0 %2550
  %2552 = vrot.lane.b32.xlu0 %v2467, 56
  %v2553 = vpop.permute.xlu0 %2552
  %2554 = vrot.lane.b32.xlu0 %v2468, 56
  %v2555 = vpop.permute.xlu0 %2554
  %2556 = vrot.lane.b32.xlu0 %v2469, 56
  %v2557 = vpop.permute.xlu0 %2556
  %2558 = vrot.lane.b32.xlu0 %v2470, 56
  %v2559 = vpop.permute.xlu0 %2558
  %2560 = vrot.lane.b32.xlu0 %v2471, 56
  %v2561 = vpop.permute.xlu0 %2560
  %2562 = vrot.lane.b32.xlu0 %v2472, 56
  %v2563 = vpop.permute.xlu0 %2562
  %2564 = vrot.lane.b32.xlu0 %v2473, 56
  %v2565 = vpop.permute.xlu0 %2564
  %2566 = vrot.lane.b32.xlu0 %v2474, 56
  %v2567 = vpop.permute.xlu0 %2566
  %2568 = vrot.lane.b32.xlu0 %v2475, 56
  %v2569 = vpop.permute.xlu0 %2568
  %2570 = vrot.lane.b32.xlu0 %v2476, 56
  %v2571 = vpop.permute.xlu0 %2570
  %2572 = vrot.lane.b32.xlu0 %v2477, 56
  %v2573 = vpop.permute.xlu0 %2572
  %vm2574 = vcmask 457728
  %v2575 = vsel %vm2574, %v2511, %v2513
  %v2576 = vsel %vm2574, %v2515, %v2517
  %v2577 = vsel %vm2574, %v2519, %v2521
  %v2578 = vsel %vm2574, %v2523, %v2525
  %v2579 = vsel %vm2574, %v2527, %v2529
  %v2580 = vsel %vm2574, %v2531, %v2533
  %v2581 = vsel %vm2574, %v2535, %v2537
  %v2582 = vsel %vm2574, %v2539, %v2541
  %v2583 = vsel %vm2574, %v2543, %v2545
  %v2584 = vsel %vm2574, %v2547, %v2549
  %v2585 = vsel %vm2574, %v2551, %v2553
  %v2586 = vsel %vm2574, %v2555, %v2557
  %v2587 = vsel %vm2574, %v2559, %v2561
  %v2588 = vsel %vm2574, %v2563, %v2565
  %v2589 = vsel %vm2574, %v2567, %v2569
  %v2590 = vsel %vm2574, %v2571, %v2573
  %v2607 = vmax.f32 %v2446, %v2575
  %v2608 = vmax.f32 %v2448, %v2576
  %v2609 = vmax.f32 %v2450, %v2577
  %v2610 = vmax.f32 %v2452, %v2578
  %v2611 = vmax.f32 %v2454, %v2579
  %v2612 = vmax.f32 %v2456, %v2580
  %v2613 = vmax.f32 %v2458, %v2581
  %v2614 = vmax.f32 %v2460, %v2582
  %v2615 = vmax.f32 %v2462, %v2583
  %v2616 = vmax.f32 %v2464, %v2584
  %v2617 = vmax.f32 %v2466, %v2585
  %v2618 = vmax.f32 %v2468, %v2586
  %v2619 = vmax.f32 %v2470, %v2587
  %v2620 = vmax.f32 %v2472, %v2588
  %v2621 = vmax.f32 %v2474, %v2589
  %v2622 = vmax.f32 %v2476, %v2590
  %v2623 = vmax.f32 %v2607, 0.0
  %v2624 = vmax.f32 %v2608, 0.0
  %v2625 = vmax.f32 %v2609, 0.0
  %v2626 = vmax.f32 %v2610, 0.0
  %v2627 = vmax.f32 %v2611, 0.0
  %v2628 = vmax.f32 %v2612, 0.0
  %v2629 = vmax.f32 %v2613, 0.0
  %v2630 = vmax.f32 %v2614, 0.0
  %v2631 = vmax.f32 %v2615, 0.0
  %v2632 = vmax.f32 %v2616, 0.0
  %v2633 = vmax.f32 %v2617, 0.0
  %v2634 = vmax.f32 %v2618, 0.0
  %v2635 = vmax.f32 %v2619, 0.0
  %v2636 = vmax.f32 %v2620, 0.0
  %v2637 = vmax.f32 %v2621, 0.0
  %v2638 = vmax.f32 %v2622, 0.0
  %v2639 = vld [vmem:[%s4] sm:$0x1]
  %v2641 = vlaneseq
  %v2642 = vshrl.u32 %v2641, 7
  %v2643 = vsub.s32 0, %v2642
  %v2644 = vrot.slane %v2639, %v2643
  %v2646 = vadd.f32 %v2644, 0.0
  %v2647 = vld [vmem:[%s3] sm:$0xff]
  %v2648 = vld [vmem:[%s3 + $0x8] sm:$0xff]
  %v2649 = vld [vmem:[%s3 + $0x10] sm:$0xff]
  %v2650 = vld [vmem:[%s3 + $0x18] sm:$0xff]
  %v2651 = vld [vmem:[%s3 + $0x20] sm:$0xff]
  %v2652 = vld [vmem:[%s3 + $0x28] sm:$0xff]
  %v2653 = vld [vmem:[%s3 + $0x30] sm:$0xff]
  %v2654 = vld [vmem:[%s3 + $0x38] sm:$0xff]
  %v2655 = vld [vmem:[%s3 + $0x40] sm:$0xff]
  %vm2656 = vcmask 588800
  %v2658 = vsel %vm2656, %v2623, 0
  %v2661 = vsel %vm2656, %v2625, 0
  %v2664 = vsel %vm2656, %v2627, 0
  %v2667 = vsel %vm2656, %v2629, 0
  %v2670 = vsel %vm2656, %v2631, 0
  %v2673 = vsel %vm2656, %v2633, 0
  %v2676 = vsel %vm2656, %v2635, 0
  %v2679 = vsel %vm2656, %v2637, 0
  %2681 = vmatprep.subr.mxu0 0.0
  %2682 = vmatpush1.msra.mxu0 %v2647
  %2683 = vmatprep.subr.mxu0 0.0
  %2684 = vmatpush1.msra.mxu0 %v2648
  %2685 = vmatprep.subr.mxu0 0.0
  %2686 = vmatpush1.msra.mxu0 %v2649
  %2687 = vmatprep.subr.mxu0 0.0
  %2688 = vmatpush1.msra.mxu0 %v2650
  %2689 = vmatprep.subr.mxu0 0.0
  %2690 = vmatpush1.msra.mxu0 %v2651
  %2691 = vmatprep.subr.mxu0 0.0
  %2692 = vmatpush1.msra.mxu0 %v2652
  %2693 = vmatprep.subr.mxu0 0.0
  %2694 = vmatpush1.msra.mxu0 %v2653
  %2695 = vmatprep.subr.mxu0 0.0
  %2696 = vmatpush1.msra.mxu0 %v2654
  %2697 = vmatprep.subr.mxu0 0.0
  %2698 = vmatpush1.msra.mxu0 %v2655
  %2699 = vmatprep.subr.mxu0 0.0
  %2700 = vmatpush1.msra.mxu0 0.0
  %2701 = vmatprep.subr.mxu0 0.0
  %2702 = vmatpush1.msra.mxu0 0.0
  %2703 = vmatprep.subr.mxu0 0.0
  %2704 = vmatpush1.msra.mxu0 0.0
  %2705 = vmatprep.subr.mxu0 0.0
  %2706 = vmatpush1.msra.mxu0 0.0
  %2707 = vmatprep.subr.mxu0 0.0
  %2708 = vmatpush1.msra.mxu0 0.0
  %2709 = vmatprep.subr.mxu0 0.0
  %2710 = vmatpush1.msra.mxu0 0.0
  %2711 = vmatprep.subr.mxu0 0.0
  %2712 = vmatpush1.msra.mxu0 0.0
  %2713 = vmatprep.subr.mxu0 0.0
  %2714 = vmatpush1.msra.mxu0 0.0
  %2715 = vmatprep.subr.mxu0 0.0
  %2716 = vmatpush1.msra.mxu0 0.0
  %2717 = vmatprep.subr.mxu0 0.0
  %2718 = vmatpush1.msra.mxu0 0.0
  %2719 = vmatprep.subr.mxu0 0.0
  %2720 = vmatpush1.msra.mxu0 0.0
  %2721 = vmatprep.subr.mxu0 0.0
  %2722 = vmatpush1.msra.mxu0 0.0
  %2723 = vmatprep.subr.mxu0 0.0
  %2724 = vmatpush1.msra.mxu0 0.0
  %2725 = vmatprep.subr.mxu0 0.0
  %2726 = vmatpush1.msra.mxu0 0.0
  %2727 = vmatprep.subr.mxu0 0.0
  %2728 = vmatpush1.msra.mxu0 0.0
  %2729 = vmatprep.subr.mxu0 0.0
  %2730 = vmatpush1.msra.mxu0 0.0
  %2731 = vmatprep.subr.mxu0 0.0
  %2732 = vmatpush1.msra.mxu0 0.0
  %2733 = vmatprep.subr.mxu0 0.0
  %2734 = vmatpush1.msra.mxu0 0.0
  %2735 = vmatprep.subr.mxu0 0.0
  %2736 = vmatpush1.msra.mxu0 0.0
  %2737 = vmatprep.subr.mxu0 0.0
  %2738 = vmatpush1.msra.mxu0 0.0
  %2739 = vmatprep.subr.mxu0 0.0
  %2740 = vmatpush1.msra.mxu0 0.0
  %2741 = vmatprep.subr.mxu0 0.0
  %2742 = vmatpush1.msra.mxu0 0.0
  %2743 = vmatprep.subr.mxu0 0.0
  %2744 = vmatpush1.msra.mxu0 0.0
  %2745 = vmatprep.mubr.f32.mxu0 0.0
  %2746 = vmatmul.mubr.f32.gmra.mrb[0].mxu0 %v2658
  %v2747 = vpop.f32.mrb[0].mxu0
  %v2748 = vadd.f32 0.0, %v2747
  %v2749 = vpop.f32.mrb[0].mxu0
  %2750 = vmatprep.mubr.f32.mxu0 0.0
  %2751 = vmatmul.mubr.f32.gmra.mrb[0].mxu0 %v2661
  %v2752 = vpop.f32.mrb[0].mxu0
  %v2753 = vadd.f32 0.0, %v2752
  %v2754 = vpop.f32.mrb[0].mxu0
  %2755 = vmatprep.mubr.f32.mxu0 0.0
  %2756 = vmatmul.mubr.f32.gmra.mrb[0].mxu0 %v2664
  %v2757 = vpop.f32.mrb[0].mxu0
  %v2758 = vadd.f32 0.0, %v2757
  %v2759 = vpop.f32.mrb[0].mxu0
  %2760 = vmatprep.mubr.f32.mxu0 0.0
  %2761 = vmatmul.mubr.f32.gmra.mrb[0].mxu0 %v2667
  %v2762 = vpop.f32.mrb[0].mxu0
  %v2763 = vadd.f32 0.0, %v2762
  %v2764 = vpop.f32.mrb[0].mxu0
  %2765 = vmatprep.mubr.f32.mxu0 0.0
  %2766 = vmatmul.mubr.f32.gmra.mrb[0].mxu0 %v2670
  %v2767 = vpop.f32.mrb[0].mxu0
  %v2768 = vadd.f32 0.0, %v2767
  %v2769 = vpop.f32.mrb[0].mxu0
  %2770 = vmatprep.mubr.f32.mxu0 0.0
  %2771 = vmatmul.mubr.f32.gmra.mrb[0].mxu0 %v2673
  %v2772 = vpop.f32.mrb[0].mxu0
  %v2773 = vadd.f32 0.0, %v2772
  %v2774 = vpop.f32.mrb[0].mxu0
  %2775 = vmatprep.mubr.f32.mxu0 0.0
  %2776 = vmatmul.mubr.f32.gmra.mrb[0].mxu0 %v2676
  %v2777 = vpop.f32.mrb[0].mxu0
  %v2778 = vadd.f32 0.0, %v2777
  %v2779 = vpop.f32.mrb[0].mxu0
  %2780 = vmatprep.mubr.f32.mxu0 0.0
  %2781 = vmatmul.mubr.f32.gmra.mrb[0].mxu0 %v2679
  %v2782 = vpop.f32.mrb[0].mxu0
  %v2783 = vadd.f32 0.0, %v2782
  %v2784 = vpop.f32.mrb[0].mxu0
  %2785 = vdwg.mxu0
  %v2786 = vadd.f32 %v2646, %v2748
  %v2787 = vadd.f32 %v2646, %v2753
  %v2788 = vadd.f32 %v2646, %v2758
  %v2789 = vadd.f32 %v2646, %v2763
  %v2790 = vadd.f32 %v2646, %v2768
  %v2791 = vadd.f32 %v2646, %v2773
  %v2792 = vadd.f32 %v2646, %v2778
  %v2793 = vadd.f32 %v2646, %v2783
  %vm2802 = vcmask 1046528
  %v2803 = vrot.slane %v2623, 1
  %v2804 = vrot.slane %v2624, 1
  %v2805 = vsel %vm2802, %v2803, %v2804
  %v2806 = vrot.slane %v2625, 1
  %v2807 = vrot.slane %v2626, 1
  %v2808 = vsel %vm2802, %v2806, %v2807
  %v2809 = vrot.slane %v2627, 1
  %v2810 = vrot.slane %v2628, 1
  %v2811 = vsel %vm2802, %v2809, %v2810
  %v2812 = vrot.slane %v2629, 1
  %v2813 = vrot.slane %v2630, 1
  %v2814 = vsel %vm2802, %v2812, %v2813
  %v2815 = vrot.slane %v2631, 1
  %v2816 = vrot.slane %v2632, 1
  %v2817 = vsel %vm2802, %v2815, %v2816
  %v2818 = vrot.slane %v2633, 1
  %v2819 = vrot.slane %v2634, 1
  %v2820 = vsel %vm2802, %v2818, %v2819
  %v2821 = vrot.slane %v2635, 1
  %v2822 = vrot.slane %v2636, 1
  %v2823 = vsel %vm2802, %v2821, %v2822
  %v2824 = vrot.slane %v2637, 1
  %v2825 = vrot.slane %v2638, 1
  %v2826 = vsel %vm2802, %v2824, %v2825
  %s2827 = scalar_lea.vmem %s3, 72
  %v2828 = vld [vmem:[%s2827] sm:$0xff]
  %v2829 = vld [vmem:[%s2827 + $0x8] sm:$0xff]
  %v2830 = vld [vmem:[%s2827 + $0x10] sm:$0xff]
  %v2831 = vld [vmem:[%s2827 + $0x18] sm:$0xff]
  %v2832 = vld [vmem:[%s2827 + $0x20] sm:$0xff]
  %v2833 = vld [vmem:[%s2827 + $0x28] sm:$0xff]
  %v2834 = vld [vmem:[%s2827 + $0x30] sm:$0xff]
  %v2835 = vld [vmem:[%s2827 + $0x38] sm:$0xff]
  %v2836 = vld [vmem:[%s2827 + $0x40] sm:$0xff]
  %v2837 = vsel %vm2656, %v2805, 0
  %v2839 = vsel %vm2656, %v2808, 0
  %v2841 = vsel %vm2656, %v2811, 0
  %v2843 = vsel %vm2656, %v2814, 0
  %v2845 = vsel %vm2656, %v2817, 0
  %v2847 = vsel %vm2656, %v2820, 0
  %v2849 = vsel %vm2656, %v2823, 0
  %v2851 = vsel %vm2656, %v2826, 0
  %2853 = vmatprep.subr.mxu0 0.0
  %2854 = vmatpush1.msra.mxu0 %v2828
  %2855 = vmatprep.subr.mxu0 0.0
  %2856 = vmatpush1.msra.mxu0 %v2829
  %2857 = vmatprep.subr.mxu0 0.0
  %2858 = vmatpush1.msra.mxu0 %v2830
  %2859 = vmatprep.subr.mxu0 0.0
  %2860 = vmatpush1.msra.mxu0 %v2831
  %2861 = vmatprep.subr.mxu0 0.0
  %2862 = vmatpush1.msra.mxu0 %v2832
  %2863 = vmatprep.subr.mxu0 0.0
  %2864 = vmatpush1.msra.mxu0 %v2833
  %2865 = vmatprep.subr.mxu0 0.0
  %2866 = vmatpush1.msra.mxu0 %v2834
  %2867 = vmatprep.subr.mxu0 0.0
  %2868 = vmatpush1.msra.mxu0 %v2835
  %2869 = vmatprep.subr.mxu0 0.0
  %2870 = vmatpush1.msra.mxu0 %v2836
  %2871 = vmatprep.subr.mxu0 0.0
  %2872 = vmatpush1.msra.mxu0 0.0
  %2873 = vmatprep.subr.mxu0 0.0
  %2874 = vmatpush1.msra.mxu0 0.0
  %2875 = vmatprep.subr.mxu0 0.0
  %2876 = vmatpush1.msra.mxu0 0.0
  %2877 = vmatprep.subr.mxu0 0.0
  %2878 = vmatpush1.msra.mxu0 0.0
  %2879 = vmatprep.subr.mxu0 0.0
  %2880 = vmatpush1.msra.mxu0 0.0
  %2881 = vmatprep.subr.mxu0 0.0
  %2882 = vmatpush1.msra.mxu0 0.0
  %2883 = vmatprep.subr.mxu0 0.0
  %2884 = vmatpush1.msra.mxu0 0.0
  %2885 = vmatprep.subr.mxu0 0.0
  %2886 = vmatpush1.msra.mxu0 0.0
  %2887 = vmatprep.subr.mxu0 0.0
  %2888 = vmatpush1.msra.mxu0 0.0
  %2889 = vmatprep.subr.mxu0 0.0
  %2890 = vmatpush1.msra.mxu0 0.0
  %2891 = vmatprep.subr.mxu0 0.0
  %2892 = vmatpush1.msra.mxu0 0.0
  %2893 = vmatprep.subr.mxu0 0.0
  %2894 = vmatpush1.msra.mxu0 0.0
  %2895 = vmatprep.subr.mxu0 0.0
  %2896 = vmatpush1.msra.mxu0 0.0
  %2897 = vmatprep.subr.mxu0 0.0
  %2898 = vmatpush1.msra.mxu0 0.0
  %2899 = vmatprep.subr.mxu0 0.0
  %2900 = vmatpush1.msra.mxu0 0.0
  %2901 = vmatprep.subr.mxu0 0.0
  %2902 = vmatpush1.msra.mxu0 0.0
  %2903 = vmatprep.subr.mxu0 0.0
  %2904 = vmatpush1.msra.mxu0 0.0
  %2905 = vmatprep.subr.mxu0 0.0
  %2906 = vmatpush1.msra.mxu0 0.0
  %2907 = vmatprep.subr.mxu0 0.0
  %2908 = vmatpush1.msra.mxu0 0.0
  %2909 = vmatprep.subr.mxu0 0.0
  %2910 = vmatpush1.msra.mxu0 0.0
  %2911 = vmatprep.subr.mxu0 0.0
  %2912 = vmatpush1.msra.mxu0 0.0
  %2913 = vmatprep.subr.mxu0 0.0
  %2914 = vmatpush1.msra.mxu0 0.0
  %2915 = vmatprep.subr.mxu0 0.0
  %2916 = vmatpush1.msra.mxu0 0.0
  %2917 = vmatprep.mubr.f32.mxu0 0.0
  %2918 = vmatmul.mubr.f32.gmra.mrb[0].mxu0 %v2837
  %v2919 = vpop.f32.mrb[0].mxu0
  %v2920 = vadd.f32 0.0, %v2919
  %v2921 = vpop.f32.mrb[0].mxu0
  %2922 = vmatprep.mubr.f32.mxu0 0.0
  %2923 = vmatmul.mubr.f32.gmra.mrb[0].mxu0 %v2839
  %v2924 = vpop.f32.mrb[0].mxu0
  %v2925 = vadd.f32 0.0, %v2924
  %v2926 = vpop.f32.mrb[0].mxu0
  %2927 = vmatprep.mubr.f32.mxu0 0.0
  %2928 = vmatmul.mubr.f32.gmra.mrb[0].mxu0 %v2841
  %v2929 = vpop.f32.mrb[0].mxu0
  %v2930 = vadd.f32 0.0, %v2929
  %v2931 = vpop.f32.mrb[0].mxu0
  %2932 = vmatprep.mubr.f32.mxu0 0.0
  %2933 = vmatmul.mubr.f32.gmra.mrb[0].mxu0 %v2843
  %v2934 = vpop.f32.mrb[0].mxu0
  %v2935 = vadd.f32 0.0, %v2934
  %v2936 = vpop.f32.mrb[0].mxu0
  %2937 = vmatprep.mubr.f32.mxu0 0.0
  %2938 = vmatmul.mubr.f32.gmra.mrb[0].mxu0 %v2845
  %v2939 = vpop.f32.mrb[0].mxu0
  %v2940 = vadd.f32 0.0, %v2939
  %v2941 = vpop.f32.mrb[0].mxu0
  %2942 = vmatprep.mubr.f32.mxu0 0.0
  %2943 = vmatmul.mubr.f32.gmra.mrb[0].mxu0 %v2847
  %v2944 = vpop.f32.mrb[0].mxu0
  %v2945 = vadd.f32 0.0, %v2944
  %v2946 = vpop.f32.mrb[0].mxu0
  %2947 = vmatprep.mubr.f32.mxu0 0.0
  %2948 = vmatmul.mubr.f32.gmra.mrb[0].mxu0 %v2849
  %v2949 = vpop.f32.mrb[0].mxu0
  %v2950 = vadd.f32 0.0, %v2949
  %v2951 = vpop.f32.mrb[0].mxu0
  %2952 = vmatprep.mubr.f32.mxu0 0.0
  %2953 = vmatmul.mubr.f32.gmra.mrb[0].mxu0 %v2851
  %v2954 = vpop.f32.mrb[0].mxu0
  %v2955 = vadd.f32 0.0, %v2954
  %v2956 = vpop.f32.mrb[0].mxu0
  %2957 = vdwg.mxu0
  %v2958 = vadd.f32 %v2786, %v2920
  %v2959 = vadd.f32 %v2787, %v2925
  %v2960 = vadd.f32 %v2788, %v2930
  %v2961 = vadd.f32 %v2789, %v2935
  %v2962 = vadd.f32 %v2790, %v2940
  %v2963 = vadd.f32 %v2791, %v2945
  %v2964 = vadd.f32 %v2792, %v2950
  %v2965 = vadd.f32 %v2793, %v2955
  %vm2966 = vcmask 1045504
  %v2967 = vrot.slane %v2623, 2
  %v2968 = vrot.slane %v2624, 2
  %v2969 = vsel %vm2966, %v2967, %v2968
  %v2970 = vrot.slane %v2625, 2
  %v2971 = vrot.slane %v2626, 2
  %v2972 = vsel %vm2966, %v2970, %v2971
  %v2973 = vrot.slane %v2627, 2
  %v2974 = vrot.slane %v2628, 2
  %v2975 = vsel %vm2966, %v2973, %v2974
  %v2976 = vrot.slane %v2629, 2
  %v2977 = vrot.slane %v2630, 2
  %v2978 = vsel %vm2966, %v2976, %v2977
  %v2979 = vrot.slane %v2631, 2
  %v2980 = vrot.slane %v2632, 2
  %v2981 = vsel %vm2966, %v2979, %v2980
  %v2982 = vrot.slane %v2633, 2
  %v2983 = vrot.slane %v2634, 2
  %v2984 = vsel %vm2966, %v2982, %v2983
  %v2985 = vrot.slane %v2635, 2
  %v2986 = vrot.slane %v2636, 2
  %v2987 = vsel %vm2966, %v2985, %v2986
  %v2988 = vrot.slane %v2637, 2
  %v2989 = vrot.slane %v2638, 2
  %v2990 = vsel %vm2966, %v2988, %v2989
  %s2991 = scalar_lea.vmem %s3, 144
  %v2992 = vld [vmem:[%s2991] sm:$0xff]
  %v2993 = vld [vmem:[%s2991 + $0x8] sm:$0xff]
  %v2994 = vld [vmem:[%s2991 + $0x10] sm:$0xff]
  %v2995 = vld [vmem:[%s2991 + $0x18] sm:$0xff]
  %v2996 = vld [vmem:[%s2991 + $0x20] sm:$0xff]
  %v2997 = vld [vmem:[%s2991 + $0x28] sm:$0xff]
  %v2998 = vld [vmem:[%s2991 + $0x30] sm:$0xff]
  %v2999 = vld [vmem:[%s2991 + $0x38] sm:$0xff]
  %v3000 = vld [vmem:[%s2991 + $0x40] sm:$0xff]
  %v3001 = vsel %vm2656, %v2969, 0
  %v3003 = vsel %vm2656, %v2972, 0
  %v3005 = vsel %vm2656, %v2975, 0
  %v3007 = vsel %vm2656, %v2978, 0
  %v3009 = vsel %vm2656, %v2981, 0
  %v3011 = vsel %vm2656, %v2984, 0
  %v3013 = vsel %vm2656, %v2987, 0
  %v3015 = vsel %vm2656, %v2990, 0
  %3017 = vmatprep.subr.mxu0 0.0
  %3018 = vmatpush1.msra.mxu0 %v2992
  %3019 = vmatprep.subr.mxu0 0.0
  %3020 = vmatpush1.msra.mxu0 %v2993
  %3021 = vmatprep.subr.mxu0 0.0
  %3022 = vmatpush1.msra.mxu0 %v2994
  %3023 = vmatprep.subr.mxu0 0.0
  %3024 = vmatpush1.msra.mxu0 %v2995
  %3025 = vmatprep.subr.mxu0 0.0
  %3026 = vmatpush1.msra.mxu0 %v2996
  %3027 = vmatprep.subr.mxu0 0.0
  %3028 = vmatpush1.msra.mxu0 %v2997
  %3029 = vmatprep.subr.mxu0 0.0
  %3030 = vmatpush1.msra.mxu0 %v2998
  %3031 = vmatprep.subr.mxu0 0.0
  %3032 = vmatpush1.msra.mxu0 %v2999
  %3033 = vmatprep.subr.mxu0 0.0
  %3034 = vmatpush1.msra.mxu0 %v3000
  %3035 = vmatprep.subr.mxu0 0.0
  %3036 = vmatpush1.msra.mxu0 0.0
  %3037 = vmatprep.subr.mxu0 0.0
  %3038 = vmatpush1.msra.mxu0 0.0
  %3039 = vmatprep.subr.mxu0 0.0
  %3040 = vmatpush1.msra.mxu0 0.0
  %3041 = vmatprep.subr.mxu0 0.0
  %3042 = vmatpush1.msra.mxu0 0.0
  %3043 = vmatprep.subr.mxu0 0.0
  %3044 = vmatpush1.msra.mxu0 0.0
  %3045 = vmatprep.subr.mxu0 0.0
  %3046 = vmatpush1.msra.mxu0 0.0
  %3047 = vmatprep.subr.mxu0 0.0
  %3048 = vmatpush1.msra.mxu0 0.0
  %3049 = vmatprep.subr.mxu0 0.0
  %3050 = vmatpush1.msra.mxu0 0.0
  %3051 = vmatprep.subr.mxu0 0.0
  %3052 = vmatpush1.msra.mxu0 0.0
  %3053 = vmatprep.subr.mxu0 0.0
  %3054 = vmatpush1.msra.mxu0 0.0
  %3055 = vmatprep.subr.mxu0 0.0
  %3056 = vmatpush1.msra.mxu0 0.0
  %3057 = vmatprep.subr.mxu0 0.0
  %3058 = vmatpush1.msra.mxu0 0.0
  %3059 = vmatprep.subr.mxu0 0.0
  %3060 = vmatpush1.msra.mxu0 0.0
  %3061 = vmatprep.subr.mxu0 0.0
  %3062 = vmatpush1.msra.mxu0 0.0
  %3063 = vmatprep.subr.mxu0 0.0
  %3064 = vmatpush1.msra.mxu0 0.0
  %3065 = vmatprep.subr.mxu0 0.0
  %3066 = vmatpush1.msra.mxu0 0.0
  %3067 = vmatprep.subr.mxu0 0.0
  %3068 = vmatpush1.msra.mxu0 0.0
  %3069 = vmatprep.subr.mxu0 0.0
  %3070 = vmatpush1.msra.mxu0 0.0
  %3071 = vmatprep.subr.mxu0 0.0
  %3072 = vmatpush1.msra.mxu0 0.0
  %3073 = vmatprep.subr.mxu0 0.0
  %3074 = vmatpush1.msra.mxu0 0.0
  %3075 = vmatprep.subr.mxu0 0.0
  %3076 = vmatpush1.msra.mxu0 0.0
  %3077 = vmatprep.subr.mxu0 0.0
  %3078 = vmatpush1.msra.mxu0 0.0
  %3079 = vmatprep.subr.mxu0 0.0
  %3080 = vmatpush1.msra.mxu0 0.0
  %3081 = vmatprep.mubr.f32.mxu0 0.0
  %3082 = vmatmul.mubr.f32.gmra.mrb[0].mxu0 %v3001
  %v3083 = vpop.f32.mrb[0].mxu0
  %v3084 = vadd.f32 0.0, %v3083
  %v3085 = vpop.f32.mrb[0].mxu0
  %3086 = vmatprep.mubr.f32.mxu0 0.0
  %3087 = vmatmul.mubr.f32.gmra.mrb[0].mxu0 %v3003
  %v3088 = vpop.f32.mrb[0].mxu0
  %v3089 = vadd.f32 0.0, %v3088
  %v3090 = vpop.f32.mrb[0].mxu0
  %3091 = vmatprep.mubr.f32.mxu0 0.0
  %3092 = vmatmul.mubr.f32.gmra.mrb[0].mxu0 %v3005
  %v3093 = vpop.f32.mrb[0].mxu0
  %v3094 = vadd.f32 0.0, %v3093
  %v3095 = vpop.f32.mrb[0].mxu0
  %3096 = vmatprep.mubr.f32.mxu0 0.0
  %3097 = vmatmul.mubr.f32.gmra.mrb[0].mxu0 %v3007
  %v3098 = vpop.f32.mrb[0].mxu0
  %v3099 = vadd.f32 0.0, %v3098
  %v3100 = vpop.f32.mrb[0].mxu0
  %3101 = vmatprep.mubr.f32.mxu0 0.0
  %3102 = vmatmul.mubr.f32.gmra.mrb[0].mxu0 %v3009
  %v3103 = vpop.f32.mrb[0].mxu0
  %v3104 = vadd.f32 0.0, %v3103
  %v3105 = vpop.f32.mrb[0].mxu0
  %3106 = vmatprep.mubr.f32.mxu0 0.0
  %3107 = vmatmul.mubr.f32.gmra.mrb[0].mxu0 %v3011
  %v3108 = vpop.f32.mrb[0].mxu0
  %v3109 = vadd.f32 0.0, %v3108
  %v3110 = vpop.f32.mrb[0].mxu0
  %3111 = vmatprep.mubr.f32.mxu0 0.0
  %3112 = vmatmul.mubr.f32.gmra.mrb[0].mxu0 %v3013
  %v3113 = vpop.f32.mrb[0].mxu0
  %v3114 = vadd.f32 0.0, %v3113
  %v3115 = vpop.f32.mrb[0].mxu0
  %3116 = vmatprep.mubr.f32.mxu0 0.0
  %3117 = vmatmul.mubr.f32.gmra.mrb[0].mxu0 %v3015
  %v3118 = vpop.f32.mrb[0].mxu0
  %v3119 = vadd.f32 0.0, %v3118
  %v3120 = vpop.f32.mrb[0].mxu0
  %3121 = vdwg.mxu0
  %v3122 = vadd.f32 %v2958, %v3084
  %v3123 = vadd.f32 %v2959, %v3089
  %v3124 = vadd.f32 %v2960, %v3094
  %v3125 = vadd.f32 %v2961, %v3099
  %v3126 = vadd.f32 %v2962, %v3104
  %v3127 = vadd.f32 %v2963, %v3109
  %v3128 = vadd.f32 %v2964, %v3114
  %v3129 = vadd.f32 %v2965, %v3119
  %vm3130 = vcmask 1044480
  %v3131 = vrot.slane %v2623, 3
  %v3132 = vrot.slane %v2624, 3
  %v3133 = vsel %vm3130, %v3131, %v3132
  %v3134 = vrot.slane %v2625, 3
  %v3135 = vrot.slane %v2626, 3
  %v3136 = vsel %vm3130, %v3134, %v3135
  %v3137 = vrot.slane %v2627, 3
  %v3138 = vrot.slane %v2628, 3
  %v3139 = vsel %vm3130, %v3137, %v3138
  %v3140 = vrot.slane %v2629, 3
  %v3141 = vrot.slane %v2630, 3
  %v3142 = vsel %vm3130, %v3140, %v3141
  %v3143 = vrot.slane %v2631, 3
  %v3144 = vrot.slane %v2632, 3
  %v3145 = vsel %vm3130, %v3143, %v3144
  %v3146 = vrot.slane %v2633, 3
  %v3147 = vrot.slane %v2634, 3
  %v3148 = vsel %vm3130, %v3146, %v3147
  %v3149 = vrot.slane %v2635, 3
  %v3150 = vrot.slane %v2636, 3
  %v3151 = vsel %vm3130, %v3149, %v3150
  %v3152 = vrot.slane %v2637, 3
  %v3153 = vrot.slane %v2638, 3
  %v3154 = vsel %vm3130, %v3152, %v3153
  %s3155 = scalar_lea.vmem %s3, 216
  %v3156 = vld [vmem:[%s3155] sm:$0xff]
  %v3157 = vld [vmem:[%s3155 + $0x8] sm:$0xff]
  %v3158 = vld [vmem:[%s3155 + $0x10] sm:$0xff]
  %v3159 = vld [vmem:[%s3155 + $0x18] sm:$0xff]
  %v3160 = vld [vmem:[%s3155 + $0x20] sm:$0xff]
  %v3161 = vld [vmem:[%s3155 + $0x28] sm:$0xff]
  %v3162 = vld [vmem:[%s3155 + $0x30] sm:$0xff]
  %v3163 = vld [vmem:[%s3155 + $0x38] sm:$0xff]
  %v3164 = vld [vmem:[%s3155 + $0x40] sm:$0xff]
  %v3165 = vsel %vm2656, %v3133, 0
  %v3167 = vsel %vm2656, %v3136, 0
  %v3169 = vsel %vm2656, %v3139, 0
  %v3171 = vsel %vm2656, %v3142, 0
  %v3173 = vsel %vm2656, %v3145, 0
  %v3175 = vsel %vm2656, %v3148, 0
  %v3177 = vsel %vm2656, %v3151, 0
  %v3179 = vsel %vm2656, %v3154, 0
  %3181 = vmatprep.subr.mxu0 0.0
  %3182 = vmatpush1.msra.mxu0 %v3156
  %3183 = vmatprep.subr.mxu0 0.0
  %3184 = vmatpush1.msra.mxu0 %v3157
  %3185 = vmatprep.subr.mxu0 0.0
  %3186 = vmatpush1.msra.mxu0 %v3158
  %3187 = vmatprep.subr.mxu0 0.0
  %3188 = vmatpush1.msra.mxu0 %v3159
  %3189 = vmatprep.subr.mxu0 0.0
  %3190 = vmatpush1.msra.mxu0 %v3160
  %3191 = vmatprep.subr.mxu0 0.0
  %3192 = vmatpush1.msra.mxu0 %v3161
  %3193 = vmatprep.subr.mxu0 0.0
  %3194 = vmatpush1.msra.mxu0 %v3162
  %3195 = vmatprep.subr.mxu0 0.0
  %3196 = vmatpush1.msra.mxu0 %v3163
  %3197 = vmatprep.subr.mxu0 0.0
  %3198 = vmatpush1.msra.mxu0 %v3164
  %3199 = vmatprep.subr.mxu0 0.0
  %3200 = vmatpush1.msra.mxu0 0.0
  %3201 = vmatprep.subr.mxu0 0.0
  %3202 = vmatpush1.msra.mxu0 0.0
  %3203 = vmatprep.subr.mxu0 0.0
  %3204 = vmatpush1.msra.mxu0 0.0
  %3205 = vmatprep.subr.mxu0 0.0
  %3206 = vmatpush1.msra.mxu0 0.0
  %3207 = vmatprep.subr.mxu0 0.0
  %3208 = vmatpush1.msra.mxu0 0.0
  %3209 = vmatprep.subr.mxu0 0.0
  %3210 = vmatpush1.msra.mxu0 0.0
  %3211 = vmatprep.subr.mxu0 0.0
  %3212 = vmatpush1.msra.mxu0 0.0
  %3213 = vmatprep.subr.mxu0 0.0
  %3214 = vmatpush1.msra.mxu0 0.0
  %3215 = vmatprep.subr.mxu0 0.0
  %3216 = vmatpush1.msra.mxu0 0.0
  %3217 = vmatprep.subr.mxu0 0.0
  %3218 = vmatpush1.msra.mxu0 0.0
  %3219 = vmatprep.subr.mxu0 0.0
  %3220 = vmatpush1.msra.mxu0 0.0
  %3221 = vmatprep.subr.mxu0 0.0
  %3222 = vmatpush1.msra.mxu0 0.0
  %3223 = vmatprep.subr.mxu0 0.0
  %3224 = vmatpush1.msra.mxu0 0.0
  %3225 = vmatprep.subr.mxu0 0.0
  %3226 = vmatpush1.msra.mxu0 0.0
  %3227 = vmatprep.subr.mxu0 0.0
  %3228 = vmatpush1.msra.mxu0 0.0
  %3229 = vmatprep.subr.mxu0 0.0
  %3230 = vmatpush1.msra.mxu0 0.0
  %3231 = vmatprep.subr.mxu0 0.0
  %3232 = vmatpush1.msra.mxu0 0.0
  %3233 = vmatprep.subr.mxu0 0.0
  %3234 = vmatpush1.msra.mxu0 0.0
  %3235 = vmatprep.subr.mxu0 0.0
  %3236 = vmatpush1.msra.mxu0 0.0
  %3237 = vmatprep.subr.mxu0 0.0
  %3238 = vmatpush1.msra.mxu0 0.0
  %3239 = vmatprep.subr.mxu0 0.0
  %3240 = vmatpush1.msra.mxu0 0.0
  %3241 = vmatprep.subr.mxu0 0.0
  %3242 = vmatpush1.msra.mxu0 0.0
  %3243 = vmatprep.subr.mxu0 0.0
  %3244 = vmatpush1.msra.mxu0 0.0
  %3245 = vmatprep.mubr.f32.mxu0 0.0
  %3246 = vmatmul.mubr.f32.gmra.mrb[0].mxu0 %v3165
  %v3247 = vpop.f32.mrb[0].mxu0
  %v3248 = vadd.f32 0.0, %v3247
  %v3249 = vpop.f32.mrb[0].mxu0
  %3250 = vmatprep.mubr.f32.mxu0 0.0
  %3251 = vmatmul.mubr.f32.gmra.mrb[0].mxu0 %v3167
  %v3252 = vpop.f32.mrb[0].mxu0
  %v3253 = vadd.f32 0.0, %v3252
  %v3254 = vpop.f32.mrb[0].mxu0
  %3255 = vmatprep.mubr.f32.mxu0 0.0
  %3256 = vmatmul.mubr.f32.gmra.mrb[0].mxu0 %v3169
  %v3257 = vpop.f32.mrb[0].mxu0
  %v3258 = vadd.f32 0.0, %v3257
  %v3259 = vpop.f32.mrb[0].mxu0
  %3260 = vmatprep.mubr.f32.mxu0 0.0
  %3261 = vmatmul.mubr.f32.gmra.mrb[0].mxu0 %v3171
  %v3262 = vpop.f32.mrb[0].mxu0
  %v3263 = vadd.f32 0.0, %v3262
  %v3264 = vpop.f32.mrb[0].mxu0
  %3265 = vmatprep.mubr.f32.mxu0 0.0
  %3266 = vmatmul.mubr.f32.gmra.mrb[0].mxu0 %v3173
  %v3267 = vpop.f32.mrb[0].mxu0
  %v3268 = vadd.f32 0.0, %v3267
  %v3269 = vpop.f32.mrb[0].mxu0
  %3270 = vmatprep.mubr.f32.mxu0 0.0
  %3271 = vmatmul.mubr.f32.gmra.mrb[0].mxu0 %v3175
  %v3272 = vpop.f32.mrb[0].mxu0
  %v3273 = vadd.f32 0.0, %v3272
  %v3274 = vpop.f32.mrb[0].mxu0
  %3275 = vmatprep.mubr.f32.mxu0 0.0
  %3276 = vmatmul.mubr.f32.gmra.mrb[0].mxu0 %v3177
  %v3277 = vpop.f32.mrb[0].mxu0
  %v3278 = vadd.f32 0.0, %v3277
  %v3279 = vpop.f32.mrb[0].mxu0
  %3280 = vmatprep.mubr.f32.mxu0 0.0
  %3281 = vmatmul.mubr.f32.gmra.mrb[0].mxu0 %v3179
  %v3282 = vpop.f32.mrb[0].mxu0
  %v3283 = vadd.f32 0.0, %v3282
  %v3284 = vpop.f32.mrb[0].mxu0
  %3285 = vdwg.mxu0
  %v3286 = vadd.f32 %v3122, %v3248
  %v3287 = vadd.f32 %v3123, %v3253
  %v3288 = vadd.f32 %v3124, %v3258
  %v3289 = vadd.f32 %v3125, %v3263
  %v3290 = vadd.f32 %v3126, %v3268
  %v3291 = vadd.f32 %v3127, %v3273
  %v3292 = vadd.f32 %v3128, %v3278
  %v3293 = vadd.f32 %v3129, %v3283
  %v3294 = vrot.slane %v2623, 4
  %v3295 = vrot.slane %v2624, 4
  %v3296 = vsel %vm128, %v3294, %v3295
  %v3297 = vrot.slane %v2625, 4
  %v3298 = vrot.slane %v2626, 4
  %v3299 = vsel %vm128, %v3297, %v3298
  %v3300 = vrot.slane %v2627, 4
  %v3301 = vrot.slane %v2628, 4
  %v3302 = vsel %vm128, %v3300, %v3301
  %v3303 = vrot.slane %v2629, 4
  %v3304 = vrot.slane %v2630, 4
  %v3305 = vsel %vm128, %v3303, %v3304
  %v3306 = vrot.slane %v2631, 4
  %v3307 = vrot.slane %v2632, 4
  %v3308 = vsel %vm128, %v3306, %v3307
  %v3309 = vrot.slane %v2633, 4
  %v3310 = vrot.slane %v2634, 4
  %v3311 = vsel %vm128, %v3309, %v3310
  %v3312 = vrot.slane %v2635, 4
  %v3313 = vrot.slane %v2636, 4
  %v3314 = vsel %vm128, %v3312, %v3313
  %v3315 = vrot.slane %v2637, 4
  %v3316 = vrot.slane %v2638, 4
  %v3317 = vsel %vm128, %v3315, %v3316
  %s3318 = scalar_lea.vmem %s3, 288
  %v3319 = vld [vmem:[%s3318] sm:$0xff]
  %v3320 = vld [vmem:[%s3318 + $0x8] sm:$0xff]
  %v3321 = vld [vmem:[%s3318 + $0x10] sm:$0xff]
  %v3322 = vld [vmem:[%s3318 + $0x18] sm:$0xff]
  %v3323 = vld [vmem:[%s3318 + $0x20] sm:$0xff]
  %v3324 = vld [vmem:[%s3318 + $0x28] sm:$0xff]
  %v3325 = vld [vmem:[%s3318 + $0x30] sm:$0xff]
  %v3326 = vld [vmem:[%s3318 + $0x38] sm:$0xff]
  %v3327 = vld [vmem:[%s3318 + $0x40] sm:$0xff]
  %v3328 = vsel %vm2656, %v3296, 0
  %v3330 = vsel %vm2656, %v3299, 0
  %v3332 = vsel %vm2656, %v3302, 0
  %v3334 = vsel %vm2656, %v3305, 0
  %v3336 = vsel %vm2656, %v3308, 0
  %v3338 = vsel %vm2656, %v3311, 0
  %v3340 = vsel %vm2656, %v3314, 0
  %v3342 = vsel %vm2656, %v3317, 0
  %3344 = vmatprep.subr.mxu0 0.0
  %3345 = vmatpush1.msra.mxu0 %v3319
  %3346 = vmatprep.subr.mxu0 0.0
  %3347 = vmatpush1.msra.mxu0 %v3320
  %3348 = vmatprep.subr.mxu0 0.0
  %3349 = vmatpush1.msra.mxu0 %v3321
  %3350 = vmatprep.subr.mxu0 0.0
  %3351 = vmatpush1.msra.mxu0 %v3322
  %3352 = vmatprep.subr.mxu0 0.0
  %3353 = vmatpush1.msra.mxu0 %v3323
  %3354 = vmatprep.subr.mxu0 0.0
  %3355 = vmatpush1.msra.mxu0 %v3324
  %3356 = vmatprep.subr.mxu0 0.0
  %3357 = vmatpush1.msra.mxu0 %v3325
  %3358 = vmatprep.subr.mxu0 0.0
  %3359 = vmatpush1.msra.mxu0 %v3326
  %3360 = vmatprep.subr.mxu0 0.0
  %3361 = vmatpush1.msra.mxu0 %v3327
  %3362 = vmatprep.subr.mxu0 0.0
  %3363 = vmatpush1.msra.mxu0 0.0
  %3364 = vmatprep.subr.mxu0 0.0
  %3365 = vmatpush1.msra.mxu0 0.0
  %3366 = vmatprep.subr.mxu0 0.0
  %3367 = vmatpush1.msra.mxu0 0.0
  %3368 = vmatprep.subr.mxu0 0.0
  %3369 = vmatpush1.msra.mxu0 0.0
  %3370 = vmatprep.subr.mxu0 0.0
  %3371 = vmatpush1.msra.mxu0 0.0
  %3372 = vmatprep.subr.mxu0 0.0
  %3373 = vmatpush1.msra.mxu0 0.0
  %3374 = vmatprep.subr.mxu0 0.0
  %3375 = vmatpush1.msra.mxu0 0.0
  %3376 = vmatprep.subr.mxu0 0.0
  %3377 = vmatpush1.msra.mxu0 0.0
  %3378 = vmatprep.subr.mxu0 0.0
  %3379 = vmatpush1.msra.mxu0 0.0
  %3380 = vmatprep.subr.mxu0 0.0
  %3381 = vmatpush1.msra.mxu0 0.0
  %3382 = vmatprep.subr.mxu0 0.0
  %3383 = vmatpush1.msra.mxu0 0.0
  %3384 = vmatprep.subr.mxu0 0.0
  %3385 = vmatpush1.msra.mxu0 0.0
  %3386 = vmatprep.subr.mxu0 0.0
  %3387 = vmatpush1.msra.mxu0 0.0
  %3388 = vmatprep.subr.mxu0 0.0
  %3389 = vmatpush1.msra.mxu0 0.0
  %3390 = vmatprep.subr.mxu0 0.0
  %3391 = vmatpush1.msra.mxu0 0.0
  %3392 = vmatprep.subr.mxu0 0.0
  %3393 = vmatpush1.msra.mxu0 0.0
  %3394 = vmatprep.subr.mxu0 0.0
  %3395 = vmatpush1.msra.mxu0 0.0
  %3396 = vmatprep.subr.mxu0 0.0
  %3397 = vmatpush1.msra.mxu0 0.0
  %3398 = vmatprep.subr.mxu0 0.0
  %3399 = vmatpush1.msra.mxu0 0.0
  %3400 = vmatprep.subr.mxu0 0.0
  %3401 = vmatpush1.msra.mxu0 0.0
  %3402 = vmatprep.subr.mxu0 0.0
  %3403 = vmatpush1.msra.mxu0 0.0
  %3404 = vmatprep.subr.mxu0 0.0
  %3405 = vmatpush1.msra.mxu0 0.0
  %3406 = vmatprep.subr.mxu0 0.0
  %3407 = vmatpush1.msra.mxu0 0.0
  %3408 = vmatprep.mubr.f32.mxu0 0.0
  %3409 = vmatmul.mubr.f32.gmra.mrb[0].mxu0 %v3328
  %v3410 = vpop.f32.mrb[0].mxu0
  %v3411 = vadd.f32 0.0, %v3410
  %v3412 = vpop.f32.mrb[0].mxu0
  %3413 = vmatprep.mubr.f32.mxu0 0.0
  %3414 = vmatmul.mubr.f32.gmra.mrb[0].mxu0 %v3330
  %v3415 = vpop.f32.mrb[0].mxu0
  %v3416 = vadd.f32 0.0, %v3415
  %v3417 = vpop.f32.mrb[0].mxu0
  %3418 = vmatprep.mubr.f32.mxu0 0.0
  %3419 = vmatmul.mubr.f32.gmra.mrb[0].mxu0 %v3332
  %v3420 = vpop.f32.mrb[0].mxu0
  %v3421 = vadd.f32 0.0, %v3420
  %v3422 = vpop.f32.mrb[0].mxu0
  %3423 = vmatprep.mubr.f32.mxu0 0.0
  %3424 = vmatmul.mubr.f32.gmra.mrb[0].mxu0 %v3334
  %v3425 = vpop.f32.mrb[0].mxu0
  %v3426 = vadd.f32 0.0, %v3425
  %v3427 = vpop.f32.mrb[0].mxu0
  %3428 = vmatprep.mubr.f32.mxu0 0.0
  %3429 = vmatmul.mubr.f32.gmra.mrb[0].mxu0 %v3336
  %v3430 = vpop.f32.mrb[0].mxu0
  %v3431 = vadd.f32 0.0, %v3430
  %v3432 = vpop.f32.mrb[0].mxu0
  %3433 = vmatprep.mubr.f32.mxu0 0.0
  %3434 = vmatmul.mubr.f32.gmra.mrb[0].mxu0 %v3338
  %v3435 = vpop.f32.mrb[0].mxu0
  %v3436 = vadd.f32 0.0, %v3435
  %v3437 = vpop.f32.mrb[0].mxu0
  %3438 = vmatprep.mubr.f32.mxu0 0.0
  %3439 = vmatmul.mubr.f32.gmra.mrb[0].mxu0 %v3340
  %v3440 = vpop.f32.mrb[0].mxu0
  %v3441 = vadd.f32 0.0, %v3440
  %v3442 = vpop.f32.mrb[0].mxu0
  %3443 = vmatprep.mubr.f32.mxu0 0.0
  %3444 = vmatmul.mubr.f32.gmra.mrb[0].mxu0 %v3342
  %v3445 = vpop.f32.mrb[0].mxu0
  %v3446 = vadd.f32 0.0, %v3445
  %v3447 = vpop.f32.mrb[0].mxu0
  %3448 = vdwg.mxu0
  %v3449 = vadd.f32 %v3286, %v3411
  %v3450 = vadd.f32 %v3287, %v3416
  %v3451 = vadd.f32 %v3288, %v3421
  %v3452 = vadd.f32 %v3289, %v3426
  %v3453 = vadd.f32 %v3290, %v3431
  %v3454 = vadd.f32 %v3291, %v3436
  %v3455 = vadd.f32 %v3292, %v3441
  %v3456 = vadd.f32 %v3293, %v3446
  %3465 = vrot.lane.b32.xlu0 %v3449, 64
  %v3466 = vpop.permute.xlu0 %3465
  %3467 = vrot.lane.b32.xlu0 %v3450, 64
  %v3468 = vpop.permute.xlu0 %3467
  %3469 = vrot.lane.b32.xlu0 %v3451, 64
  %v3470 = vpop.permute.xlu0 %3469
  %3471 = vrot.lane.b32.xlu0 %v3452, 64
  %v3472 = vpop.permute.xlu0 %3471
  %3473 = vrot.lane.b32.xlu0 %v3453, 64
  %v3474 = vpop.permute.xlu0 %3473
  %3475 = vrot.lane.b32.xlu0 %v3454, 64
  %v3476 = vpop.permute.xlu0 %3475
  %3477 = vrot.lane.b32.xlu0 %v3455, 64
  %v3478 = vpop.permute.xlu0 %3477
  %3479 = vrot.lane.b32.xlu0 %v3456, 64
  %v3480 = vpop.permute.xlu0 %3479
  %v3489 = vadd.f32 %v3449, %v3466
  %v3490 = vadd.f32 %v3450, %v3468
  %v3491 = vadd.f32 %v3451, %v3470
  %v3492 = vadd.f32 %v3452, %v3472
  %v3493 = vadd.f32 %v3453, %v3474
  %v3494 = vadd.f32 %v3454, %v3476
  %v3495 = vadd.f32 %v3455, %v3478
  %v3496 = vadd.f32 %v3456, %v3480
  %v3497 = vld [vmem:[%s5] sm:$0xff]
  %v3498 = vld [vmem:[%s5 + $0x8] sm:$0xff]
  %v3499 = vld [vmem:[%s5 + $0x10] sm:$0xff]
  %v3500 = vld [vmem:[%s5 + $0x18] sm:$0xff]
  %vm3501 = vcmask 523264
  %v3503 = vsel %vm3501, %v3497, 0
  %v3506 = vsel %vm3501, %v3498, 0
  %v3509 = vsel %vm3501, %v3499, 0
  %v3512 = vsel %vm3501, %v3500, 0
  %3514 = vmatprep.subr.mxu0 0.0
  %3515 = vmatpush1.msra.mxu0 %v3489
  %3516 = vmatprep.subr.mxu0 0.0
  %3517 = vmatpush1.msra.mxu0 %v3490
  %3518 = vmatprep.subr.mxu0 0.0
  %3519 = vmatpush1.msra.mxu0 %v3491
  %3520 = vmatprep.subr.mxu0 0.0
  %3521 = vmatpush1.msra.mxu0 %v3492
  %3522 = vmatprep.subr.mxu0 0.0
  %3523 = vmatpush1.msra.mxu0 %v3493
  %3524 = vmatprep.subr.mxu0 0.0
  %3525 = vmatpush1.msra.mxu0 %v3494
  %3526 = vmatprep.subr.mxu0 0.0
  %3527 = vmatpush1.msra.mxu0 %v3495
  %3528 = vmatprep.subr.mxu0 0.0
  %3529 = vmatpush1.msra.mxu0 %v3496
  %3530 = vmatprep.subr.mxu0 0.0
  %3531 = vmatpush1.msra.mxu0 0.0
  %3532 = vmatprep.subr.mxu0 0.0
  %3533 = vmatpush1.msra.mxu0 0.0
  %3534 = vmatprep.subr.mxu0 0.0
  %3535 = vmatpush1.msra.mxu0 0.0
  %3536 = vmatprep.subr.mxu0 0.0
  %3537 = vmatpush1.msra.mxu0 0.0
  %3538 = vmatprep.subr.mxu0 0.0
  %3539 = vmatpush1.msra.mxu0 0.0
  %3540 = vmatprep.subr.mxu0 0.0
  %3541 = vmatpush1.msra.mxu0 0.0
  %3542 = vmatprep.subr.mxu0 0.0
  %3543 = vmatpush1.msra.mxu0 0.0
  %3544 = vmatprep.subr.mxu0 0.0
  %3545 = vmatpush1.msra.mxu0 0.0
  %3546 = vmatprep.subr.mxu0 0.0
  %3547 = vmatpush1.msra.mxu0 0.0
  %3548 = vmatprep.subr.mxu0 0.0
  %3549 = vmatpush1.msra.mxu0 0.0
  %3550 = vmatprep.subr.mxu0 0.0
  %3551 = vmatpush1.msra.mxu0 0.0
  %3552 = vmatprep.subr.mxu0 0.0
  %3553 = vmatpush1.msra.mxu0 0.0
  %3554 = vmatprep.subr.mxu0 0.0
  %3555 = vmatpush1.msra.mxu0 0.0
  %3556 = vmatprep.subr.mxu0 0.0
  %3557 = vmatpush1.msra.mxu0 0.0
  %3558 = vmatprep.subr.mxu0 0.0
  %3559 = vmatpush1.msra.mxu0 0.0
  %3560 = vmatprep.subr.mxu0 0.0
  %3561 = vmatpush1.msra.mxu0 0.0
  %3562 = vmatprep.subr.mxu0 0.0
  %3563 = vmatpush1.msra.mxu0 0.0
  %3564 = vmatprep.subr.mxu0 0.0
  %3565 = vmatpush1.msra.mxu0 0.0
  %3566 = vmatprep.subr.mxu0 0.0
  %3567 = vmatpush1.msra.mxu0 0.0
  %3568 = vmatprep.subr.mxu0 0.0
  %3569 = vmatpush1.msra.mxu0 0.0
  %3570 = vmatprep.subr.mxu0 0.0
  %3571 = vmatpush1.msra.mxu0 0.0
  %3572 = vmatprep.subr.mxu0 0.0
  %3573 = vmatpush1.msra.mxu0 0.0
  %3574 = vmatprep.subr.mxu0 0.0
  %3575 = vmatpush1.msra.mxu0 0.0
  %3576 = vmatprep.subr.mxu0 0.0
  %3577 = vmatpush1.msra.mxu0 0.0
  %3578 = vmatprep.mubr.f32.mxu0 0.0
  %3579 = vmatmul.mubr.f32.gmra.mrb[0].mxu0 %v3503
  %v3580 = vpop.f32.mrb[0].mxu0
  %v3581 = vadd.f32 0.0, %v3580
  %v3582 = vpop.f32.mrb[0].mxu0
  %3583 = vmatprep.mubr.f32.mxu0 0.0
  %3584 = vmatmul.mubr.f32.gmra.mrb[0].mxu0 %v3506
  %v3585 = vpop.f32.mrb[0].mxu0
  %v3586 = vadd.f32 0.0, %v3585
  %v3587 = vpop.f32.mrb[0].mxu0
  %3588 = vmatprep.mubr.f32.mxu0 0.0
  %3589 = vmatmul.mubr.f32.gmra.mrb[0].mxu0 %v3509
  %v3590 = vpop.f32.mrb[0].mxu0
  %v3591 = vadd.f32 0.0, %v3590
  %v3592 = vpop.f32.mrb[0].mxu0
  %3593 = vmatprep.mubr.f32.mxu0 0.0
  %3594 = vmatmul.mubr.f32.gmra.mrb[0].mxu0 %v3512
  %v3595 = vpop.f32.mrb[0].mxu0
  %v3596 = vadd.f32 0.0, %v3595
  %v3597 = vpop.f32.mrb[0].mxu0
  %3598 = vdwg.mxu0
  %v3599 = vmax.f32 %v3581, 0.0
  %v3600 = vmax.f32 %v3586, 0.0
  %v3601 = vmax.f32 %v3591, 0.0
  %v3602 = vmax.f32 %v3596, 0.0
  %v3603 = vld [vmem:[%s7] sm:$0x1]
  %v3605 = vlaneseq
  %v3606 = vshrl.u32 %v3605, 7
  %v3607 = vsub.s32 0, %v3606
  %v3608 = vrot.slane %v3603, %v3607
  %v3610 = vadd.f32 %v3608, 0.0
  %v3611 = vld [vmem:[%s6] sm:$0xff]
  %v3612 = vld [vmem:[%s6 + $0x8] sm:$0xff]
  %v3613 = vld [vmem:[%s6 + $0x10] sm:$0xff]
  %v3614 = vld [vmem:[%s6 + $0x18] sm:$0xff]
  %v3615 = vld [vmem:[%s6 + $0x20] sm:$0xff]
  %v3616 = vld [vmem:[%s6 + $0x28] sm:$0xff]
  %v3617 = vld [vmem:[%s6 + $0x30] sm:$0xff]
  %v3618 = vld [vmem:[%s6 + $0x38] sm:$0xff]
  %v3620 = vsel %vm3501, %v3599, 0
  %3622 = vmatprep.subr.mxu0 0.0
  %3623 = vmatpush1.msra.mxu0 %v3611
  %3624 = vmatprep.subr.mxu0 0.0
  %3625 = vmatpush1.msra.mxu0 %v3612
  %3626 = vmatprep.subr.mxu0 0.0
  %3627 = vmatpush1.msra.mxu0 %v3613
  %3628 = vmatprep.subr.mxu0 0.0
  %3629 = vmatpush1.msra.mxu0 %v3614
  %3630 = vmatprep.subr.mxu0 0.0
  %3631 = vmatpush1.msra.mxu0 %v3615
  %3632 = vmatprep.subr.mxu0 0.0
  %3633 = vmatpush1.msra.mxu0 %v3616
  %3634 = vmatprep.subr.mxu0 0.0
  %3635 = vmatpush1.msra.mxu0 %v3617
  %3636 = vmatprep.subr.mxu0 0.0
  %3637 = vmatpush1.msra.mxu0 %v3618
  %3638 = vmatprep.subr.mxu0 0.0
  %3639 = vmatpush1.msra.mxu0 0.0
  %3640 = vmatprep.subr.mxu0 0.0
  %3641 = vmatpush1.msra.mxu0 0.0
  %3642 = vmatprep.subr.mxu0 0.0
  %3643 = vmatpush1.msra.mxu0 0.0
  %3644 = vmatprep.subr.mxu0 0.0
  %3645 = vmatpush1.msra.mxu0 0.0
  %3646 = vmatprep.subr.mxu0 0.0
  %3647 = vmatpush1.msra.mxu0 0.0
  %3648 = vmatprep.subr.mxu0 0.0
  %3649 = vmatpush1.msra.mxu0 0.0
  %3650 = vmatprep.subr.mxu0 0.0
  %3651 = vmatpush1.msra.mxu0 0.0
  %3652 = vmatprep.subr.mxu0 0.0
  %3653 = vmatpush1.msra.mxu0 0.0
  %3654 = vmatprep.subr.mxu0 0.0
  %3655 = vmatpush1.msra.mxu0 0.0
  %3656 = vmatprep.subr.mxu0 0.0
  %3657 = vmatpush1.msra.mxu0 0.0
  %3658 = vmatprep.subr.mxu0 0.0
  %3659 = vmatpush1.msra.mxu0 0.0
  %3660 = vmatprep.subr.mxu0 0.0
  %3661 = vmatpush1.msra.mxu0 0.0
  %3662 = vmatprep.subr.mxu0 0.0
  %3663 = vmatpush1.msra.mxu0 0.0
  %3664 = vmatprep.subr.mxu0 0.0
  %3665 = vmatpush1.msra.mxu0 0.0
  %3666 = vmatprep.subr.mxu0 0.0
  %3667 = vmatpush1.msra.mxu0 0.0
  %3668 = vmatprep.subr.mxu0 0.0
  %3669 = vmatpush1.msra.mxu0 0.0
  %3670 = vmatprep.subr.mxu0 0.0
  %3671 = vmatpush1.msra.mxu0 0.0
  %3672 = vmatprep.subr.mxu0 0.0
  %3673 = vmatpush1.msra.mxu0 0.0
  %3674 = vmatprep.subr.mxu0 0.0
  %3675 = vmatpush1.msra.mxu0 0.0
  %3676 = vmatprep.subr.mxu0 0.0
  %3677 = vmatpush1.msra.mxu0 0.0
  %3678 = vmatprep.subr.mxu0 0.0
  %3679 = vmatpush1.msra.mxu0 0.0
  %3680 = vmatprep.subr.mxu0 0.0
  %3681 = vmatpush1.msra.mxu0 0.0
  %3682 = vmatprep.subr.mxu0 0.0
  %3683 = vmatpush1.msra.mxu0 0.0
  %3684 = vmatprep.subr.mxu0 0.0
  %3685 = vmatpush1.msra.mxu0 0.0
  %3686 = vmatprep.mubr.f32.mxu0 0.0
  %3687 = vmatmul.mubr.f32.gmra.mrb[0].mxu0 %v3620
  %v3688 = vpop.f32.mrb[0].mxu0
  %v3689 = vadd.f32 0.0, %v3688
  %v3690 = vpop.f32.mrb[0].mxu0
  %3691 = vdwg.mxu0
  %v3692 = vadd.f32 %v3610, %v3689
  %s3693 = scalar_lea.vmem %s6, 64
  %v3694 = vld [vmem:[%s3693] sm:$0xff]
  %v3695 = vld [vmem:[%s3693 + $0x8] sm:$0xff]
  %v3696 = vld [vmem:[%s3693 + $0x10] sm:$0xff]
  %v3697 = vld [vmem:[%s3693 + $0x18] sm:$0xff]
  %v3698 = vld [vmem:[%s3693 + $0x20] sm:$0xff]
  %v3699 = vld [vmem:[%s3693 + $0x28] sm:$0xff]
  %v3700 = vld [vmem:[%s3693 + $0x30] sm:$0xff]
  %v3701 = vld [vmem:[%s3693 + $0x38] sm:$0xff]
  %v3703 = vsel %vm3501, %v3600, 0
  %3705 = vmatprep.subr.mxu0 0.0
  %3706 = vmatpush1.msra.mxu0 %v3694
  %3707 = vmatprep.subr.mxu0 0.0
  %3708 = vmatpush1.msra.mxu0 %v3695
  %3709 = vmatprep.subr.mxu0 0.0
  %3710 = vmatpush1.msra.mxu0 %v3696
  %3711 = vmatprep.subr.mxu0 0.0
  %3712 = vmatpush1.msra.mxu0 %v3697
  %3713 = vmatprep.subr.mxu0 0.0
  %3714 = vmatpush1.msra.mxu0 %v3698
  %3715 = vmatprep.subr.mxu0 0.0
  %3716 = vmatpush1.msra.mxu0 %v3699
  %3717 = vmatprep.subr.mxu0 0.0
  %3718 = vmatpush1.msra.mxu0 %v3700
  %3719 = vmatprep.subr.mxu0 0.0
  %3720 = vmatpush1.msra.mxu0 %v3701
  %3721 = vmatprep.subr.mxu0 0.0
  %3722 = vmatpush1.msra.mxu0 0.0
  %3723 = vmatprep.subr.mxu0 0.0
  %3724 = vmatpush1.msra.mxu0 0.0
  %3725 = vmatprep.subr.mxu0 0.0
  %3726 = vmatpush1.msra.mxu0 0.0
  %3727 = vmatprep.subr.mxu0 0.0
  %3728 = vmatpush1.msra.mxu0 0.0
  %3729 = vmatprep.subr.mxu0 0.0
  %3730 = vmatpush1.msra.mxu0 0.0
  %3731 = vmatprep.subr.mxu0 0.0
  %3732 = vmatpush1.msra.mxu0 0.0
  %3733 = vmatprep.subr.mxu0 0.0
  %3734 = vmatpush1.msra.mxu0 0.0
  %3735 = vmatprep.subr.mxu0 0.0
  %3736 = vmatpush1.msra.mxu0 0.0
  %3737 = vmatprep.subr.mxu0 0.0
  %3738 = vmatpush1.msra.mxu0 0.0
  %3739 = vmatprep.subr.mxu0 0.0
  %3740 = vmatpush1.msra.mxu0 0.0
  %3741 = vmatprep.subr.mxu0 0.0
  %3742 = vmatpush1.msra.mxu0 0.0
  %3743 = vmatprep.subr.mxu0 0.0
  %3744 = vmatpush1.msra.mxu0 0.0
  %3745 = vmatprep.subr.mxu0 0.0
  %3746 = vmatpush1.msra.mxu0 0.0
  %3747 = vmatprep.subr.mxu0 0.0
  %3748 = vmatpush1.msra.mxu0 0.0
  %3749 = vmatprep.subr.mxu0 0.0
  %3750 = vmatpush1.msra.mxu0 0.0
  %3751 = vmatprep.subr.mxu0 0.0
  %3752 = vmatpush1.msra.mxu0 0.0
  %3753 = vmatprep.subr.mxu0 0.0
  %3754 = vmatpush1.msra.mxu0 0.0
  %3755 = vmatprep.subr.mxu0 0.0
  %3756 = vmatpush1.msra.mxu0 0.0
  %3757 = vmatprep.subr.mxu0 0.0
  %3758 = vmatpush1.msra.mxu0 0.0
  %3759 = vmatprep.subr.mxu0 0.0
  %3760 = vmatpush1.msra.mxu0 0.0
  %3761 = vmatprep.subr.mxu0 0.0
  %3762 = vmatpush1.msra.mxu0 0.0
  %3763 = vmatprep.subr.mxu0 0.0
  %3764 = vmatpush1.msra.mxu0 0.0
  %3765 = vmatprep.subr.mxu0 0.0
  %3766 = vmatpush1.msra.mxu0 0.0
  %3767 = vmatprep.subr.mxu0 0.0
  %3768 = vmatpush1.msra.mxu0 0.0
  %3769 = vmatprep.mubr.f32.mxu0 0.0
  %3770 = vmatmul.mubr.f32.gmra.mrb[0].mxu0 %v3703
  %v3771 = vpop.f32.mrb[0].mxu0
  %v3772 = vadd.f32 0.0, %v3771
  %v3773 = vpop.f32.mrb[0].mxu0
  %3774 = vdwg.mxu0
  %v3775 = vadd.f32 %v3692, %v3772
  %s3776 = scalar_lea.vmem %s6, 128
  %v3777 = vld [vmem:[%s3776] sm:$0xff]
  %v3778 = vld [vmem:[%s3776 + $0x8] sm:$0xff]
  %v3779 = vld [vmem:[%s3776 + $0x10] sm:$0xff]
  %v3780 = vld [vmem:[%s3776 + $0x18] sm:$0xff]
  %v3781 = vld [vmem:[%s3776 + $0x20] sm:$0xff]
  %v3782 = vld [vmem:[%s3776 + $0x28] sm:$0xff]
  %v3783 = vld [vmem:[%s3776 + $0x30] sm:$0xff]
  %v3784 = vld [vmem:[%s3776 + $0x38] sm:$0xff]
  %v3786 = vsel %vm3501, %v3601, 0
  %3788 = vmatprep.subr.mxu0 0.0
  %3789 = vmatpush1.msra.mxu0 %v3777
  %3790 = vmatprep.subr.mxu0 0.0
  %3791 = vmatpush1.msra.mxu0 %v3778
  %3792 = vmatprep.subr.mxu0 0.0
  %3793 = vmatpush1.msra.mxu0 %v3779
  %3794 = vmatprep.subr.mxu0 0.0
  %3795 = vmatpush1.msra.mxu0 %v3780
  %3796 = vmatprep.subr.mxu0 0.0
  %3797 = vmatpush1.msra.mxu0 %v3781
  %3798 = vmatprep.subr.mxu0 0.0
  %3799 = vmatpush1.msra.mxu0 %v3782
  %3800 = vmatprep.subr.mxu0 0.0
  %3801 = vmatpush1.msra.mxu0 %v3783
  %3802 = vmatprep.subr.mxu0 0.0
  %3803 = vmatpush1.msra.mxu0 %v3784
  %3804 = vmatprep.subr.mxu0 0.0
  %3805 = vmatpush1.msra.mxu0 0.0
  %3806 = vmatprep.subr.mxu0 0.0
  %3807 = vmatpush1.msra.mxu0 0.0
  %3808 = vmatprep.subr.mxu0 0.0
  %3809 = vmatpush1.msra.mxu0 0.0
  %3810 = vmatprep.subr.mxu0 0.0
  %3811 = vmatpush1.msra.mxu0 0.0
  %3812 = vmatprep.subr.mxu0 0.0
  %3813 = vmatpush1.msra.mxu0 0.0
  %3814 = vmatprep.subr.mxu0 0.0
  %3815 = vmatpush1.msra.mxu0 0.0
  %3816 = vmatprep.subr.mxu0 0.0
  %3817 = vmatpush1.msra.mxu0 0.0
  %3818 = vmatprep.subr.mxu0 0.0
  %3819 = vmatpush1.msra.mxu0 0.0
  %3820 = vmatprep.subr.mxu0 0.0
  %3821 = vmatpush1.msra.mxu0 0.0
  %3822 = vmatprep.subr.mxu0 0.0
  %3823 = vmatpush1.msra.mxu0 0.0
  %3824 = vmatprep.subr.mxu0 0.0
  %3825 = vmatpush1.msra.mxu0 0.0
  %3826 = vmatprep.subr.mxu0 0.0
  %3827 = vmatpush1.msra.mxu0 0.0
  %3828 = vmatprep.subr.mxu0 0.0
  %3829 = vmatpush1.msra.mxu0 0.0
  %3830 = vmatprep.subr.mxu0 0.0
  %3831 = vmatpush1.msra.mxu0 0.0
  %3832 = vmatprep.subr.mxu0 0.0
  %3833 = vmatpush1.msra.mxu0 0.0
  %3834 = vmatprep.subr.mxu0 0.0
  %3835 = vmatpush1.msra.mxu0 0.0
  %3836 = vmatprep.subr.mxu0 0.0
  %3837 = vmatpush1.msra.mxu0 0.0
  %3838 = vmatprep.subr.mxu0 0.0
  %3839 = vmatpush1.msra.mxu0 0.0
  %3840 = vmatprep.subr.mxu0 0.0
  %3841 = vmatpush1.msra.mxu0 0.0
  %3842 = vmatprep.subr.mxu0 0.0
  %3843 = vmatpush1.msra.mxu0 0.0
  %3844 = vmatprep.subr.mxu0 0.0
  %3845 = vmatpush1.msra.mxu0 0.0
  %3846 = vmatprep.subr.mxu0 0.0
  %3847 = vmatpush1.msra.mxu0 0.0
  %3848 = vmatprep.subr.mxu0 0.0
  %3849 = vmatpush1.msra.mxu0 0.0
  %3850 = vmatprep.subr.mxu0 0.0
  %3851 = vmatpush1.msra.mxu0 0.0
  %3852 = vmatprep.mubr.f32.mxu0 0.0
  %3853 = vmatmul.mubr.f32.gmra.mrb[0].mxu0 %v3786
  %v3854 = vpop.f32.mrb[0].mxu0
  %v3855 = vadd.f32 0.0, %v3854
  %v3856 = vpop.f32.mrb[0].mxu0
  %3857 = vdwg.mxu0
  %v3858 = vadd.f32 %v3775, %v3855
  %s3859 = scalar_lea.vmem %s6, 192
  %v3860 = vld [vmem:[%s3859] sm:$0xff]
  %v3861 = vld [vmem:[%s3859 + $0x8] sm:$0xff]
  %v3862 = vld [vmem:[%s3859 + $0x10] sm:$0xff]
  %v3863 = vld [vmem:[%s3859 + $0x18] sm:$0xff]
  %v3864 = vld [vmem:[%s3859 + $0x20] sm:$0xff]
  %v3865 = vld [vmem:[%s3859 + $0x28] sm:$0xff]
  %v3866 = vld [vmem:[%s3859 + $0x30] sm:$0xff]
  %v3867 = vld [vmem:[%s3859 + $0x38] sm:$0xff]
  %v3869 = vsel %vm3501, %v3602, 0
  %3871 = vmatprep.subr.mxu0 0.0
  %3872 = vmatpush1.msra.mxu0 %v3860
  %3873 = vmatprep.subr.mxu0 0.0
  %3874 = vmatpush1.msra.mxu0 %v3861
  %3875 = vmatprep.subr.mxu0 0.0
  %3876 = vmatpush1.msra.mxu0 %v3862
  %3877 = vmatprep.subr.mxu0 0.0
  %3878 = vmatpush1.msra.mxu0 %v3863
  %3879 = vmatprep.subr.mxu0 0.0
  %3880 = vmatpush1.msra.mxu0 %v3864
  %3881 = vmatprep.subr.mxu0 0.0
  %3882 = vmatpush1.msra.mxu0 %v3865
  %3883 = vmatprep.subr.mxu0 0.0
  %3884 = vmatpush1.msra.mxu0 %v3866
  %3885 = vmatprep.subr.mxu0 0.0
  %3886 = vmatpush1.msra.mxu0 %v3867
  %3887 = vmatprep.subr.mxu0 0.0
  %3888 = vmatpush1.msra.mxu0 0.0
  %3889 = vmatprep.subr.mxu0 0.0
  %3890 = vmatpush1.msra.mxu0 0.0
  %3891 = vmatprep.subr.mxu0 0.0
  %3892 = vmatpush1.msra.mxu0 0.0
  %3893 = vmatprep.subr.mxu0 0.0
  %3894 = vmatpush1.msra.mxu0 0.0
  %3895 = vmatprep.subr.mxu0 0.0
  %3896 = vmatpush1.msra.mxu0 0.0
  %3897 = vmatprep.subr.mxu0 0.0
  %3898 = vmatpush1.msra.mxu0 0.0
  %3899 = vmatprep.subr.mxu0 0.0
  %3900 = vmatpush1.msra.mxu0 0.0
  %3901 = vmatprep.subr.mxu0 0.0
  %3902 = vmatpush1.msra.mxu0 0.0
  %3903 = vmatprep.subr.mxu0 0.0
  %3904 = vmatpush1.msra.mxu0 0.0
  %3905 = vmatprep.subr.mxu0 0.0
  %3906 = vmatpush1.msra.mxu0 0.0
  %3907 = vmatprep.subr.mxu0 0.0
  %3908 = vmatpush1.msra.mxu0 0.0
  %3909 = vmatprep.subr.mxu0 0.0
  %3910 = vmatpush1.msra.mxu0 0.0
  %3911 = vmatprep.subr.mxu0 0.0
  %3912 = vmatpush1.msra.mxu0 0.0
  %3913 = vmatprep.subr.mxu0 0.0
  %3914 = vmatpush1.msra.mxu0 0.0
  %3915 = vmatprep.subr.mxu0 0.0
  %3916 = vmatpush1.msra.mxu0 0.0
  %3917 = vmatprep.subr.mxu0 0.0
  %3918 = vmatpush1.msra.mxu0 0.0
  %3919 = vmatprep.subr.mxu0 0.0
  %3920 = vmatpush1.msra.mxu0 0.0
  %3921 = vmatprep.subr.mxu0 0.0
  %3922 = vmatpush1.msra.mxu0 0.0
  %3923 = vmatprep.subr.mxu0 0.0
  %3924 = vmatpush1.msra.mxu0 0.0
  %3925 = vmatprep.subr.mxu0 0.0
  %3926 = vmatpush1.msra.mxu0 0.0
  %3927 = vmatprep.subr.mxu0 0.0
  %3928 = vmatpush1.msra.mxu0 0.0
  %3929 = vmatprep.subr.mxu0 0.0
  %3930 = vmatpush1.msra.mxu0 0.0
  %3931 = vmatprep.subr.mxu0 0.0
  %3932 = vmatpush1.msra.mxu0 0.0
  %3933 = vmatprep.subr.mxu0 0.0
  %3934 = vmatpush1.msra.mxu0 0.0
  %3935 = vmatprep.mubr.f32.mxu0 0.0
  %3936 = vmatmul.mubr.f32.gmra.mrb[0].mxu0 %v3869
  %v3937 = vpop.f32.mrb[0].mxu0
  %v3938 = vadd.f32 0.0, %v3937
  %v3939 = vpop.f32.mrb[0].mxu0
  %3940 = vdwg.mxu0
  %v3941 = vadd.f32 %v3858, %v3938
  %v3942 = vmax.f32 %v3941, 0.0
  %v3943 = vld [vmem:[%s8] sm:$0xff]
  %v3944 = vld [vmem:[%s8 + $0x8] sm:$0xff]
  %v3945 = vld [vmem:[%s8 + $0x10] sm:$0xff]
  %v3946 = vld [vmem:[%s8 + $0x18] sm:$0xff]
  %v3947 = vld [vmem:[%s8 + $0x20] sm:$0xff]
  %v3948 = vld [vmem:[%s8 + $0x28] sm:$0xff]
  %v3949 = vld [vmem:[%s8 + $0x30] sm:$0xff]
  %v3950 = vld [vmem:[%s8 + $0x38] sm:$0xff]
  %v3951 = vld [vmem:[%s8 + $0x40] sm:$0xff]
  %v3952 = vld [vmem:[%s8 + $0x48] sm:$0xff]
  %v3953 = vld [vmem:[%s8 + $0x50] sm:$0xff]
  %v3954 = vld [vmem:[%s8 + $0x58] sm:$0xff]
  %v3955 = vld [vmem:[%s8 + $0x60] sm:$0xff]
  %v3956 = vld [vmem:[%s8 + $0x68] sm:$0xff]
  %v3957 = vld [vmem:[%s8 + $0x70] sm:$0xff]
  %v3958 = vld [vmem:[%s9] sm:$0x1]
  %v3960 = vlaneseq
  %v3961 = vshrl.u32 %v3960, 7
  %v3962 = vsub.s32 0, %v3961
  %v3963 = vrot.slane %v3958, %v3962
  %vm3965 = vcmask 982016
  %v3967 = vsel %vm3965, %v3942, 0
  %3969 = vmatprep.subr.mxu0 0.0
  %3970 = vmatpush1.msra.mxu0 %v3943
  %3971 = vmatprep.subr.mxu0 0.0
  %3972 = vmatpush1.msra.mxu0 %v3944
  %3973 = vmatprep.subr.mxu0 0.0
  %3974 = vmatpush1.msra.mxu0 %v3945
  %3975 = vmatprep.subr.mxu0 0.0
  %3976 = vmatpush1.msra.mxu0 %v3946
  %3977 = vmatprep.subr.mxu0 0.0
  %3978 = vmatpush1.msra.mxu0 %v3947
  %3979 = vmatprep.subr.mxu0 0.0
  %3980 = vmatpush1.msra.mxu0 %v3948
  %3981 = vmatprep.subr.mxu0 0.0
  %3982 = vmatpush1.msra.mxu0 %v3949
  %3983 = vmatprep.subr.mxu0 0.0
  %3984 = vmatpush1.msra.mxu0 %v3950
  %3985 = vmatprep.subr.mxu0 0.0
  %3986 = vmatpush1.msra.mxu0 %v3951
  %3987 = vmatprep.subr.mxu0 0.0
  %3988 = vmatpush1.msra.mxu0 %v3952
  %3989 = vmatprep.subr.mxu0 0.0
  %3990 = vmatpush1.msra.mxu0 %v3953
  %3991 = vmatprep.subr.mxu0 0.0
  %3992 = vmatpush1.msra.mxu0 %v3954
  %3993 = vmatprep.subr.mxu0 0.0
  %3994 = vmatpush1.msra.mxu0 %v3955
  %3995 = vmatprep.subr.mxu0 0.0
  %3996 = vmatpush1.msra.mxu0 %v3956
  %3997 = vmatprep.subr.mxu0 0.0
  %3998 = vmatpush1.msra.mxu0 %v3957
  %3999 = vmatprep.subr.mxu0 0.0
  %4000 = vmatpush1.msra.mxu0 0.0
  %4001 = vmatprep.subr.mxu0 0.0
  %4002 = vmatpush1.msra.mxu0 0.0
  %4003 = vmatprep.subr.mxu0 0.0
  %4004 = vmatpush1.msra.mxu0 0.0
  %4005 = vmatprep.subr.mxu0 0.0
  %4006 = vmatpush1.msra.mxu0 0.0
  %4007 = vmatprep.subr.mxu0 0.0
  %4008 = vmatpush1.msra.mxu0 0.0
  %4009 = vmatprep.subr.mxu0 0.0
  %4010 = vmatpush1.msra.mxu0 0.0
  %4011 = vmatprep.subr.mxu0 0.0
  %4012 = vmatpush1.msra.mxu0 0.0
  %4013 = vmatprep.subr.mxu0 0.0
  %4014 = vmatpush1.msra.mxu0 0.0
  %4015 = vmatprep.subr.mxu0 0.0
  %4016 = vmatpush1.msra.mxu0 0.0
  %4017 = vmatprep.subr.mxu0 0.0
  %4018 = vmatpush1.msra.mxu0 0.0
  %4019 = vmatprep.subr.mxu0 0.0
  %4020 = vmatpush1.msra.mxu0 0.0
  %4021 = vmatprep.subr.mxu0 0.0
  %4022 = vmatpush1.msra.mxu0 0.0
  %4023 = vmatprep.subr.mxu0 0.0
  %4024 = vmatpush1.msra.mxu0 0.0
  %4025 = vmatprep.subr.mxu0 0.0
  %4026 = vmatpush1.msra.mxu0 0.0
  %4027 = vmatprep.subr.mxu0 0.0
  %4028 = vmatpush1.msra.mxu0 0.0
  %4029 = vmatprep.subr.mxu0 0.0
  %4030 = vmatpush1.msra.mxu0 0.0
  %4031 = vmatprep.subr.mxu0 0.0
  %4032 = vmatpush1.msra.mxu0 0.0
  %4033 = vmatprep.mubr.f32.mxu0 0.0
  %4034 = vmatmul.mubr.f32.gmra.mrb[0].mxu0 %v3967
  %v4035 = vpop.f32.mrb[0].mxu0
  %v4036 = vadd.f32 %v3963, %v4035
  %v4037 = vpop.f32.mrb[0].mxu0
  %4038 = vdwg.mxu0
  %v4039 = vmax.f32 %v4036, 0.0
  %v4040 = vld [vmem:[%s10] sm:$0xff]
  %v4041 = vld [vmem:[%s10 + $0x8] sm:$0xff]
  %v4042 = vld [vmem:[%s10 + $0x10] sm:$0xff]
  %v4043 = vld [vmem:[%s10 + $0x18] sm:$0xff]
  %v4044 = vld [vmem:[%s10 + $0x20] sm:$0xff]
  %v4045 = vld [vmem:[%s10 + $0x28] sm:$0xff]
  %v4046 = vld [vmem:[%s10 + $0x30] sm:$0xff]
  %v4047 = vld [vmem:[%s10 + $0x38] sm:$0xff]
  %v4048 = vld [vmem:[%s10 + $0x40] sm:$0xff]
  %v4049 = vld [vmem:[%s10 + $0x48] sm:$0xff]
  %v4050 = vld [vmem:[%s10 + $0x50] sm:$0xf]
  %v4051 = vld [vmem:[%s11] sm:$0x1]
  %v4053 = vlaneseq
  %v4054 = vshrl.u32 %v4053, 7
  %v4055 = vsub.s32 0, %v4054
  %v4056 = vrot.slane %v4051, %v4055
  %vm4058 = vcmask 687104
  %v4060 = vsel %vm4058, %v4039, 0
  %v4063 = vsel %vm128, %v4050, 0
  %4065 = vmatprep.subr.mxu0 0.0
  %4066 = vmatpush1.msra.mxu0 %v4040
  %4067 = vmatprep.subr.mxu0 0.0
  %4068 = vmatpush1.msra.mxu0 %v4041
  %4069 = vmatprep.subr.mxu0 0.0
  %4070 = vmatpush1.msra.mxu0 %v4042
  %4071 = vmatprep.subr.mxu0 0.0
  %4072 = vmatpush1.msra.mxu0 %v4043
  %4073 = vmatprep.subr.mxu0 0.0
  %4074 = vmatpush1.msra.mxu0 %v4044
  %4075 = vmatprep.subr.mxu0 0.0
  %4076 = vmatpush1.msra.mxu0 %v4045
  %4077 = vmatprep.subr.mxu0 0.0
  %4078 = vmatpush1.msra.mxu0 %v4046
  %4079 = vmatprep.subr.mxu0 0.0
  %4080 = vmatpush1.msra.mxu0 %v4047
  %4081 = vmatprep.subr.mxu0 0.0
  %4082 = vmatpush1.msra.mxu0 %v4048
  %4083 = vmatprep.subr.mxu0 0.0
  %4084 = vmatpush1.msra.mxu0 %v4049
  %4085 = vmatprep.subr.mxu0 0.0
  %4086 = vmatpush1.msra.mxu0 %v4063
  %4087 = vmatprep.subr.mxu0 0.0
  %4088 = vmatpush1.msra.mxu0 0.0
  %4089 = vmatprep.subr.mxu0 0.0
  %4090 = vmatpush1.msra.mxu0 0.0
  %4091 = vmatprep.subr.mxu0 0.0
  %4092 = vmatpush1.msra.mxu0 0.0
  %4093 = vmatprep.subr.mxu0 0.0
  %4094 = vmatpush1.msra.mxu0 0.0
  %4095 = vmatprep.subr.mxu0 0.0
  %4096 = vmatpush1.msra.mxu0 0.0
  %4097 = vmatprep.subr.mxu0 0.0
  %4098 = vmatpush1.msra.mxu0 0.0
  %4099 = vmatprep.subr.mxu0 0.0
  %4100 = vmatpush1.msra.mxu0 0.0
  %4101 = vmatprep.subr.mxu0 0.0
  %4102 = vmatpush1.msra.mxu0 0.0
  %4103 = vmatprep.subr.mxu0 0.0
  %4104 = vmatpush1.msra.mxu0 0.0
  %4105 = vmatprep.subr.mxu0 0.0
  %4106 = vmatpush1.msra.mxu0 0.0
  %4107 = vmatprep.subr.mxu0 0.0
  %4108 = vmatpush1.msra.mxu0 0.0
  %4109 = vmatprep.subr.mxu0 0.0
  %4110 = vmatpush1.msra.mxu0 0.0
  %4111 = vmatprep.subr.mxu0 0.0
  %4112 = vmatpush1.msra.mxu0 0.0
  %4113 = vmatprep.subr.mxu0 0.0
  %4114 = vmatpush1.msra.mxu0 0.0
  %4115 = vmatprep.subr.mxu0 0.0
  %4116 = vmatpush1.msra.mxu0 0.0
  %4117 = vmatprep.subr.mxu0 0.0
  %4118 = vmatpush1.msra.mxu0 0.0
  %4119 = vmatprep.subr.mxu0 0.0
  %4120 = vmatpush1.msra.mxu0 0.0
  %4121 = vmatprep.subr.mxu0 0.0
  %4122 = vmatpush1.msra.mxu0 0.0
  %4123 = vmatprep.subr.mxu0 0.0
  %4124 = vmatpush1.msra.mxu0 0.0
  %4125 = vmatprep.subr.mxu0 0.0
  %4126 = vmatpush1.msra.mxu0 0.0
  %4127 = vmatprep.subr.mxu0 0.0
  %4128 = vmatpush1.msra.mxu0 0.0
  %4129 = vmatprep.mubr.f32.mxu0 0.0
  %4130 = vmatmul.mubr.f32.gmra.mrb[0].mxu0 %v4060
  %v4131 = vpop.f32.mrb[0].mxu0
  %v4132 = vadd.f32 %v4056, %v4131
  %v4133 = vpop.f32.mrb[0].mxu0
  %4134 = vdwg.mxu0
  %vm4135 = vcmask 80896
  %4136 = vst.msk [vmem:[%s12] sm:$0xff] %vm4135, %v4132
  // Predicated region
  $region50: #{lenet_forward.1} parent=0 // pred_check
    _
  $region51: #{lenet_forward.1} parent=0 // pred_check_branch
    %4138 = sbr.rel (0) target = $region53
  $region52: #{lenet_forward.1} parent=0 // pred_region
    _
  $region53: #{lenet_forward.1} parent=0 // pred_fallthru
    _
  // Predicated region
  $region54: #{lenet_forward.1} parent=0 // pred_check
    _
  $region55: #{lenet_forward.1} parent=0 // pred_check_branch
    %4140 = sbr.rel (0) target = $region57
  $region56: #{lenet_forward.1} parent=0 // pred_region
    _
  $region57: #{lenet_forward.1} parent=0 // pred_fallthru
    _

</llo_original>
